<compile_context>
chip_gen: v5e
topology: v5e:2x2
jax: 0.10.0
libtpu: 0.0.40
codegen_flags: <defaults>
</compile_context>

<pallas_src>
import functools

import jax
import jax.numpy as jnp
import numpy as np
from jax import lax
from jax.experimental import pallas as pl
from jax.experimental.pallas import tpu as pltpu


# ----------------------------------------------------------------------------
# Host-side DFT constant builders (float64 build, mod-n-reduced angles, cached)
# ----------------------------------------------------------------------------
@functools.lru_cache(maxsize=None)
def _fwd_dft_rows_padded(n: int, pad: int):
    """Forward DFT exp(-2*pi*i*j*k/n) as a LEFT-multiply matrix with `pad`
    zero rows folded in on each side: (n + 2*pad, n), stacked [re, im, re+im]."""
    k = np.arange(n)
    ang = 2.0 * np.pi * np.mod(np.outer(k, k), n) / n
    re, im = np.cos(ang), -np.sin(ang)
    re = np.pad(re, ((pad, pad), (0, 0)))
    im = np.pad(im, ((pad, pad), (0, 0)))
    return np.stack([re, im, re + im]).astype(np.float32)


@functools.lru_cache(maxsize=None)
def _fwd_dft_cols_padded(n: int, pad: int):
    """Forward DFT as a RIGHT-multiply matrix with `pad` zero columns folded
    in on each side: (n, n + 2*pad), stacked [re, im, re+im]."""
    k = np.arange(n)
    ang = 2.0 * np.pi * np.mod(np.outer(k, k), n) / n
    re, im = np.cos(ang), -np.sin(ang)
    re = np.pad(re, ((0, 0), (pad, pad)))
    im = np.pad(im, ((0, 0), (pad, pad)))
    return np.stack([re, im, re + im]).astype(np.float32)


@functools.lru_cache(maxsize=None)
def _inv_dft(n: int):
    """Inverse DFT exp(+2*pi*i*j*k/n)/n ('backward' norm), [re, im, re+im]."""
    k = np.arange(n)
    ang = 2.0 * np.pi * np.mod(np.outer(k, k), n) / n
    re, im = np.cos(ang) / n, np.sin(ang) / n
    return np.stack([re, im, re + im]).astype(np.float32)


# ----------------------------------------------------------------------------
# Fused kernel: image conv + (fft2 -> kspace conv -> ifft2), one batch / step
# ----------------------------------------------------------------------------
def _fused_kernel(x_ref, fh_ref, fw_ref, ih_ref, iw_ref,
                  kcw_ref, icw_ref, kcb_ref, icb_ref,
                  o_ref, xpad_ref, ksp_ref, *, C, c_half, H, W, K):
    f32, bf16 = jnp.float32, jnp.bfloat16
    pad = K // 2
    P = C // 2              # complex channel pairs in the input image
    Po = c_half // 2        # complex channel pairs after the k-space conv
    Hp, Wp = H + 2 * pad, W + 2 * pad

    # -- complex matmuls via the Gauss 3-matmul trick.  Data is cast to bf16
    #    only at the MXU boundary; sums/epilogue adds stay in f32 (v5e VPU).
    def gauss_right(xr, xi, m_ref):
        # (xr + i*xi) @ (m_r + i*m_i); m_ref = [m_r, m_i, m_r+m_i] in bf16.
        p1 = jnp.dot(xr.astype(bf16), m_ref[0], preferred_element_type=f32)
        p2 = jnp.dot(xi.astype(bf16), m_ref[1], preferred_element_type=f32)
        p3 = jnp.dot((xr + xi).astype(bf16), m_ref[2], preferred_element_type=f32)
        return p1 - p2, p3 - p1 - p2

    def gauss_left(m_ref, xr, xi):
        # (m_r + i*m_i) @ (xr + i*xi)
        p1 = jnp.dot(m_ref[0], xr.astype(bf16), preferred_element_type=f32)
        p2 = jnp.dot(m_ref[1], xi.astype(bf16), preferred_element_type=f32)
        p3 = jnp.dot(m_ref[2], (xr + xi).astype(bf16), preferred_element_type=f32)
        return p1 - p2, p3 - p1 - p2

    # -- 9-tap 'same' KxK conv over a zero-padded (C, Hp, Wp) scratch.  The
    #    channel contraction is scalar-broadcast VPU FMAs (weights in SMEM),
    #    which overlaps with the MXU DFT matmuls for the tiny C / c_half here
    #    and keeps the image-domain path exact f32.
    # TODO(synk): for large channel counts (multi-coil) switch each tap to an
    # MXU dot_general over C and/or fuse the two convs / batch >=2 images per
    # grid step to grow the matmul M dim (review items 4/5).
    def conv3x3(src_ref, w_ref, b_ref):
        acc = [jnp.zeros((H, W), f32) for _ in range(c_half)]
        for ci in range(C):
            for kh in range(K):
                for kw in range(K):
                    tap = src_ref[ci, kh:kh + H, kw:kw + W]          # (H, W)
                    for co in range(c_half):
                        wgt = w_ref[((co * C + ci) * K + kh) * K + kw]
                        acc[co] = acc[co] + wgt * tap
        return [acc[co] + b_ref[co] for co in range(c_half)]

    x = x_ref[0]                                                     # (C, H, W) f32

    # ---- image-domain conv (exact f32): zero scratch + one unaligned interior
    #      copy replaces the old O(H*W*(H+W)) pad-matmuls on the MXU.
    xpad_ref[...] = jnp.zeros_like(xpad_ref)
    xpad_ref[:, pad:pad + H, pad:pad + W] = x
    img = conv3x3(xpad_ref, icw_ref, icb_ref)
    for co in range(c_half):
        o_ref[0, co] = img[co]

    # ---- image -> k-space (fft2, centered=False, norm='backward'):
    #      stage F1: W-axis DFT, batched over ALL complex pairs stacked along
    #      sublanes; the k-space conv's W-padding is folded into fw_ref so the
    #      result leaves the MXU already W-padded.
    xr_s = jnp.concatenate([x[2 * p] for p in range(P)], axis=0)      # (P*H, W)
    xi_s = jnp.concatenate([x[2 * p + 1] for p in range(P)], axis=0)  # (P*H, W)
    ur_s, ui_s = gauss_right(xr_s, xi_s, fw_ref)                      # (P*H, Wp)

    #      stage F2: H-axis DFT per pair (H-padding folded into fh_ref); each
    #      padded k-space plane goes straight into VMEM scratch so only one
    #      (Hp, Wp) pair is live at a time.
    for p in range(P):
        ur = ur_s[p * H:(p + 1) * H]
        ui = ui_s[p * H:(p + 1) * H]
        kr, ki = gauss_left(fh_ref, ur, ui)                           # (Hp, Wp)
        ksp_ref[2 * p] = kr
        ksp_ref[2 * p + 1] = ki

    # ---- k-space conv -> ifft2 -> 'backward' output channels [c_half:2*c_half]
    ks = conv3x3(ksp_ref, kcw_ref, kcb_ref)                           # c_half x (H, W)

    vr_s = jnp.concatenate([ks[2 * p] for p in range(Po)], axis=0)    # (Po*H, W)
    vi_s = jnp.concatenate([ks[2 * p + 1] for p in range(Po)], axis=0)
    wr_s, wi_s = gauss_right(vr_s, vi_s, iw_ref)                      # (Po*H, W)

    for p in range(Po):
        wr = wr_s[p * H:(p + 1) * H]
        wi = wi_s[p * H:(p + 1) * H]
        br, bi = gauss_left(ih_ref, wr, wi)                           # (H, W)
        o_ref[0, c_half + 2 * p] = br
        o_ref[0, c_half + 2 * p + 1] = bi
    # TODO(synk): if production W < 128, repack the output into a lane-dense
    # slab (e.g. (2*c_half*H, >=128)) and reshape in the wrapper to avoid
    # masked vst.msk partial stores.


# ----------------------------------------------------------------------------
# Wrapper
# ----------------------------------------------------------------------------
def multidomain_conv2d(image, params):
    """Forward pass of MultiDomainConv2d (fft_centered=False,
    fft_normalization='backward', spatial_dims=[-2, -1], coil_dim=1;
    Conv2d kwargs assumed: kernel_size=3, stride=1, padding=1, bias=True)."""
    N, C, H, W = image.shape
    kcw, kcb = params["kspace_w"], params["kspace_b"]
    icw, icb = params["image_w"], params["image_b"]
    c_half, c_in, K, _ = kcw.shape
    assert c_in == C and C % 2 == 0 and c_half % 2 == 0 and K % 2 == 1
    pad = K // 2
    Hp, Wp = H + 2 * pad, W + 2 * pad

    # DFT twiddles staged in bf16 (default-precision MXU truncates operands to
    # bf16 anyway); the k-space conv's zero padding is folded into the forward
    # matrices so no HBM pre-pad / in-kernel pad of the DFT output is needed.
    fh = jnp.asarray(_fwd_dft_rows_padded(H, pad)).astype(jnp.bfloat16)  # (3, Hp, H)
    fw = jnp.asarray(_fwd_dft_cols_padded(W, pad)).astype(jnp.bfloat16)  # (3, W, Wp)
    ih = jnp.asarray(_inv_dft(H)).astype(jnp.bfloat16)                   # (3, H, H)
    iw = jnp.asarray(_inv_dft(W)).astype(jnp.bfloat16)                   # (3, W, W)

    # Conv weights flattened row-major over (co, ci, kh, kw) for scalar SMEM reads.
    kcw_flat = kcw.astype(jnp.float32).reshape(-1)
    icw_flat = icw.astype(jnp.float32).reshape(-1)

    # VMEM budget derived from the real block / scratch sizes (not hard-coded):
    # double-buffered x & out blocks + (double-buffered) bf16 constants + two
    # padded scratches + headroom for in-flight matmul temporaries; clamped to
    # 48 MiB so it stays inside v7x's 64 MiB physical VMEM.
    const_elems = 3 * (Hp * H + W * Wp + H * H + W * W)
    block_bytes = (2 * C * H * W * 4 + 2 * (2 * c_half) * H * W * 4
                   + 2 * const_elems * 2 + 2 * C * Hp * Wp * 4)
    temp_bytes = 8 * C * H * Wp * 4 + 8 * Hp * Wp * 4
    vmem_limit = int(min(max(2 * (block_bytes + temp_bytes), 16 << 20), 48 << 20))

    kernel = functools.partial(_fused_kernel, C=C, c_half=c_half, H=H, W=W, K=K)
    const3 = lambda n: (0, 0, 0)

    # TODO(synk): single-buffer the grid-invariant constant/weight inputs
    # (pipeline_mode=pl.Buffered(1)) once confirmed on the target JAX version,
    # and add a second 'parallel' grid axis for odd/unit N so both v7x
    # TensorCores stay busy.
    return pl.pallas_call(
        kernel,
        out_shape=jax.ShapeDtypeStruct((N, 2 * c_half, H, W), jnp.float32),
        grid=(N,),
        in_specs=[
            pl.BlockSpec((1, C, H, W), lambda n: (n, 0, 0, 0)),
            pl.BlockSpec((3, Hp, H), const3),
            pl.BlockSpec((3, W, Wp), const3),
            pl.BlockSpec((3, H, H), const3),
            pl.BlockSpec((3, W, W), const3),
            pl.BlockSpec(memory_space=pltpu.MemorySpace.SMEM),   # kspace weights
            pl.BlockSpec(memory_space=pltpu.MemorySpace.SMEM),   # image weights
            pl.BlockSpec(memory_space=pltpu.MemorySpace.SMEM),   # kspace bias
            pl.BlockSpec(memory_space=pltpu.MemorySpace.SMEM),   # image bias
        ],
        out_specs=pl.BlockSpec((1, 2 * c_half, H, W), lambda n: (n, 0, 0, 0)),
        scratch_shapes=[
            pltpu.VMEM((C, Hp, Wp), jnp.float32),   # zero-padded image
            pltpu.VMEM((C, Hp, Wp), jnp.float32),   # zero-padded k-space
        ],
        compiler_params=pltpu.CompilerParams(
            dimension_semantics=("parallel",),      # batch axis -> both TCs
            vmem_limit_bytes=vmem_limit),
    )(image, fh, fw, ih, iw, kcw_flat, icw_flat,
      kcb.astype(jnp.float32), icb.astype(jnp.float32))


# ----------------------------------------------------------------------------
# Pure-JAX reference (jnp.fft + lax.conv) for correctness check
# ----------------------------------------------------------------------------
def _conv_ref(x, w, b):
    out = lax.conv_general_dilated(
        x, w, window_strides=(1, 1), padding="SAME",
        dimension_numbers=("NCHW", "OIHW", "NCHW"),
        precision=lax.Precision.HIGHEST)
    return out + b[None, :, None, None]


def multidomain_conv2d_ref(image, params):
    N, C, H, W = image.shape
    P = C // 2
    x = jnp.transpose(image, (0, 2, 3, 1)).reshape(N, H, W, P, 2)
    xc = x[..., 0] + 1j * x[..., 1]                       # (N, H, W, P)
    kc = jnp.fft.fft2(xc, axes=(1, 2))
    ksp = jnp.stack([kc.real, kc.imag], axis=-1).reshape(N, H, W, C)
    ksp = jnp.transpose(ksp.astype(jnp.float32), (0, 3, 1, 2))
    ksp = _conv_ref(ksp, params["kspace_w"], params["kspace_b"])
    Ch = ksp.shape[1]
    Ph = Ch // 2
    kk = jnp.transpose(ksp, (0, 2, 3, 1)).reshape(N, H, W, Ph, 2)
    kc2 = kk[..., 0] + 1j * kk[..., 1]
    bc = jnp.fft.ifft2(kc2, axes=(1, 2))
    bwd = jnp.stack([bc.real, bc.imag], axis=-1).reshape(N, H, W, Ch)
    bwd = jnp.transpose(bwd.astype(jnp.float32), (0, 3, 1, 2))
    img = _conv_ref(image, params["image_w"], params["image_b"])
    return jnp.concatenate([img, bwd], axis=1)


if __name__ == "__main__":
    N, C, H, W = 2, 4, 16, 16      # in_channels=4, out_channels=4
    C_out, K = 4, 3                # Conv2d kwargs: kernel_size=3, padding=1

    key = jax.random.PRNGKey(0)
    k1, k2, k3, k4, k5 = jax.random.split(key, 5)
    image = jax.random.normal(k1, (N, C, H, W), jnp.float32)
    params = {
        "image_w": 0.1 * jax.random.normal(k2, (C_out // 2, C, K, K), jnp.float32),
        "image_b": 0.1 * jax.random.normal(k3, (C_out // 2,), jnp.float32),
        "kspace_w": 0.1 * jax.random.normal(k4, (C_out // 2, C, K, K), jnp.float32),
        "kspace_b": 0.1 * jax.random.normal(k5, (C_out // 2,), jnp.float32),
    }

    out = jax.jit(multidomain_conv2d)(image, params)
    out = jax.block_until_ready(out)
    assert out.shape == (N, C_out, H, W)

    ref = multidomain_conv2d_ref(image, params)
    # Tolerance reflects bf16-operand / f32-accumulate MXU matmuls through the
    # fft -> conv -> ifft chain (image-conv half is exact f32 now); at large
    # MRI sizes (320^2) expect larger error -> consider f32 twiddles there.
    np.testing.assert_allclose(np.asarray(out), np.asarray(ref),
                               atol=2e-2, rtol=2e-2)
    print("KERNEL_OK")
</pallas_src>

<mosaic_0001>
module attributes {stable_mosaic.version = 11 : i64} {
  func.func @_fused_kernel(%arg0: i32, %arg1: memref<1x4x16x16xf32, #tpu.memory_space<vmem>>, %arg2: memref<3x18x16xbf16, #tpu.memory_space<vmem>>, %arg3: memref<3x16x18xbf16, #tpu.memory_space<vmem>>, %arg4: memref<3x16x16xbf16, #tpu.memory_space<vmem>>, %arg5: memref<3x16x16xbf16, #tpu.memory_space<vmem>>, %arg6: memref<72xf32, #tpu.memory_space<smem>>, %arg7: memref<72xf32, #tpu.memory_space<smem>>, %arg8: memref<2xf32, #tpu.memory_space<smem>>, %arg9: memref<2xf32, #tpu.memory_space<smem>>, %arg10: memref<1x4x16x16xf32, #tpu.memory_space<vmem>>, %arg11: memref<4x18x18xf32, #tpu.memory_space<vmem>>, %arg12: memref<4x18x18xf32, #tpu.memory_space<vmem>>) attributes {dimension_semantics = [#tpu.dimension_semantics<parallel>], iteration_bounds = array<i64: 2>, scalar_prefetch = 0 : i64, scratch_operands = 2 : i64, tpu.core_type = #tpu.core_type<tc>, window_params = [{transform_indices = @transform_0, window_bounds = array<i64: 1, 4, 16, 16>}, {pipeline_mode = #tpu.pipeline_mode<synchronous>, transform_indices = @transform_1, window_bounds = array<i64: 3, 18, 16>}, {pipeline_mode = #tpu.pipeline_mode<synchronous>, transform_indices = @transform_2, window_bounds = array<i64: 3, 16, 18>}, {pipeline_mode = #tpu.pipeline_mode<synchronous>, transform_indices = @transform_3, window_bounds = array<i64: 3, 16, 16>}, {pipeline_mode = #tpu.pipeline_mode<synchronous>, transform_indices = @transform_4, window_bounds = array<i64: 3, 16, 16>}, {transform_indices = @transform_5, window_bounds = array<i64: 72>}, {transform_indices = @transform_6, window_bounds = array<i64: 72>}, {transform_indices = @transform_7, window_bounds = array<i64: 2>}, {transform_indices = @transform_8, window_bounds = array<i64: 2>}, {transform_indices = @transform_9, window_bounds = array<i64: 1, 4, 16, 16>}]} {
    %c0 = arith.constant 0 : index
    %c0_0 = arith.constant 0 : index
    %c0_1 = arith.constant 0 : index
    %c0_2 = arith.constant 0 : index
    %0 = vector.load %arg1[%c0, %c0_0, %c0_1, %c0_2] : memref<1x4x16x16xf32, #tpu.memory_space<vmem>>, vector<1x4x16x16xf32>
    %1 = vector.shape_cast %0 : vector<1x4x16x16xf32> to vector<4x16x16xf32>
    %cst = arith.constant 0.000000e+00 : f32
    %2 = vector.broadcast %cst : f32 to vector<4x18x18xf32>
    %c0_3 = arith.constant 0 : index
    %c0_4 = arith.constant 0 : index
    %c0_5 = arith.constant 0 : index
    %3 = vector.load %arg11[%c0_3, %c0_4, %c0_5] : memref<4x18x18xf32, #tpu.memory_space<vmem>>, vector<4x18x18xf32>
    tpu.vector_store %arg11[%c0_3, %c0_4, %c0_5], %2 {strides = array<i32>} : memref<4x18x18xf32, #tpu.memory_space<vmem>>, vector<4x18x18xf32>,
    %c0_6 = arith.constant 0 : index
    %c1 = arith.constant 1 : index
    %c1_7 = arith.constant 1 : index
    %4 = vector.load %arg11[%c0_6, %c1, %c1_7] : memref<4x18x18xf32, #tpu.memory_space<vmem>>, vector<4x16x16xf32>
    tpu.vector_store %arg11[%c0_6, %c1, %c1_7], %1 {strides = array<i32>} : memref<4x18x18xf32, #tpu.memory_space<vmem>>, vector<4x16x16xf32>,
    %cst_8 = arith.constant 0.000000e+00 : f32
    %5 = vector.broadcast %cst_8 : f32 to vector<16x16xf32>
    %cst_9 = arith.constant 0.000000e+00 : f32
    %6 = vector.broadcast %cst_9 : f32 to vector<16x16xf32>
    %c0_10 = arith.constant 0 : index
    %c0_11 = arith.constant 0 : index
    %c0_12 = arith.constant 0 : index
    %7 = vector.load %arg11[%c0_10, %c0_11, %c0_12] : memref<4x18x18xf32, #tpu.memory_space<vmem>>, vector<1x16x16xf32>
    %8 = vector.shape_cast %7 : vector<1x16x16xf32> to vector<16x16xf32>
    %c0_13 = arith.constant 0 : index
    %9 = memref.load %arg7[%c0_13] : memref<72xf32, #tpu.memory_space<smem>>
    %10 = vector.broadcast %9 : f32 to vector<16x16xf32>
    %11 = arith.mulf %10, %8 : vector<16x16xf32>
    %12 = arith.addf %5, %11 : vector<16x16xf32>
    %c36 = arith.constant 36 : index
    %13 = memref.load %arg7[%c36] : memref<72xf32, #tpu.memory_space<smem>>
    %14 = vector.broadcast %13 : f32 to vector<16x16xf32>
    %15 = arith.mulf %14, %8 : vector<16x16xf32>
    %16 = arith.addf %6, %15 : vector<16x16xf32>
    %c0_14 = arith.constant 0 : index
    %c0_15 = arith.constant 0 : index
    %c1_16 = arith.constant 1 : index
    %17 = vector.load %arg11[%c0_14, %c0_15, %c1_16] : memref<4x18x18xf32, #tpu.memory_space<vmem>>, vector<1x16x16xf32>
    %18 = vector.shape_cast %17 : vector<1x16x16xf32> to vector<16x16xf32>
    %c1_17 = arith.constant 1 : index
    %19 = memref.load %arg7[%c1_17] : memref<72xf32, #tpu.memory_space<smem>>
    %20 = vector.broadcast %19 : f32 to vector<16x16xf32>
    %21 = arith.mulf %20, %18 : vector<16x16xf32>
    %22 = arith.addf %12, %21 : vector<16x16xf32>
    %c37 = arith.constant 37 : index
    %23 = memref.load %arg7[%c37] : memref<72xf32, #tpu.memory_space<smem>>
    %24 = vector.broadcast %23 : f32 to vector<16x16xf32>
    %25 = arith.mulf %24, %18 : vector<16x16xf32>
    %26 = arith.addf %16, %25 : vector<16x16xf32>
    %c0_18 = arith.constant 0 : index
    %c0_19 = arith.constant 0 : index
    %c2 = arith.constant 2 : index
    %27 = vector.load %arg11[%c0_18, %c0_19, %c2] : memref<4x18x18xf32, #tpu.memory_space<vmem>>, vector<1x16x16xf32>
    %28 = vector.shape_cast %27 : vector<1x16x16xf32> to vector<16x16xf32>
    %c2_20 = arith.constant 2 : index
    %29 = memref.load %arg7[%c2_20] : memref<72xf32, #tpu.memory_space<smem>>
    %30 = vector.broadcast %29 : f32 to vector<16x16xf32>
    %31 = arith.mulf %30, %28 : vector<16x16xf32>
    %32 = arith.addf %22, %31 : vector<16x16xf32>
    %c38 = arith.constant 38 : index
    %33 = memref.load %arg7[%c38] : memref<72xf32, #tpu.memory_space<smem>>
    %34 = vector.broadcast %33 : f32 to vector<16x16xf32>
    %35 = arith.mulf %34, %28 : vector<16x16xf32>
    %36 = arith.addf %26, %35 : vector<16x16xf32>
    %c0_21 = arith.constant 0 : index
    %c1_22 = arith.constant 1 : index
    %c0_23 = arith.constant 0 : index
    %37 = vector.load %arg11[%c0_21, %c1_22, %c0_23] : memref<4x18x18xf32, #tpu.memory_space<vmem>>, vector<1x16x16xf32>
    %38 = vector.shape_cast %37 : vector<1x16x16xf32> to vector<16x16xf32>
    %c3 = arith.constant 3 : index
    %39 = memref.load %arg7[%c3] : memref<72xf32, #tpu.memory_space<smem>>
    %40 = vector.broadcast %39 : f32 to vector<16x16xf32>
    %41 = arith.mulf %40, %38 : vector<16x16xf32>
    %42 = arith.addf %32, %41 : vector<16x16xf32>
    %c39 = arith.constant 39 : index
    %43 = memref.load %arg7[%c39] : memref<72xf32, #tpu.memory_space<smem>>
    %44 = vector.broadcast %43 : f32 to vector<16x16xf32>
    %45 = arith.mulf %44, %38 : vector<16x16xf32>
    %46 = arith.addf %36, %45 : vector<16x16xf32>
    %c0_24 = arith.constant 0 : index
    %c1_25 = arith.constant 1 : index
    %c1_26 = arith.constant 1 : index
    %47 = vector.load %arg11[%c0_24, %c1_25, %c1_26] : memref<4x18x18xf32, #tpu.memory_space<vmem>>, vector<1x16x16xf32>
    %48 = vector.shape_cast %47 : vector<1x16x16xf32> to vector<16x16xf32>
    %c4 = arith.constant 4 : index
    %49 = memref.load %arg7[%c4] : memref<72xf32, #tpu.memory_space<smem>>
    %50 = vector.broadcast %49 : f32 to vector<16x16xf32>
    %51 = arith.mulf %50, %48 : vector<16x16xf32>
    %52 = arith.addf %42, %51 : vector<16x16xf32>
    %c40 = arith.constant 40 : index
    %53 = memref.load %arg7[%c40] : memref<72xf32, #tpu.memory_space<smem>>
    %54 = vector.broadcast %53 : f32 to vector<16x16xf32>
    %55 = arith.mulf %54, %48 : vector<16x16xf32>
    %56 = arith.addf %46, %55 : vector<16x16xf32>
    %c0_27 = arith.constant 0 : index
    %c1_28 = arith.constant 1 : index
    %c2_29 = arith.constant 2 : index
    %57 = vector.load %arg11[%c0_27, %c1_28, %c2_29] : memref<4x18x18xf32, #tpu.memory_space<vmem>>, vector<1x16x16xf32>
    %58 = vector.shape_cast %57 : vector<1x16x16xf32> to vector<16x16xf32>
    %c5 = arith.constant 5 : index
    %59 = memref.load %arg7[%c5] : memref<72xf32, #tpu.memory_space<smem>>
    %60 = vector.broadcast %59 : f32 to vector<16x16xf32>
    %61 = arith.mulf %60, %58 : vector<16x16xf32>
    %62 = arith.addf %52, %61 : vector<16x16xf32>
    %c41 = arith.constant 41 : index
    %63 = memref.load %arg7[%c41] : memref<72xf32, #tpu.memory_space<smem>>
    %64 = vector.broadcast %63 : f32 to vector<16x16xf32>
    %65 = arith.mulf %64, %58 : vector<16x16xf32>
    %66 = arith.addf %56, %65 : vector<16x16xf32>
    %c0_30 = arith.constant 0 : index
    %c2_31 = arith.constant 2 : index
    %c0_32 = arith.constant 0 : index
    %67 = vector.load %arg11[%c0_30, %c2_31, %c0_32] : memref<4x18x18xf32, #tpu.memory_space<vmem>>, vector<1x16x16xf32>
    %68 = vector.shape_cast %67 : vector<1x16x16xf32> to vector<16x16xf32>
    %c6 = arith.constant 6 : index
    %69 = memref.load %arg7[%c6] : memref<72xf32, #tpu.memory_space<smem>>
    %70 = vector.broadcast %69 : f32 to vector<16x16xf32>
    %71 = arith.mulf %70, %68 : vector<16x16xf32>
    %72 = arith.addf %62, %71 : vector<16x16xf32>
    %c42 = arith.constant 42 : index
    %73 = memref.load %arg7[%c42] : memref<72xf32, #tpu.memory_space<smem>>
    %74 = vector.broadcast %73 : f32 to vector<16x16xf32>
    %75 = arith.mulf %74, %68 : vector<16x16xf32>
    %76 = arith.addf %66, %75 : vector<16x16xf32>
    %c0_33 = arith.constant 0 : index
    %c2_34 = arith.constant 2 : index
    %c1_35 = arith.constant 1 : index
    %77 = vector.load %arg11[%c0_33, %c2_34, %c1_35] : memref<4x18x18xf32, #tpu.memory_space<vmem>>, vector<1x16x16xf32>
    %78 = vector.shape_cast %77 : vector<1x16x16xf32> to vector<16x16xf32>
    %c7 = arith.constant 7 : index
    %79 = memref.load %arg7[%c7] : memref<72xf32, #tpu.memory_space<smem>>
    %80 = vector.broadcast %79 : f32 to vector<16x16xf32>
    %81 = arith.mulf %80, %78 : vector<16x16xf32>
    %82 = arith.addf %72, %81 : vector<16x16xf32>
    %c43 = arith.constant 43 : index
    %83 = memref.load %arg7[%c43] : memref<72xf32, #tpu.memory_space<smem>>
    %84 = vector.broadcast %83 : f32 to vector<16x16xf32>
    %85 = arith.mulf %84, %78 : vector<16x16xf32>
    %86 = arith.addf %76, %85 : vector<16x16xf32>
    %c0_36 = arith.constant 0 : index
    %c2_37 = arith.constant 2 : index
    %c2_38 = arith.constant 2 : index
    %87 = vector.load %arg11[%c0_36, %c2_37, %c2_38] : memref<4x18x18xf32, #tpu.memory_space<vmem>>, vector<1x16x16xf32>
    %88 = vector.shape_cast %87 : vector<1x16x16xf32> to vector<16x16xf32>
    %c8 = arith.constant 8 : index
    %89 = memref.load %arg7[%c8] : memref<72xf32, #tpu.memory_space<smem>>
    %90 = vector.broadcast %89 : f32 to vector<16x16xf32>
    %91 = arith.mulf %90, %88 : vector<16x16xf32>
    %92 = arith.addf %82, %91 : vector<16x16xf32>
    %c44 = arith.constant 44 : index
    %93 = memref.load %arg7[%c44] : memref<72xf32, #tpu.memory_space<smem>>
    %94 = vector.broadcast %93 : f32 to vector<16x16xf32>
    %95 = arith.mulf %94, %88 : vector<16x16xf32>
    %96 = arith.addf %86, %95 : vector<16x16xf32>
    %c1_39 = arith.constant 1 : index
    %c0_40 = arith.constant 0 : index
    %c0_41 = arith.constant 0 : index
    %97 = vector.load %arg11[%c1_39, %c0_40, %c0_41] : memref<4x18x18xf32, #tpu.memory_space<vmem>>, vector<1x16x16xf32>
    %98 = vector.shape_cast %97 : vector<1x16x16xf32> to vector<16x16xf32>
    %c9 = arith.constant 9 : index
    %99 = memref.load %arg7[%c9] : memref<72xf32, #tpu.memory_space<smem>>
    %100 = vector.broadcast %99 : f32 to vector<16x16xf32>
    %101 = arith.mulf %100, %98 : vector<16x16xf32>
    %102 = arith.addf %92, %101 : vector<16x16xf32>
    %c45 = arith.constant 45 : index
    %103 = memref.load %arg7[%c45] : memref<72xf32, #tpu.memory_space<smem>>
    %104 = vector.broadcast %103 : f32 to vector<16x16xf32>
    %105 = arith.mulf %104, %98 : vector<16x16xf32>
    %106 = arith.addf %96, %105 : vector<16x16xf32>
    %c1_42 = arith.constant 1 : index
    %c0_43 = arith.constant 0 : index
    %c1_44 = arith.constant 1 : index
    %107 = vector.load %arg11[%c1_42, %c0_43, %c1_44] : memref<4x18x18xf32, #tpu.memory_space<vmem>>, vector<1x16x16xf32>
    %108 = vector.shape_cast %107 : vector<1x16x16xf32> to vector<16x16xf32>
    %c10 = arith.constant 10 : index
    %109 = memref.load %arg7[%c10] : memref<72xf32, #tpu.memory_space<smem>>
    %110 = vector.broadcast %109 : f32 to vector<16x16xf32>
    %111 = arith.mulf %110, %108 : vector<16x16xf32>
    %112 = arith.addf %102, %111 : vector<16x16xf32>
    %c46 = arith.constant 46 : index
    %113 = memref.load %arg7[%c46] : memref<72xf32, #tpu.memory_space<smem>>
    %114 = vector.broadcast %113 : f32 to vector<16x16xf32>
    %115 = arith.mulf %114, %108 : vector<16x16xf32>
    %116 = arith.addf %106, %115 : vector<16x16xf32>
    %c1_45 = arith.constant 1 : index
    %c0_46 = arith.constant 0 : index
    %c2_47 = arith.constant 2 : index
    %117 = vector.load %arg11[%c1_45, %c0_46, %c2_47] : memref<4x18x18xf32, #tpu.memory_space<vmem>>, vector<1x16x16xf32>
    %118 = vector.shape_cast %117 : vector<1x16x16xf32> to vector<16x16xf32>
    %c11 = arith.constant 11 : index
    %119 = memref.load %arg7[%c11] : memref<72xf32, #tpu.memory_space<smem>>
    %120 = vector.broadcast %119 : f32 to vector<16x16xf32>
    %121 = arith.mulf %120, %118 : vector<16x16xf32>
    %122 = arith.addf %112, %121 : vector<16x16xf32>
    %c47 = arith.constant 47 : index
    %123 = memref.load %arg7[%c47] : memref<72xf32, #tpu.memory_space<smem>>
    %124 = vector.broadcast %123 : f32 to vector<16x16xf32>
    %125 = arith.mulf %124, %118 : vector<16x16xf32>
    %126 = arith.addf %116, %125 : vector<16x16xf32>
    %c1_48 = arith.constant 1 : index
    %c1_49 = arith.constant 1 : index
    %c0_50 = arith.constant 0 : index
    %127 = vector.load %arg11[%c1_48, %c1_49, %c0_50] : memref<4x18x18xf32, #tpu.memory_space<vmem>>, vector<1x16x16xf32>
    %128 = vector.shape_cast %127 : vector<1x16x16xf32> to vector<16x16xf32>
    %c12 = arith.constant 12 : index
    %129 = memref.load %arg7[%c12] : memref<72xf32, #tpu.memory_space<smem>>
    %130 = vector.broadcast %129 : f32 to vector<16x16xf32>
    %131 = arith.mulf %130, %128 : vector<16x16xf32>
    %132 = arith.addf %122, %131 : vector<16x16xf32>
    %c48 = arith.constant 48 : index
    %133 = memref.load %arg7[%c48] : memref<72xf32, #tpu.memory_space<smem>>
    %134 = vector.broadcast %133 : f32 to vector<16x16xf32>
    %135 = arith.mulf %134, %128 : vector<16x16xf32>
    %136 = arith.addf %126, %135 : vector<16x16xf32>
    %c1_51 = arith.constant 1 : index
    %c1_52 = arith.constant 1 : index
    %c1_53 = arith.constant 1 : index
    %137 = vector.load %arg11[%c1_51, %c1_52, %c1_53] : memref<4x18x18xf32, #tpu.memory_space<vmem>>, vector<1x16x16xf32>
    %138 = vector.shape_cast %137 : vector<1x16x16xf32> to vector<16x16xf32>
    %c13 = arith.constant 13 : index
    %139 = memref.load %arg7[%c13] : memref<72xf32, #tpu.memory_space<smem>>
    %140 = vector.broadcast %139 : f32 to vector<16x16xf32>
    %141 = arith.mulf %140, %138 : vector<16x16xf32>
    %142 = arith.addf %132, %141 : vector<16x16xf32>
    %c49 = arith.constant 49 : index
    %143 = memref.load %arg7[%c49] : memref<72xf32, #tpu.memory_space<smem>>
    %144 = vector.broadcast %143 : f32 to vector<16x16xf32>
    %145 = arith.mulf %144, %138 : vector<16x16xf32>
    %146 = arith.addf %136, %145 : vector<16x16xf32>
    %c1_54 = arith.constant 1 : index
    %c1_55 = arith.constant 1 : index
    %c2_56 = arith.constant 2 : index
    %147 = vector.load %arg11[%c1_54, %c1_55, %c2_56] : memref<4x18x18xf32, #tpu.memory_space<vmem>>, vector<1x16x16xf32>
    %148 = vector.shape_cast %147 : vector<1x16x16xf32> to vector<16x16xf32>
    %c14 = arith.constant 14 : index
    %149 = memref.load %arg7[%c14] : memref<72xf32, #tpu.memory_space<smem>>
    %150 = vector.broadcast %149 : f32 to vector<16x16xf32>
    %151 = arith.mulf %150, %148 : vector<16x16xf32>
    %152 = arith.addf %142, %151 : vector<16x16xf32>
    %c50 = arith.constant 50 : index
    %153 = memref.load %arg7[%c50] : memref<72xf32, #tpu.memory_space<smem>>
    %154 = vector.broadcast %153 : f32 to vector<16x16xf32>
    %155 = arith.mulf %154, %148 : vector<16x16xf32>
    %156 = arith.addf %146, %155 : vector<16x16xf32>
    %c1_57 = arith.constant 1 : index
    %c2_58 = arith.constant 2 : index
    %c0_59 = arith.constant 0 : index
    %157 = vector.load %arg11[%c1_57, %c2_58, %c0_59] : memref<4x18x18xf32, #tpu.memory_space<vmem>>, vector<1x16x16xf32>
    %158 = vector.shape_cast %157 : vector<1x16x16xf32> to vector<16x16xf32>
    %c15 = arith.constant 15 : index
    %159 = memref.load %arg7[%c15] : memref<72xf32, #tpu.memory_space<smem>>
    %160 = vector.broadcast %159 : f32 to vector<16x16xf32>
    %161 = arith.mulf %160, %158 : vector<16x16xf32>
    %162 = arith.addf %152, %161 : vector<16x16xf32>
    %c51 = arith.constant 51 : index
    %163 = memref.load %arg7[%c51] : memref<72xf32, #tpu.memory_space<smem>>
    %164 = vector.broadcast %163 : f32 to vector<16x16xf32>
    %165 = arith.mulf %164, %158 : vector<16x16xf32>
    %166 = arith.addf %156, %165 : vector<16x16xf32>
    %c1_60 = arith.constant 1 : index
    %c2_61 = arith.constant 2 : index
    %c1_62 = arith.constant 1 : index
    %167 = vector.load %arg11[%c1_60, %c2_61, %c1_62] : memref<4x18x18xf32, #tpu.memory_space<vmem>>, vector<1x16x16xf32>
    %168 = vector.shape_cast %167 : vector<1x16x16xf32> to vector<16x16xf32>
    %c16 = arith.constant 16 : index
    %169 = memref.load %arg7[%c16] : memref<72xf32, #tpu.memory_space<smem>>
    %170 = vector.broadcast %169 : f32 to vector<16x16xf32>
    %171 = arith.mulf %170, %168 : vector<16x16xf32>
    %172 = arith.addf %162, %171 : vector<16x16xf32>
    %c52 = arith.constant 52 : index
    %173 = memref.load %arg7[%c52] : memref<72xf32, #tpu.memory_space<smem>>
    %174 = vector.broadcast %173 : f32 to vector<16x16xf32>
    %175 = arith.mulf %174, %168 : vector<16x16xf32>
    %176 = arith.addf %166, %175 : vector<16x16xf32>
    %c1_63 = arith.constant 1 : index
    %c2_64 = arith.constant 2 : index
    %c2_65 = arith.constant 2 : index
    %177 = vector.load %arg11[%c1_63, %c2_64, %c2_65] : memref<4x18x18xf32, #tpu.memory_space<vmem>>, vector<1x16x16xf32>
    %178 = vector.shape_cast %177 : vector<1x16x16xf32> to vector<16x16xf32>
    %c17 = arith.constant 17 : index
    %179 = memref.load %arg7[%c17] : memref<72xf32, #tpu.memory_space<smem>>
    %180 = vector.broadcast %179 : f32 to vector<16x16xf32>
    %181 = arith.mulf %180, %178 : vector<16x16xf32>
    %182 = arith.addf %172, %181 : vector<16x16xf32>
    %c53 = arith.constant 53 : index
    %183 = memref.load %arg7[%c53] : memref<72xf32, #tpu.memory_space<smem>>
    %184 = vector.broadcast %183 : f32 to vector<16x16xf32>
    %185 = arith.mulf %184, %178 : vector<16x16xf32>
    %186 = arith.addf %176, %185 : vector<16x16xf32>
    %c2_66 = arith.constant 2 : index
    %c0_67 = arith.constant 0 : index
    %c0_68 = arith.constant 0 : index
    %187 = vector.load %arg11[%c2_66, %c0_67, %c0_68] : memref<4x18x18xf32, #tpu.memory_space<vmem>>, vector<1x16x16xf32>
    %188 = vector.shape_cast %187 : vector<1x16x16xf32> to vector<16x16xf32>
    %c18 = arith.constant 18 : index
    %189 = memref.load %arg7[%c18] : memref<72xf32, #tpu.memory_space<smem>>
    %190 = vector.broadcast %189 : f32 to vector<16x16xf32>
    %191 = arith.mulf %190, %188 : vector<16x16xf32>
    %192 = arith.addf %182, %191 : vector<16x16xf32>
    %c54 = arith.constant 54 : index
    %193 = memref.load %arg7[%c54] : memref<72xf32, #tpu.memory_space<smem>>
    %194 = vector.broadcast %193 : f32 to vector<16x16xf32>
    %195 = arith.mulf %194, %188 : vector<16x16xf32>
    %196 = arith.addf %186, %195 : vector<16x16xf32>
    %c2_69 = arith.constant 2 : index
    %c0_70 = arith.constant 0 : index
    %c1_71 = arith.constant 1 : index
    %197 = vector.load %arg11[%c2_69, %c0_70, %c1_71] : memref<4x18x18xf32, #tpu.memory_space<vmem>>, vector<1x16x16xf32>
    %198 = vector.shape_cast %197 : vector<1x16x16xf32> to vector<16x16xf32>
    %c19 = arith.constant 19 : index
    %199 = memref.load %arg7[%c19] : memref<72xf32, #tpu.memory_space<smem>>
    %200 = vector.broadcast %199 : f32 to vector<16x16xf32>
    %201 = arith.mulf %200, %198 : vector<16x16xf32>
    %202 = arith.addf %192, %201 : vector<16x16xf32>
    %c55 = arith.constant 55 : index
    %203 = memref.load %arg7[%c55] : memref<72xf32, #tpu.memory_space<smem>>
    %204 = vector.broadcast %203 : f32 to vector<16x16xf32>
    %205 = arith.mulf %204, %198 : vector<16x16xf32>
    %206 = arith.addf %196, %205 : vector<16x16xf32>
    %c2_72 = arith.constant 2 : index
    %c0_73 = arith.constant 0 : index
    %c2_74 = arith.constant 2 : index
    %207 = vector.load %arg11[%c2_72, %c0_73, %c2_74] : memref<4x18x18xf32, #tpu.memory_space<vmem>>, vector<1x16x16xf32>
    %208 = vector.shape_cast %207 : vector<1x16x16xf32> to vector<16x16xf32>
    %c20 = arith.constant 20 : index
    %209 = memref.load %arg7[%c20] : memref<72xf32, #tpu.memory_space<smem>>
    %210 = vector.broadcast %209 : f32 to vector<16x16xf32>
    %211 = arith.mulf %210, %208 : vector<16x16xf32>
    %212 = arith.addf %202, %211 : vector<16x16xf32>
    %c56 = arith.constant 56 : index
    %213 = memref.load %arg7[%c56] : memref<72xf32, #tpu.memory_space<smem>>
    %214 = vector.broadcast %213 : f32 to vector<16x16xf32>
    %215 = arith.mulf %214, %208 : vector<16x16xf32>
    %216 = arith.addf %206, %215 : vector<16x16xf32>
    %c2_75 = arith.constant 2 : index
    %c1_76 = arith.constant 1 : index
    %c0_77 = arith.constant 0 : index
    %217 = vector.load %arg11[%c2_75, %c1_76, %c0_77] : memref<4x18x18xf32, #tpu.memory_space<vmem>>, vector<1x16x16xf32>
    %218 = vector.shape_cast %217 : vector<1x16x16xf32> to vector<16x16xf32>
    %c21 = arith.constant 21 : index
    %219 = memref.load %arg7[%c21] : memref<72xf32, #tpu.memory_space<smem>>
    %220 = vector.broadcast %219 : f32 to vector<16x16xf32>
    %221 = arith.mulf %220, %218 : vector<16x16xf32>
    %222 = arith.addf %212, %221 : vector<16x16xf32>
    %c57 = arith.constant 57 : index
    %223 = memref.load %arg7[%c57] : memref<72xf32, #tpu.memory_space<smem>>
    %224 = vector.broadcast %223 : f32 to vector<16x16xf32>
    %225 = arith.mulf %224, %218 : vector<16x16xf32>
    %226 = arith.addf %216, %225 : vector<16x16xf32>
    %c2_78 = arith.constant 2 : index
    %c1_79 = arith.constant 1 : index
    %c1_80 = arith.constant 1 : index
    %227 = vector.load %arg11[%c2_78, %c1_79, %c1_80] : memref<4x18x18xf32, #tpu.memory_space<vmem>>, vector<1x16x16xf32>
    %228 = vector.shape_cast %227 : vector<1x16x16xf32> to vector<16x16xf32>
    %c22 = arith.constant 22 : index
    %229 = memref.load %arg7[%c22] : memref<72xf32, #tpu.memory_space<smem>>
    %230 = vector.broadcast %229 : f32 to vector<16x16xf32>
    %231 = arith.mulf %230, %228 : vector<16x16xf32>
    %232 = arith.addf %222, %231 : vector<16x16xf32>
    %c58 = arith.constant 58 : index
    %233 = memref.load %arg7[%c58] : memref<72xf32, #tpu.memory_space<smem>>
    %234 = vector.broadcast %233 : f32 to vector<16x16xf32>
    %235 = arith.mulf %234, %228 : vector<16x16xf32>
    %236 = arith.addf %226, %235 : vector<16x16xf32>
    %c2_81 = arith.constant 2 : index
    %c1_82 = arith.constant 1 : index
    %c2_83 = arith.constant 2 : index
    %237 = vector.load %arg11[%c2_81, %c1_82, %c2_83] : memref<4x18x18xf32, #tpu.memory_space<vmem>>, vector<1x16x16xf32>
    %238 = vector.shape_cast %237 : vector<1x16x16xf32> to vector<16x16xf32>
    %c23 = arith.constant 23 : index
    %239 = memref.load %arg7[%c23] : memref<72xf32, #tpu.memory_space<smem>>
    %240 = vector.broadcast %239 : f32 to vector<16x16xf32>
    %241 = arith.mulf %240, %238 : vector<16x16xf32>
    %242 = arith.addf %232, %241 : vector<16x16xf32>
    %c59 = arith.constant 59 : index
    %243 = memref.load %arg7[%c59] : memref<72xf32, #tpu.memory_space<smem>>
    %244 = vector.broadcast %243 : f32 to vector<16x16xf32>
    %245 = arith.mulf %244, %238 : vector<16x16xf32>
    %246 = arith.addf %236, %245 : vector<16x16xf32>
    %c2_84 = arith.constant 2 : index
    %c2_85 = arith.constant 2 : index
    %c0_86 = arith.constant 0 : index
    %247 = vector.load %arg11[%c2_84, %c2_85, %c0_86] : memref<4x18x18xf32, #tpu.memory_space<vmem>>, vector<1x16x16xf32>
    %248 = vector.shape_cast %247 : vector<1x16x16xf32> to vector<16x16xf32>
    %c24 = arith.constant 24 : index
    %249 = memref.load %arg7[%c24] : memref<72xf32, #tpu.memory_space<smem>>
    %250 = vector.broadcast %249 : f32 to vector<16x16xf32>
    %251 = arith.mulf %250, %248 : vector<16x16xf32>
    %252 = arith.addf %242, %251 : vector<16x16xf32>
    %c60 = arith.constant 60 : index
    %253 = memref.load %arg7[%c60] : memref<72xf32, #tpu.memory_space<smem>>
    %254 = vector.broadcast %253 : f32 to vector<16x16xf32>
    %255 = arith.mulf %254, %248 : vector<16x16xf32>
    %256 = arith.addf %246, %255 : vector<16x16xf32>
    %c2_87 = arith.constant 2 : index
    %c2_88 = arith.constant 2 : index
    %c1_89 = arith.constant 1 : index
    %257 = vector.load %arg11[%c2_87, %c2_88, %c1_89] : memref<4x18x18xf32, #tpu.memory_space<vmem>>, vector<1x16x16xf32>
    %258 = vector.shape_cast %257 : vector<1x16x16xf32> to vector<16x16xf32>
    %c25 = arith.constant 25 : index
    %259 = memref.load %arg7[%c25] : memref<72xf32, #tpu.memory_space<smem>>
    %260 = vector.broadcast %259 : f32 to vector<16x16xf32>
    %261 = arith.mulf %260, %258 : vector<16x16xf32>
    %262 = arith.addf %252, %261 : vector<16x16xf32>
    %c61 = arith.constant 61 : index
    %263 = memref.load %arg7[%c61] : memref<72xf32, #tpu.memory_space<smem>>
    %264 = vector.broadcast %263 : f32 to vector<16x16xf32>
    %265 = arith.mulf %264, %258 : vector<16x16xf32>
    %266 = arith.addf %256, %265 : vector<16x16xf32>
    %c2_90 = arith.constant 2 : index
    %c2_91 = arith.constant 2 : index
    %c2_92 = arith.constant 2 : index
    %267 = vector.load %arg11[%c2_90, %c2_91, %c2_92] : memref<4x18x18xf32, #tpu.memory_space<vmem>>, vector<1x16x16xf32>
    %268 = vector.shape_cast %267 : vector<1x16x16xf32> to vector<16x16xf32>
    %c26 = arith.constant 26 : index
    %269 = memref.load %arg7[%c26] : memref<72xf32, #tpu.memory_space<smem>>
    %270 = vector.broadcast %269 : f32 to vector<16x16xf32>
    %271 = arith.mulf %270, %268 : vector<16x16xf32>
    %272 = arith.addf %262, %271 : vector<16x16xf32>
    %c62 = arith.constant 62 : index
    %273 = memref.load %arg7[%c62] : memref<72xf32, #tpu.memory_space<smem>>
    %274 = vector.broadcast %273 : f32 to vector<16x16xf32>
    %275 = arith.mulf %274, %268 : vector<16x16xf32>
    %276 = arith.addf %266, %275 : vector<16x16xf32>
    %c3_93 = arith.constant 3 : index
    %c0_94 = arith.constant 0 : index
    %c0_95 = arith.constant 0 : index
    %277 = vector.load %arg11[%c3_93, %c0_94, %c0_95] : memref<4x18x18xf32, #tpu.memory_space<vmem>>, vector<1x16x16xf32>
    %278 = vector.shape_cast %277 : vector<1x16x16xf32> to vector<16x16xf32>
    %c27 = arith.constant 27 : index
    %279 = memref.load %arg7[%c27] : memref<72xf32, #tpu.memory_space<smem>>
    %280 = vector.broadcast %279 : f32 to vector<16x16xf32>
    %281 = arith.mulf %280, %278 : vector<16x16xf32>
    %282 = arith.addf %272, %281 : vector<16x16xf32>
    %c63 = arith.constant 63 : index
    %283 = memref.load %arg7[%c63] : memref<72xf32, #tpu.memory_space<smem>>
    %284 = vector.broadcast %283 : f32 to vector<16x16xf32>
    %285 = arith.mulf %284, %278 : vector<16x16xf32>
    %286 = arith.addf %276, %285 : vector<16x16xf32>
    %c3_96 = arith.constant 3 : index
    %c0_97 = arith.constant 0 : index
    %c1_98 = arith.constant 1 : index
    %287 = vector.load %arg11[%c3_96, %c0_97, %c1_98] : memref<4x18x18xf32, #tpu.memory_space<vmem>>, vector<1x16x16xf32>
    %288 = vector.shape_cast %287 : vector<1x16x16xf32> to vector<16x16xf32>
    %c28 = arith.constant 28 : index
    %289 = memref.load %arg7[%c28] : memref<72xf32, #tpu.memory_space<smem>>
    %290 = vector.broadcast %289 : f32 to vector<16x16xf32>
    %291 = arith.mulf %290, %288 : vector<16x16xf32>
    %292 = arith.addf %282, %291 : vector<16x16xf32>
    %c64 = arith.constant 64 : index
    %293 = memref.load %arg7[%c64] : memref<72xf32, #tpu.memory_space<smem>>
    %294 = vector.broadcast %293 : f32 to vector<16x16xf32>
    %295 = arith.mulf %294, %288 : vector<16x16xf32>
    %296 = arith.addf %286, %295 : vector<16x16xf32>
    %c3_99 = arith.constant 3 : index
    %c0_100 = arith.constant 0 : index
    %c2_101 = arith.constant 2 : index
    %297 = vector.load %arg11[%c3_99, %c0_100, %c2_101] : memref<4x18x18xf32, #tpu.memory_space<vmem>>, vector<1x16x16xf32>
    %298 = vector.shape_cast %297 : vector<1x16x16xf32> to vector<16x16xf32>
    %c29 = arith.constant 29 : index
    %299 = memref.load %arg7[%c29] : memref<72xf32, #tpu.memory_space<smem>>
    %300 = vector.broadcast %299 : f32 to vector<16x16xf32>
    %301 = arith.mulf %300, %298 : vector<16x16xf32>
    %302 = arith.addf %292, %301 : vector<16x16xf32>
    %c65 = arith.constant 65 : index
    %303 = memref.load %arg7[%c65] : memref<72xf32, #tpu.memory_space<smem>>
    %304 = vector.broadcast %303 : f32 to vector<16x16xf32>
    %305 = arith.mulf %304, %298 : vector<16x16xf32>
    %306 = arith.addf %296, %305 : vector<16x16xf32>
    %c3_102 = arith.constant 3 : index
    %c1_103 = arith.constant 1 : index
    %c0_104 = arith.constant 0 : index
    %307 = vector.load %arg11[%c3_102, %c1_103, %c0_104] : memref<4x18x18xf32, #tpu.memory_space<vmem>>, vector<1x16x16xf32>
    %308 = vector.shape_cast %307 : vector<1x16x16xf32> to vector<16x16xf32>
    %c30 = arith.constant 30 : index
    %309 = memref.load %arg7[%c30] : memref<72xf32, #tpu.memory_space<smem>>
    %310 = vector.broadcast %309 : f32 to vector<16x16xf32>
    %311 = arith.mulf %310, %308 : vector<16x16xf32>
    %312 = arith.addf %302, %311 : vector<16x16xf32>
    %c66 = arith.constant 66 : index
    %313 = memref.load %arg7[%c66] : memref<72xf32, #tpu.memory_space<smem>>
    %314 = vector.broadcast %313 : f32 to vector<16x16xf32>
    %315 = arith.mulf %314, %308 : vector<16x16xf32>
    %316 = arith.addf %306, %315 : vector<16x16xf32>
    %c3_105 = arith.constant 3 : index
    %c1_106 = arith.constant 1 : index
    %c1_107 = arith.constant 1 : index
    %317 = vector.load %arg11[%c3_105, %c1_106, %c1_107] : memref<4x18x18xf32, #tpu.memory_space<vmem>>, vector<1x16x16xf32>
    %318 = vector.shape_cast %317 : vector<1x16x16xf32> to vector<16x16xf32>
    %c31 = arith.constant 31 : index
    %319 = memref.load %arg7[%c31] : memref<72xf32, #tpu.memory_space<smem>>
    %320 = vector.broadcast %319 : f32 to vector<16x16xf32>
    %321 = arith.mulf %320, %318 : vector<16x16xf32>
    %322 = arith.addf %312, %321 : vector<16x16xf32>
    %c67 = arith.constant 67 : index
    %323 = memref.load %arg7[%c67] : memref<72xf32, #tpu.memory_space<smem>>
    %324 = vector.broadcast %323 : f32 to vector<16x16xf32>
    %325 = arith.mulf %324, %318 : vector<16x16xf32>
    %326 = arith.addf %316, %325 : vector<16x16xf32>
    %c3_108 = arith.constant 3 : index
    %c1_109 = arith.constant 1 : index
    %c2_110 = arith.constant 2 : index
    %327 = vector.load %arg11[%c3_108, %c1_109, %c2_110] : memref<4x18x18xf32, #tpu.memory_space<vmem>>, vector<1x16x16xf32>
    %328 = vector.shape_cast %327 : vector<1x16x16xf32> to vector<16x16xf32>
    %c32 = arith.constant 32 : index
    %329 = memref.load %arg7[%c32] : memref<72xf32, #tpu.memory_space<smem>>
    %330 = vector.broadcast %329 : f32 to vector<16x16xf32>
    %331 = arith.mulf %330, %328 : vector<16x16xf32>
    %332 = arith.addf %322, %331 : vector<16x16xf32>
    %c68 = arith.constant 68 : index
    %333 = memref.load %arg7[%c68] : memref<72xf32, #tpu.memory_space<smem>>
    %334 = vector.broadcast %333 : f32 to vector<16x16xf32>
    %335 = arith.mulf %334, %328 : vector<16x16xf32>
    %336 = arith.addf %326, %335 : vector<16x16xf32>
    %c3_111 = arith.constant 3 : index
    %c2_112 = arith.constant 2 : index
    %c0_113 = arith.constant 0 : index
    %337 = vector.load %arg11[%c3_111, %c2_112, %c0_113] : memref<4x18x18xf32, #tpu.memory_space<vmem>>, vector<1x16x16xf32>
    %338 = vector.shape_cast %337 : vector<1x16x16xf32> to vector<16x16xf32>
    %c33 = arith.constant 33 : index
    %339 = memref.load %arg7[%c33] : memref<72xf32, #tpu.memory_space<smem>>
    %340 = vector.broadcast %339 : f32 to vector<16x16xf32>
    %341 = arith.mulf %340, %338 : vector<16x16xf32>
    %342 = arith.addf %332, %341 : vector<16x16xf32>
    %c69 = arith.constant 69 : index
    %343 = memref.load %arg7[%c69] : memref<72xf32, #tpu.memory_space<smem>>
    %344 = vector.broadcast %343 : f32 to vector<16x16xf32>
    %345 = arith.mulf %344, %338 : vector<16x16xf32>
    %346 = arith.addf %336, %345 : vector<16x16xf32>
    %c3_114 = arith.constant 3 : index
    %c2_115 = arith.constant 2 : index
    %c1_116 = arith.constant 1 : index
    %347 = vector.load %arg11[%c3_114, %c2_115, %c1_116] : memref<4x18x18xf32, #tpu.memory_space<vmem>>, vector<1x16x16xf32>
    %348 = vector.shape_cast %347 : vector<1x16x16xf32> to vector<16x16xf32>
    %c34 = arith.constant 34 : index
    %349 = memref.load %arg7[%c34] : memref<72xf32, #tpu.memory_space<smem>>
    %350 = vector.broadcast %349 : f32 to vector<16x16xf32>
    %351 = arith.mulf %350, %348 : vector<16x16xf32>
    %352 = arith.addf %342, %351 : vector<16x16xf32>
    %c70 = arith.constant 70 : index
    %353 = memref.load %arg7[%c70] : memref<72xf32, #tpu.memory_space<smem>>
    %354 = vector.broadcast %353 : f32 to vector<16x16xf32>
    %355 = arith.mulf %354, %348 : vector<16x16xf32>
    %356 = arith.addf %346, %355 : vector<16x16xf32>
    %c3_117 = arith.constant 3 : index
    %c2_118 = arith.constant 2 : index
    %c2_119 = arith.constant 2 : index
    %357 = vector.load %arg11[%c3_117, %c2_118, %c2_119] : memref<4x18x18xf32, #tpu.memory_space<vmem>>, vector<1x16x16xf32>
    %358 = vector.shape_cast %357 : vector<1x16x16xf32> to vector<16x16xf32>
    %c35 = arith.constant 35 : index
    %359 = memref.load %arg7[%c35] : memref<72xf32, #tpu.memory_space<smem>>
    %360 = vector.broadcast %359 : f32 to vector<16x16xf32>
    %361 = arith.mulf %360, %358 : vector<16x16xf32>
    %362 = arith.addf %352, %361 : vector<16x16xf32>
    %c71 = arith.constant 71 : index
    %363 = memref.load %arg7[%c71] : memref<72xf32, #tpu.memory_space<smem>>
    %364 = vector.broadcast %363 : f32 to vector<16x16xf32>
    %365 = arith.mulf %364, %358 : vector<16x16xf32>
    %366 = arith.addf %356, %365 : vector<16x16xf32>
    %c0_120 = arith.constant 0 : index
    %367 = memref.load %arg9[%c0_120] : memref<2xf32, #tpu.memory_space<smem>>
    %368 = vector.broadcast %367 : f32 to vector<16x16xf32>
    %369 = arith.addf %362, %368 : vector<16x16xf32>
    %c1_121 = arith.constant 1 : index
    %370 = memref.load %arg9[%c1_121] : memref<2xf32, #tpu.memory_space<smem>>
    %371 = vector.broadcast %370 : f32 to vector<16x16xf32>
    %372 = arith.addf %366, %371 : vector<16x16xf32>
    %c0_122 = arith.constant 0 : index
    %c0_123 = arith.constant 0 : index
    %c0_124 = arith.constant 0 : index
    %c0_125 = arith.constant 0 : index
    %373 = vector.load %arg10[%c0_122, %c0_123, %c0_124, %c0_125] : memref<1x4x16x16xf32, #tpu.memory_space<vmem>>, vector<1x1x16x16xf32>
    %374 = vector.shape_cast %373 : vector<1x1x16x16xf32> to vector<16x16xf32>
    %375 = vector.shape_cast %369 : vector<16x16xf32> to vector<1x1x16x16xf32>
    tpu.vector_store %arg10[%c0_122, %c0_123, %c0_124, %c0_125], %375 {strides = array<i32>} : memref<1x4x16x16xf32, #tpu.memory_space<vmem>>, vector<1x1x16x16xf32>,
    %c0_126 = arith.constant 0 : index
    %c1_127 = arith.constant 1 : index
    %c0_128 = arith.constant 0 : index
    %c0_129 = arith.constant 0 : index
    %376 = vector.load %arg10[%c0_126, %c1_127, %c0_128, %c0_129] : memref<1x4x16x16xf32, #tpu.memory_space<vmem>>, vector<1x1x16x16xf32>
    %377 = vector.shape_cast %376 : vector<1x1x16x16xf32> to vector<16x16xf32>
    %378 = vector.shape_cast %372 : vector<16x16xf32> to vector<1x1x16x16xf32>
    tpu.vector_store %arg10[%c0_126, %c1_127, %c0_128, %c0_129], %378 {strides = array<i32>} : memref<1x4x16x16xf32, #tpu.memory_space<vmem>>, vector<1x1x16x16xf32>,
    %379 = vector.extract_strided_slice %1 {offsets = [0, 0, 0], sizes = [1, 16, 16], strides = [1, 1, 1]} : vector<4x16x16xf32> to vector<1x16x16xf32>
    %380 = vector.shape_cast %379 : vector<1x16x16xf32> to vector<16x16xf32>
    %381 = vector.extract_strided_slice %1 {offsets = [2, 0, 0], sizes = [1, 16, 16], strides = [1, 1, 1]} : vector<4x16x16xf32> to vector<1x16x16xf32>
    %382 = vector.shape_cast %381 : vector<1x16x16xf32> to vector<16x16xf32>
    %383 = tpu.concatenate %380, %382 in 0 : vector<16x16xf32>, vector<16x16xf32> -> vector<32x16xf32>
    %384 = vector.extract_strided_slice %1 {offsets = [1, 0, 0], sizes = [1, 16, 16], strides = [1, 1, 1]} : vector<4x16x16xf32> to vector<1x16x16xf32>
    %385 = vector.shape_cast %384 : vector<1x16x16xf32> to vector<16x16xf32>
    %386 = vector.extract_strided_slice %1 {offsets = [3, 0, 0], sizes = [1, 16, 16], strides = [1, 1, 1]} : vector<4x16x16xf32> to vector<1x16x16xf32>
    %387 = vector.shape_cast %386 : vector<1x16x16xf32> to vector<16x16xf32>
    %388 = tpu.concatenate %385, %387 in 0 : vector<16x16xf32>, vector<16x16xf32> -> vector<32x16xf32>
    %389 = arith.truncf %383 : vector<32x16xf32> to vector<32x16xbf16>
    %c0_130 = arith.constant 0 : index
    %c0_131 = arith.constant 0 : index
    %c0_132 = arith.constant 0 : index
    %390 = vector.load %arg3[%c0_130, %c0_131, %c0_132] : memref<3x16x18xbf16, #tpu.memory_space<vmem>>, vector<1x16x18xbf16>
    %391 = vector.shape_cast %390 : vector<1x16x18xbf16> to vector<16x18xbf16>
    %cst_133 = arith.constant dense<0.000000e+00> : vector<32x18xf32>
    %392 = tpu.matmul %389, %391, %cst_133 {dimension_numbers = #tpu.dot_dimension_numbers<[1], [0], [0], [1], [0, 0, 1, 1], [], []>} : vector<32x16xbf16>, vector<16x18xbf16>, vector<32x18xf32> -> vector<32x18xf32>
    %393 = arith.truncf %388 : vector<32x16xf32> to vector<32x16xbf16>
    %c1_134 = arith.constant 1 : index
    %c0_135 = arith.constant 0 : index
    %c0_136 = arith.constant 0 : index
    %394 = vector.load %arg3[%c1_134, %c0_135, %c0_136] : memref<3x16x18xbf16, #tpu.memory_space<vmem>>, vector<1x16x18xbf16>
    %395 = vector.shape_cast %394 : vector<1x16x18xbf16> to vector<16x18xbf16>
    %cst_137 = arith.constant dense<0.000000e+00> : vector<32x18xf32>
    %396 = tpu.matmul %393, %395, %cst_137 {dimension_numbers = #tpu.dot_dimension_numbers<[1], [0], [0], [1], [0, 0, 1, 1], [], []>} : vector<32x16xbf16>, vector<16x18xbf16>, vector<32x18xf32> -> vector<32x18xf32>
    %397 = arith.addf %383, %388 : vector<32x16xf32>
    %398 = arith.truncf %397 : vector<32x16xf32> to vector<32x16xbf16>
    %c2_138 = arith.constant 2 : index
    %c0_139 = arith.constant 0 : index
    %c0_140 = arith.constant 0 : index
    %399 = vector.load %arg3[%c2_138, %c0_139, %c0_140] : memref<3x16x18xbf16, #tpu.memory_space<vmem>>, vector<1x16x18xbf16>
    %400 = vector.shape_cast %399 : vector<1x16x18xbf16> to vector<16x18xbf16>
    %cst_141 = arith.constant dense<0.000000e+00> : vector<32x18xf32>
    %401 = tpu.matmul %398, %400, %cst_141 {dimension_numbers = #tpu.dot_dimension_numbers<[1], [0], [0], [1], [0, 0, 1, 1], [], []>} : vector<32x16xbf16>, vector<16x18xbf16>, vector<32x18xf32> -> vector<32x18xf32>
    %402 = arith.subf %392, %396 : vector<32x18xf32>
    %403 = arith.subf %401, %392 : vector<32x18xf32>
    %404 = arith.subf %403, %396 : vector<32x18xf32>
    %405 = vector.extract_strided_slice %402 {offsets = [0, 0], sizes = [16, 18], strides = [1, 1]} : vector<32x18xf32> to vector<16x18xf32>
    %406 = vector.extract_strided_slice %404 {offsets = [0, 0], sizes = [16, 18], strides = [1, 1]} : vector<32x18xf32> to vector<16x18xf32>
    %c0_142 = arith.constant 0 : index
    %c0_143 = arith.constant 0 : index
    %c0_144 = arith.constant 0 : index
    %407 = vector.load %arg2[%c0_142, %c0_143, %c0_144] : memref<3x18x16xbf16, #tpu.memory_space<vmem>>, vector<1x18x16xbf16>
    %408 = vector.shape_cast %407 : vector<1x18x16xbf16> to vector<18x16xbf16>
    %409 = arith.truncf %405 : vector<16x18xf32> to vector<16x18xbf16>
    %cst_145 = arith.constant dense<0.000000e+00> : vector<18x18xf32>
    %410 = tpu.matmul %408, %409, %cst_145 {dimension_numbers = #tpu.dot_dimension_numbers<[1], [0], [0], [1], [0, 0, 1, 1], [], []>} : vector<18x16xbf16>, vector<16x18xbf16>, vector<18x18xf32> -> vector<18x18xf32>
    %c1_146 = arith.constant 1 : index
    %c0_147 = arith.constant 0 : index
    %c0_148 = arith.constant 0 : index
    %411 = vector.load %arg2[%c1_146, %c0_147, %c0_148] : memref<3x18x16xbf16, #tpu.memory_space<vmem>>, vector<1x18x16xbf16>
    %412 = vector.shape_cast %411 : vector<1x18x16xbf16> to vector<18x16xbf16>
    %413 = arith.truncf %406 : vector<16x18xf32> to vector<16x18xbf16>
    %cst_149 = arith.constant dense<0.000000e+00> : vector<18x18xf32>
    %414 = tpu.matmul %412, %413, %cst_149 {dimension_numbers = #tpu.dot_dimension_numbers<[1], [0], [0], [1], [0, 0, 1, 1], [], []>} : vector<18x16xbf16>, vector<16x18xbf16>, vector<18x18xf32> -> vector<18x18xf32>
    %c2_150 = arith.constant 2 : index
    %c0_151 = arith.constant 0 : index
    %c0_152 = arith.constant 0 : index
    %415 = vector.load %arg2[%c2_150, %c0_151, %c0_152] : memref<3x18x16xbf16, #tpu.memory_space<vmem>>, vector<1x18x16xbf16>
    %416 = vector.shape_cast %415 : vector<1x18x16xbf16> to vector<18x16xbf16>
    %417 = arith.addf %405, %406 : vector<16x18xf32>
    %418 = arith.truncf %417 : vector<16x18xf32> to vector<16x18xbf16>
    %cst_153 = arith.constant dense<0.000000e+00> : vector<18x18xf32>
    %419 = tpu.matmul %416, %418, %cst_153 {dimension_numbers = #tpu.dot_dimension_numbers<[1], [0], [0], [1], [0, 0, 1, 1], [], []>} : vector<18x16xbf16>, vector<16x18xbf16>, vector<18x18xf32> -> vector<18x18xf32>
    %420 = arith.subf %410, %414 : vector<18x18xf32>
    %421 = arith.subf %419, %410 : vector<18x18xf32>
    %422 = arith.subf %421, %414 : vector<18x18xf32>
    %c0_154 = arith.constant 0 : index
    %c0_155 = arith.constant 0 : index
    %c0_156 = arith.constant 0 : index
    %423 = vector.load %arg12[%c0_154, %c0_155, %c0_156] : memref<4x18x18xf32, #tpu.memory_space<vmem>>, vector<1x18x18xf32>
    %424 = vector.shape_cast %423 : vector<1x18x18xf32> to vector<18x18xf32>
    %425 = vector.shape_cast %420 : vector<18x18xf32> to vector<1x18x18xf32>
    tpu.vector_store %arg12[%c0_154, %c0_155, %c0_156], %425 {strides = array<i32>} : memref<4x18x18xf32, #tpu.memory_space<vmem>>, vector<1x18x18xf32>,
    %c1_157 = arith.constant 1 : index
    %c0_158 = arith.constant 0 : index
    %c0_159 = arith.constant 0 : index
    %426 = vector.load %arg12[%c1_157, %c0_158, %c0_159] : memref<4x18x18xf32, #tpu.memory_space<vmem>>, vector<1x18x18xf32>
    %427 = vector.shape_cast %426 : vector<1x18x18xf32> to vector<18x18xf32>
    %428 = vector.shape_cast %422 : vector<18x18xf32> to vector<1x18x18xf32>
    tpu.vector_store %arg12[%c1_157, %c0_158, %c0_159], %428 {strides = array<i32>} : memref<4x18x18xf32, #tpu.memory_space<vmem>>, vector<1x18x18xf32>,
    %429 = vector.extract_strided_slice %402 {offsets = [16, 0], sizes = [16, 18], strides = [1, 1]} : vector<32x18xf32> to vector<16x18xf32>
    %430 = vector.extract_strided_slice %404 {offsets = [16, 0], sizes = [16, 18], strides = [1, 1]} : vector<32x18xf32> to vector<16x18xf32>
    %c0_160 = arith.constant 0 : index
    %c0_161 = arith.constant 0 : index
    %c0_162 = arith.constant 0 : index
    %431 = vector.load %arg2[%c0_160, %c0_161, %c0_162] : memref<3x18x16xbf16, #tpu.memory_space<vmem>>, vector<1x18x16xbf16>
    %432 = vector.shape_cast %431 : vector<1x18x16xbf16> to vector<18x16xbf16>
    %433 = arith.truncf %429 : vector<16x18xf32> to vector<16x18xbf16>
    %cst_163 = arith.constant dense<0.000000e+00> : vector<18x18xf32>
    %434 = tpu.matmul %432, %433, %cst_163 {dimension_numbers = #tpu.dot_dimension_numbers<[1], [0], [0], [1], [0, 0, 1, 1], [], []>} : vector<18x16xbf16>, vector<16x18xbf16>, vector<18x18xf32> -> vector<18x18xf32>
    %c1_164 = arith.constant 1 : index
    %c0_165 = arith.constant 0 : index
    %c0_166 = arith.constant 0 : index
    %435 = vector.load %arg2[%c1_164, %c0_165, %c0_166] : memref<3x18x16xbf16, #tpu.memory_space<vmem>>, vector<1x18x16xbf16>
    %436 = vector.shape_cast %435 : vector<1x18x16xbf16> to vector<18x16xbf16>
    %437 = arith.truncf %430 : vector<16x18xf32> to vector<16x18xbf16>
    %cst_167 = arith.constant dense<0.000000e+00> : vector<18x18xf32>
    %438 = tpu.matmul %436, %437, %cst_167 {dimension_numbers = #tpu.dot_dimension_numbers<[1], [0], [0], [1], [0, 0, 1, 1], [], []>} : vector<18x16xbf16>, vector<16x18xbf16>, vector<18x18xf32> -> vector<18x18xf32>
    %c2_168 = arith.constant 2 : index
    %c0_169 = arith.constant 0 : index
    %c0_170 = arith.constant 0 : index
    %439 = vector.load %arg2[%c2_168, %c0_169, %c0_170] : memref<3x18x16xbf16, #tpu.memory_space<vmem>>, vector<1x18x16xbf16>
    %440 = vector.shape_cast %439 : vector<1x18x16xbf16> to vector<18x16xbf16>
    %441 = arith.addf %429, %430 : vector<16x18xf32>
    %442 = arith.truncf %441 : vector<16x18xf32> to vector<16x18xbf16>
    %cst_171 = arith.constant dense<0.000000e+00> : vector<18x18xf32>
    %443 = tpu.matmul %440, %442, %cst_171 {dimension_numbers = #tpu.dot_dimension_numbers<[1], [0], [0], [1], [0, 0, 1, 1], [], []>} : vector<18x16xbf16>, vector<16x18xbf16>, vector<18x18xf32> -> vector<18x18xf32>
    %444 = arith.subf %434, %438 : vector<18x18xf32>
    %445 = arith.subf %443, %434 : vector<18x18xf32>
    %446 = arith.subf %445, %438 : vector<18x18xf32>
    %c2_172 = arith.constant 2 : index
    %c0_173 = arith.constant 0 : index
    %c0_174 = arith.constant 0 : index
    %447 = vector.load %arg12[%c2_172, %c0_173, %c0_174] : memref<4x18x18xf32, #tpu.memory_space<vmem>>, vector<1x18x18xf32>
    %448 = vector.shape_cast %447 : vector<1x18x18xf32> to vector<18x18xf32>
    %449 = vector.shape_cast %444 : vector<18x18xf32> to vector<1x18x18xf32>
    tpu.vector_store %arg12[%c2_172, %c0_173, %c0_174], %449 {strides = array<i32>} : memref<4x18x18xf32, #tpu.memory_space<vmem>>, vector<1x18x18xf32>,
    %c3_175 = arith.constant 3 : index
    %c0_176 = arith.constant 0 : index
    %c0_177 = arith.constant 0 : index
    %450 = vector.load %arg12[%c3_175, %c0_176, %c0_177] : memref<4x18x18xf32, #tpu.memory_space<vmem>>, vector<1x18x18xf32>
    %451 = vector.shape_cast %450 : vector<1x18x18xf32> to vector<18x18xf32>
    %452 = vector.shape_cast %446 : vector<18x18xf32> to vector<1x18x18xf32>
    tpu.vector_store %arg12[%c3_175, %c0_176, %c0_177], %452 {strides = array<i32>} : memref<4x18x18xf32, #tpu.memory_space<vmem>>, vector<1x18x18xf32>,
    %cst_178 = arith.constant 0.000000e+00 : f32
    %453 = vector.broadcast %cst_178 : f32 to vector<16x16xf32>
    %cst_179 = arith.constant 0.000000e+00 : f32
    %454 = vector.broadcast %cst_179 : f32 to vector<16x16xf32>
    %c0_180 = arith.constant 0 : index
    %c0_181 = arith.constant 0 : index
    %c0_182 = arith.constant 0 : index
    %455 = vector.load %arg12[%c0_180, %c0_181, %c0_182] : memref<4x18x18xf32, #tpu.memory_space<vmem>>, vector<1x16x16xf32>
    %456 = vector.shape_cast %455 : vector<1x16x16xf32> to vector<16x16xf32>
    %c0_183 = arith.constant 0 : index
    %457 = memref.load %arg6[%c0_183] : memref<72xf32, #tpu.memory_space<smem>>
    %458 = vector.broadcast %457 : f32 to vector<16x16xf32>
    %459 = arith.mulf %458, %456 : vector<16x16xf32>
    %460 = arith.addf %453, %459 : vector<16x16xf32>
    %c36_184 = arith.constant 36 : index
    %461 = memref.load %arg6[%c36_184] : memref<72xf32, #tpu.memory_space<smem>>
    %462 = vector.broadcast %461 : f32 to vector<16x16xf32>
    %463 = arith.mulf %462, %456 : vector<16x16xf32>
    %464 = arith.addf %454, %463 : vector<16x16xf32>
    %c0_185 = arith.constant 0 : index
    %c0_186 = arith.constant 0 : index
    %c1_187 = arith.constant 1 : index
    %465 = vector.load %arg12[%c0_185, %c0_186, %c1_187] : memref<4x18x18xf32, #tpu.memory_space<vmem>>, vector<1x16x16xf32>
    %466 = vector.shape_cast %465 : vector<1x16x16xf32> to vector<16x16xf32>
    %c1_188 = arith.constant 1 : index
    %467 = memref.load %arg6[%c1_188] : memref<72xf32, #tpu.memory_space<smem>>
    %468 = vector.broadcast %467 : f32 to vector<16x16xf32>
    %469 = arith.mulf %468, %466 : vector<16x16xf32>
    %470 = arith.addf %460, %469 : vector<16x16xf32>
    %c37_189 = arith.constant 37 : index
    %471 = memref.load %arg6[%c37_189] : memref<72xf32, #tpu.memory_space<smem>>
    %472 = vector.broadcast %471 : f32 to vector<16x16xf32>
    %473 = arith.mulf %472, %466 : vector<16x16xf32>
    %474 = arith.addf %464, %473 : vector<16x16xf32>
    %c0_190 = arith.constant 0 : index
    %c0_191 = arith.constant 0 : index
    %c2_192 = arith.constant 2 : index
    %475 = vector.load %arg12[%c0_190, %c0_191, %c2_192] : memref<4x18x18xf32, #tpu.memory_space<vmem>>, vector<1x16x16xf32>
    %476 = vector.shape_cast %475 : vector<1x16x16xf32> to vector<16x16xf32>
    %c2_193 = arith.constant 2 : index
    %477 = memref.load %arg6[%c2_193] : memref<72xf32, #tpu.memory_space<smem>>
    %478 = vector.broadcast %477 : f32 to vector<16x16xf32>
    %479 = arith.mulf %478, %476 : vector<16x16xf32>
    %480 = arith.addf %470, %479 : vector<16x16xf32>
    %c38_194 = arith.constant 38 : index
    %481 = memref.load %arg6[%c38_194] : memref<72xf32, #tpu.memory_space<smem>>
    %482 = vector.broadcast %481 : f32 to vector<16x16xf32>
    %483 = arith.mulf %482, %476 : vector<16x16xf32>
    %484 = arith.addf %474, %483 : vector<16x16xf32>
    %c0_195 = arith.constant 0 : index
    %c1_196 = arith.constant 1 : index
    %c0_197 = arith.constant 0 : index
    %485 = vector.load %arg12[%c0_195, %c1_196, %c0_197] : memref<4x18x18xf32, #tpu.memory_space<vmem>>, vector<1x16x16xf32>
    %486 = vector.shape_cast %485 : vector<1x16x16xf32> to vector<16x16xf32>
    %c3_198 = arith.constant 3 : index
    %487 = memref.load %arg6[%c3_198] : memref<72xf32, #tpu.memory_space<smem>>
    %488 = vector.broadcast %487 : f32 to vector<16x16xf32>
    %489 = arith.mulf %488, %486 : vector<16x16xf32>
    %490 = arith.addf %480, %489 : vector<16x16xf32>
    %c39_199 = arith.constant 39 : index
    %491 = memref.load %arg6[%c39_199] : memref<72xf32, #tpu.memory_space<smem>>
    %492 = vector.broadcast %491 : f32 to vector<16x16xf32>
    %493 = arith.mulf %492, %486 : vector<16x16xf32>
    %494 = arith.addf %484, %493 : vector<16x16xf32>
    %c0_200 = arith.constant 0 : index
    %c1_201 = arith.constant 1 : index
    %c1_202 = arith.constant 1 : index
    %495 = vector.load %arg12[%c0_200, %c1_201, %c1_202] : memref<4x18x18xf32, #tpu.memory_space<vmem>>, vector<1x16x16xf32>
    %496 = vector.shape_cast %495 : vector<1x16x16xf32> to vector<16x16xf32>
    %c4_203 = arith.constant 4 : index
    %497 = memref.load %arg6[%c4_203] : memref<72xf32, #tpu.memory_space<smem>>
    %498 = vector.broadcast %497 : f32 to vector<16x16xf32>
    %499 = arith.mulf %498, %496 : vector<16x16xf32>
    %500 = arith.addf %490, %499 : vector<16x16xf32>
    %c40_204 = arith.constant 40 : index
    %501 = memref.load %arg6[%c40_204] : memref<72xf32, #tpu.memory_space<smem>>
    %502 = vector.broadcast %501 : f32 to vector<16x16xf32>
    %503 = arith.mulf %502, %496 : vector<16x16xf32>
    %504 = arith.addf %494, %503 : vector<16x16xf32>
    %c0_205 = arith.constant 0 : index
    %c1_206 = arith.constant 1 : index
    %c2_207 = arith.constant 2 : index
    %505 = vector.load %arg12[%c0_205, %c1_206, %c2_207] : memref<4x18x18xf32, #tpu.memory_space<vmem>>, vector<1x16x16xf32>
    %506 = vector.shape_cast %505 : vector<1x16x16xf32> to vector<16x16xf32>
    %c5_208 = arith.constant 5 : index
    %507 = memref.load %arg6[%c5_208] : memref<72xf32, #tpu.memory_space<smem>>
    %508 = vector.broadcast %507 : f32 to vector<16x16xf32>
    %509 = arith.mulf %508, %506 : vector<16x16xf32>
    %510 = arith.addf %500, %509 : vector<16x16xf32>
    %c41_209 = arith.constant 41 : index
    %511 = memref.load %arg6[%c41_209] : memref<72xf32, #tpu.memory_space<smem>>
    %512 = vector.broadcast %511 : f32 to vector<16x16xf32>
    %513 = arith.mulf %512, %506 : vector<16x16xf32>
    %514 = arith.addf %504, %513 : vector<16x16xf32>
    %c0_210 = arith.constant 0 : index
    %c2_211 = arith.constant 2 : index
    %c0_212 = arith.constant 0 : index
    %515 = vector.load %arg12[%c0_210, %c2_211, %c0_212] : memref<4x18x18xf32, #tpu.memory_space<vmem>>, vector<1x16x16xf32>
    %516 = vector.shape_cast %515 : vector<1x16x16xf32> to vector<16x16xf32>
    %c6_213 = arith.constant 6 : index
    %517 = memref.load %arg6[%c6_213] : memref<72xf32, #tpu.memory_space<smem>>
    %518 = vector.broadcast %517 : f32 to vector<16x16xf32>
    %519 = arith.mulf %518, %516 : vector<16x16xf32>
    %520 = arith.addf %510, %519 : vector<16x16xf32>
    %c42_214 = arith.constant 42 : index
    %521 = memref.load %arg6[%c42_214] : memref<72xf32, #tpu.memory_space<smem>>
    %522 = vector.broadcast %521 : f32 to vector<16x16xf32>
    %523 = arith.mulf %522, %516 : vector<16x16xf32>
    %524 = arith.addf %514, %523 : vector<16x16xf32>
    %c0_215 = arith.constant 0 : index
    %c2_216 = arith.constant 2 : index
    %c1_217 = arith.constant 1 : index
    %525 = vector.load %arg12[%c0_215, %c2_216, %c1_217] : memref<4x18x18xf32, #tpu.memory_space<vmem>>, vector<1x16x16xf32>
    %526 = vector.shape_cast %525 : vector<1x16x16xf32> to vector<16x16xf32>
    %c7_218 = arith.constant 7 : index
    %527 = memref.load %arg6[%c7_218] : memref<72xf32, #tpu.memory_space<smem>>
    %528 = vector.broadcast %527 : f32 to vector<16x16xf32>
    %529 = arith.mulf %528, %526 : vector<16x16xf32>
    %530 = arith.addf %520, %529 : vector<16x16xf32>
    %c43_219 = arith.constant 43 : index
    %531 = memref.load %arg6[%c43_219] : memref<72xf32, #tpu.memory_space<smem>>
    %532 = vector.broadcast %531 : f32 to vector<16x16xf32>
    %533 = arith.mulf %532, %526 : vector<16x16xf32>
    %534 = arith.addf %524, %533 : vector<16x16xf32>
    %c0_220 = arith.constant 0 : index
    %c2_221 = arith.constant 2 : index
    %c2_222 = arith.constant 2 : index
    %535 = vector.load %arg12[%c0_220, %c2_221, %c2_222] : memref<4x18x18xf32, #tpu.memory_space<vmem>>, vector<1x16x16xf32>
    %536 = vector.shape_cast %535 : vector<1x16x16xf32> to vector<16x16xf32>
    %c8_223 = arith.constant 8 : index
    %537 = memref.load %arg6[%c8_223] : memref<72xf32, #tpu.memory_space<smem>>
    %538 = vector.broadcast %537 : f32 to vector<16x16xf32>
    %539 = arith.mulf %538, %536 : vector<16x16xf32>
    %540 = arith.addf %530, %539 : vector<16x16xf32>
    %c44_224 = arith.constant 44 : index
    %541 = memref.load %arg6[%c44_224] : memref<72xf32, #tpu.memory_space<smem>>
    %542 = vector.broadcast %541 : f32 to vector<16x16xf32>
    %543 = arith.mulf %542, %536 : vector<16x16xf32>
    %544 = arith.addf %534, %543 : vector<16x16xf32>
    %c1_225 = arith.constant 1 : index
    %c0_226 = arith.constant 0 : index
    %c0_227 = arith.constant 0 : index
    %545 = vector.load %arg12[%c1_225, %c0_226, %c0_227] : memref<4x18x18xf32, #tpu.memory_space<vmem>>, vector<1x16x16xf32>
    %546 = vector.shape_cast %545 : vector<1x16x16xf32> to vector<16x16xf32>
    %c9_228 = arith.constant 9 : index
    %547 = memref.load %arg6[%c9_228] : memref<72xf32, #tpu.memory_space<smem>>
    %548 = vector.broadcast %547 : f32 to vector<16x16xf32>
    %549 = arith.mulf %548, %546 : vector<16x16xf32>
    %550 = arith.addf %540, %549 : vector<16x16xf32>
    %c45_229 = arith.constant 45 : index
    %551 = memref.load %arg6[%c45_229] : memref<72xf32, #tpu.memory_space<smem>>
    %552 = vector.broadcast %551 : f32 to vector<16x16xf32>
    %553 = arith.mulf %552, %546 : vector<16x16xf32>
    %554 = arith.addf %544, %553 : vector<16x16xf32>
    %c1_230 = arith.constant 1 : index
    %c0_231 = arith.constant 0 : index
    %c1_232 = arith.constant 1 : index
    %555 = vector.load %arg12[%c1_230, %c0_231, %c1_232] : memref<4x18x18xf32, #tpu.memory_space<vmem>>, vector<1x16x16xf32>
    %556 = vector.shape_cast %555 : vector<1x16x16xf32> to vector<16x16xf32>
    %c10_233 = arith.constant 10 : index
    %557 = memref.load %arg6[%c10_233] : memref<72xf32, #tpu.memory_space<smem>>
    %558 = vector.broadcast %557 : f32 to vector<16x16xf32>
    %559 = arith.mulf %558, %556 : vector<16x16xf32>
    %560 = arith.addf %550, %559 : vector<16x16xf32>
    %c46_234 = arith.constant 46 : index
    %561 = memref.load %arg6[%c46_234] : memref<72xf32, #tpu.memory_space<smem>>
    %562 = vector.broadcast %561 : f32 to vector<16x16xf32>
    %563 = arith.mulf %562, %556 : vector<16x16xf32>
    %564 = arith.addf %554, %563 : vector<16x16xf32>
    %c1_235 = arith.constant 1 : index
    %c0_236 = arith.constant 0 : index
    %c2_237 = arith.constant 2 : index
    %565 = vector.load %arg12[%c1_235, %c0_236, %c2_237] : memref<4x18x18xf32, #tpu.memory_space<vmem>>, vector<1x16x16xf32>
    %566 = vector.shape_cast %565 : vector<1x16x16xf32> to vector<16x16xf32>
    %c11_238 = arith.constant 11 : index
    %567 = memref.load %arg6[%c11_238] : memref<72xf32, #tpu.memory_space<smem>>
    %568 = vector.broadcast %567 : f32 to vector<16x16xf32>
    %569 = arith.mulf %568, %566 : vector<16x16xf32>
    %570 = arith.addf %560, %569 : vector<16x16xf32>
    %c47_239 = arith.constant 47 : index
    %571 = memref.load %arg6[%c47_239] : memref<72xf32, #tpu.memory_space<smem>>
    %572 = vector.broadcast %571 : f32 to vector<16x16xf32>
    %573 = arith.mulf %572, %566 : vector<16x16xf32>
    %574 = arith.addf %564, %573 : vector<16x16xf32>
    %c1_240 = arith.constant 1 : index
    %c1_241 = arith.constant 1 : index
    %c0_242 = arith.constant 0 : index
    %575 = vector.load %arg12[%c1_240, %c1_241, %c0_242] : memref<4x18x18xf32, #tpu.memory_space<vmem>>, vector<1x16x16xf32>
    %576 = vector.shape_cast %575 : vector<1x16x16xf32> to vector<16x16xf32>
    %c12_243 = arith.constant 12 : index
    %577 = memref.load %arg6[%c12_243] : memref<72xf32, #tpu.memory_space<smem>>
    %578 = vector.broadcast %577 : f32 to vector<16x16xf32>
    %579 = arith.mulf %578, %576 : vector<16x16xf32>
    %580 = arith.addf %570, %579 : vector<16x16xf32>
    %c48_244 = arith.constant 48 : index
    %581 = memref.load %arg6[%c48_244] : memref<72xf32, #tpu.memory_space<smem>>
    %582 = vector.broadcast %581 : f32 to vector<16x16xf32>
    %583 = arith.mulf %582, %576 : vector<16x16xf32>
    %584 = arith.addf %574, %583 : vector<16x16xf32>
    %c1_245 = arith.constant 1 : index
    %c1_246 = arith.constant 1 : index
    %c1_247 = arith.constant 1 : index
    %585 = vector.load %arg12[%c1_245, %c1_246, %c1_247] : memref<4x18x18xf32, #tpu.memory_space<vmem>>, vector<1x16x16xf32>
    %586 = vector.shape_cast %585 : vector<1x16x16xf32> to vector<16x16xf32>
    %c13_248 = arith.constant 13 : index
    %587 = memref.load %arg6[%c13_248] : memref<72xf32, #tpu.memory_space<smem>>
    %588 = vector.broadcast %587 : f32 to vector<16x16xf32>
    %589 = arith.mulf %588, %586 : vector<16x16xf32>
    %590 = arith.addf %580, %589 : vector<16x16xf32>
    %c49_249 = arith.constant 49 : index
    %591 = memref.load %arg6[%c49_249] : memref<72xf32, #tpu.memory_space<smem>>
    %592 = vector.broadcast %591 : f32 to vector<16x16xf32>
    %593 = arith.mulf %592, %586 : vector<16x16xf32>
    %594 = arith.addf %584, %593 : vector<16x16xf32>
    %c1_250 = arith.constant 1 : index
    %c1_251 = arith.constant 1 : index
    %c2_252 = arith.constant 2 : index
    %595 = vector.load %arg12[%c1_250, %c1_251, %c2_252] : memref<4x18x18xf32, #tpu.memory_space<vmem>>, vector<1x16x16xf32>
    %596 = vector.shape_cast %595 : vector<1x16x16xf32> to vector<16x16xf32>
    %c14_253 = arith.constant 14 : index
    %597 = memref.load %arg6[%c14_253] : memref<72xf32, #tpu.memory_space<smem>>
    %598 = vector.broadcast %597 : f32 to vector<16x16xf32>
    %599 = arith.mulf %598, %596 : vector<16x16xf32>
    %600 = arith.addf %590, %599 : vector<16x16xf32>
    %c50_254 = arith.constant 50 : index
    %601 = memref.load %arg6[%c50_254] : memref<72xf32, #tpu.memory_space<smem>>
    %602 = vector.broadcast %601 : f32 to vector<16x16xf32>
    %603 = arith.mulf %602, %596 : vector<16x16xf32>
    %604 = arith.addf %594, %603 : vector<16x16xf32>
    %c1_255 = arith.constant 1 : index
    %c2_256 = arith.constant 2 : index
    %c0_257 = arith.constant 0 : index
    %605 = vector.load %arg12[%c1_255, %c2_256, %c0_257] : memref<4x18x18xf32, #tpu.memory_space<vmem>>, vector<1x16x16xf32>
    %606 = vector.shape_cast %605 : vector<1x16x16xf32> to vector<16x16xf32>
    %c15_258 = arith.constant 15 : index
    %607 = memref.load %arg6[%c15_258] : memref<72xf32, #tpu.memory_space<smem>>
    %608 = vector.broadcast %607 : f32 to vector<16x16xf32>
    %609 = arith.mulf %608, %606 : vector<16x16xf32>
    %610 = arith.addf %600, %609 : vector<16x16xf32>
    %c51_259 = arith.constant 51 : index
    %611 = memref.load %arg6[%c51_259] : memref<72xf32, #tpu.memory_space<smem>>
    %612 = vector.broadcast %611 : f32 to vector<16x16xf32>
    %613 = arith.mulf %612, %606 : vector<16x16xf32>
    %614 = arith.addf %604, %613 : vector<16x16xf32>
    %c1_260 = arith.constant 1 : index
    %c2_261 = arith.constant 2 : index
    %c1_262 = arith.constant 1 : index
    %615 = vector.load %arg12[%c1_260, %c2_261, %c1_262] : memref<4x18x18xf32, #tpu.memory_space<vmem>>, vector<1x16x16xf32>
    %616 = vector.shape_cast %615 : vector<1x16x16xf32> to vector<16x16xf32>
    %c16_263 = arith.constant 16 : index
    %617 = memref.load %arg6[%c16_263] : memref<72xf32, #tpu.memory_space<smem>>
    %618 = vector.broadcast %617 : f32 to vector<16x16xf32>
    %619 = arith.mulf %618, %616 : vector<16x16xf32>
    %620 = arith.addf %610, %619 : vector<16x16xf32>
    %c52_264 = arith.constant 52 : index
    %621 = memref.load %arg6[%c52_264] : memref<72xf32, #tpu.memory_space<smem>>
    %622 = vector.broadcast %621 : f32 to vector<16x16xf32>
    %623 = arith.mulf %622, %616 : vector<16x16xf32>
    %624 = arith.addf %614, %623 : vector<16x16xf32>
    %c1_265 = arith.constant 1 : index
    %c2_266 = arith.constant 2 : index
    %c2_267 = arith.constant 2 : index
    %625 = vector.load %arg12[%c1_265, %c2_266, %c2_267] : memref<4x18x18xf32, #tpu.memory_space<vmem>>, vector<1x16x16xf32>
    %626 = vector.shape_cast %625 : vector<1x16x16xf32> to vector<16x16xf32>
    %c17_268 = arith.constant 17 : index
    %627 = memref.load %arg6[%c17_268] : memref<72xf32, #tpu.memory_space<smem>>
    %628 = vector.broadcast %627 : f32 to vector<16x16xf32>
    %629 = arith.mulf %628, %626 : vector<16x16xf32>
    %630 = arith.addf %620, %629 : vector<16x16xf32>
    %c53_269 = arith.constant 53 : index
    %631 = memref.load %arg6[%c53_269] : memref<72xf32, #tpu.memory_space<smem>>
    %632 = vector.broadcast %631 : f32 to vector<16x16xf32>
    %633 = arith.mulf %632, %626 : vector<16x16xf32>
    %634 = arith.addf %624, %633 : vector<16x16xf32>
    %c2_270 = arith.constant 2 : index
    %c0_271 = arith.constant 0 : index
    %c0_272 = arith.constant 0 : index
    %635 = vector.load %arg12[%c2_270, %c0_271, %c0_272] : memref<4x18x18xf32, #tpu.memory_space<vmem>>, vector<1x16x16xf32>
    %636 = vector.shape_cast %635 : vector<1x16x16xf32> to vector<16x16xf32>
    %c18_273 = arith.constant 18 : index
    %637 = memref.load %arg6[%c18_273] : memref<72xf32, #tpu.memory_space<smem>>
    %638 = vector.broadcast %637 : f32 to vector<16x16xf32>
    %639 = arith.mulf %638, %636 : vector<16x16xf32>
    %640 = arith.addf %630, %639 : vector<16x16xf32>
    %c54_274 = arith.constant 54 : index
    %641 = memref.load %arg6[%c54_274] : memref<72xf32, #tpu.memory_space<smem>>
    %642 = vector.broadcast %641 : f32 to vector<16x16xf32>
    %643 = arith.mulf %642, %636 : vector<16x16xf32>
    %644 = arith.addf %634, %643 : vector<16x16xf32>
    %c2_275 = arith.constant 2 : index
    %c0_276 = arith.constant 0 : index
    %c1_277 = arith.constant 1 : index
    %645 = vector.load %arg12[%c2_275, %c0_276, %c1_277] : memref<4x18x18xf32, #tpu.memory_space<vmem>>, vector<1x16x16xf32>
    %646 = vector.shape_cast %645 : vector<1x16x16xf32> to vector<16x16xf32>
    %c19_278 = arith.constant 19 : index
    %647 = memref.load %arg6[%c19_278] : memref<72xf32, #tpu.memory_space<smem>>
    %648 = vector.broadcast %647 : f32 to vector<16x16xf32>
    %649 = arith.mulf %648, %646 : vector<16x16xf32>
    %650 = arith.addf %640, %649 : vector<16x16xf32>
    %c55_279 = arith.constant 55 : index
    %651 = memref.load %arg6[%c55_279] : memref<72xf32, #tpu.memory_space<smem>>
    %652 = vector.broadcast %651 : f32 to vector<16x16xf32>
    %653 = arith.mulf %652, %646 : vector<16x16xf32>
    %654 = arith.addf %644, %653 : vector<16x16xf32>
    %c2_280 = arith.constant 2 : index
    %c0_281 = arith.constant 0 : index
    %c2_282 = arith.constant 2 : index
    %655 = vector.load %arg12[%c2_280, %c0_281, %c2_282] : memref<4x18x18xf32, #tpu.memory_space<vmem>>, vector<1x16x16xf32>
    %656 = vector.shape_cast %655 : vector<1x16x16xf32> to vector<16x16xf32>
    %c20_283 = arith.constant 20 : index
    %657 = memref.load %arg6[%c20_283] : memref<72xf32, #tpu.memory_space<smem>>
    %658 = vector.broadcast %657 : f32 to vector<16x16xf32>
    %659 = arith.mulf %658, %656 : vector<16x16xf32>
    %660 = arith.addf %650, %659 : vector<16x16xf32>
    %c56_284 = arith.constant 56 : index
    %661 = memref.load %arg6[%c56_284] : memref<72xf32, #tpu.memory_space<smem>>
    %662 = vector.broadcast %661 : f32 to vector<16x16xf32>
    %663 = arith.mulf %662, %656 : vector<16x16xf32>
    %664 = arith.addf %654, %663 : vector<16x16xf32>
    %c2_285 = arith.constant 2 : index
    %c1_286 = arith.constant 1 : index
    %c0_287 = arith.constant 0 : index
    %665 = vector.load %arg12[%c2_285, %c1_286, %c0_287] : memref<4x18x18xf32, #tpu.memory_space<vmem>>, vector<1x16x16xf32>
    %666 = vector.shape_cast %665 : vector<1x16x16xf32> to vector<16x16xf32>
    %c21_288 = arith.constant 21 : index
    %667 = memref.load %arg6[%c21_288] : memref<72xf32, #tpu.memory_space<smem>>
    %668 = vector.broadcast %667 : f32 to vector<16x16xf32>
    %669 = arith.mulf %668, %666 : vector<16x16xf32>
    %670 = arith.addf %660, %669 : vector<16x16xf32>
    %c57_289 = arith.constant 57 : index
    %671 = memref.load %arg6[%c57_289] : memref<72xf32, #tpu.memory_space<smem>>
    %672 = vector.broadcast %671 : f32 to vector<16x16xf32>
    %673 = arith.mulf %672, %666 : vector<16x16xf32>
    %674 = arith.addf %664, %673 : vector<16x16xf32>
    %c2_290 = arith.constant 2 : index
    %c1_291 = arith.constant 1 : index
    %c1_292 = arith.constant 1 : index
    %675 = vector.load %arg12[%c2_290, %c1_291, %c1_292] : memref<4x18x18xf32, #tpu.memory_space<vmem>>, vector<1x16x16xf32>
    %676 = vector.shape_cast %675 : vector<1x16x16xf32> to vector<16x16xf32>
    %c22_293 = arith.constant 22 : index
    %677 = memref.load %arg6[%c22_293] : memref<72xf32, #tpu.memory_space<smem>>
    %678 = vector.broadcast %677 : f32 to vector<16x16xf32>
    %679 = arith.mulf %678, %676 : vector<16x16xf32>
    %680 = arith.addf %670, %679 : vector<16x16xf32>
    %c58_294 = arith.constant 58 : index
    %681 = memref.load %arg6[%c58_294] : memref<72xf32, #tpu.memory_space<smem>>
    %682 = vector.broadcast %681 : f32 to vector<16x16xf32>
    %683 = arith.mulf %682, %676 : vector<16x16xf32>
    %684 = arith.addf %674, %683 : vector<16x16xf32>
    %c2_295 = arith.constant 2 : index
    %c1_296 = arith.constant 1 : index
    %c2_297 = arith.constant 2 : index
    %685 = vector.load %arg12[%c2_295, %c1_296, %c2_297] : memref<4x18x18xf32, #tpu.memory_space<vmem>>, vector<1x16x16xf32>
    %686 = vector.shape_cast %685 : vector<1x16x16xf32> to vector<16x16xf32>
    %c23_298 = arith.constant 23 : index
    %687 = memref.load %arg6[%c23_298] : memref<72xf32, #tpu.memory_space<smem>>
    %688 = vector.broadcast %687 : f32 to vector<16x16xf32>
    %689 = arith.mulf %688, %686 : vector<16x16xf32>
    %690 = arith.addf %680, %689 : vector<16x16xf32>
    %c59_299 = arith.constant 59 : index
    %691 = memref.load %arg6[%c59_299] : memref<72xf32, #tpu.memory_space<smem>>
    %692 = vector.broadcast %691 : f32 to vector<16x16xf32>
    %693 = arith.mulf %692, %686 : vector<16x16xf32>
    %694 = arith.addf %684, %693 : vector<16x16xf32>
    %c2_300 = arith.constant 2 : index
    %c2_301 = arith.constant 2 : index
    %c0_302 = arith.constant 0 : index
    %695 = vector.load %arg12[%c2_300, %c2_301, %c0_302] : memref<4x18x18xf32, #tpu.memory_space<vmem>>, vector<1x16x16xf32>
    %696 = vector.shape_cast %695 : vector<1x16x16xf32> to vector<16x16xf32>
    %c24_303 = arith.constant 24 : index
    %697 = memref.load %arg6[%c24_303] : memref<72xf32, #tpu.memory_space<smem>>
    %698 = vector.broadcast %697 : f32 to vector<16x16xf32>
    %699 = arith.mulf %698, %696 : vector<16x16xf32>
    %700 = arith.addf %690, %699 : vector<16x16xf32>
    %c60_304 = arith.constant 60 : index
    %701 = memref.load %arg6[%c60_304] : memref<72xf32, #tpu.memory_space<smem>>
    %702 = vector.broadcast %701 : f32 to vector<16x16xf32>
    %703 = arith.mulf %702, %696 : vector<16x16xf32>
    %704 = arith.addf %694, %703 : vector<16x16xf32>
    %c2_305 = arith.constant 2 : index
    %c2_306 = arith.constant 2 : index
    %c1_307 = arith.constant 1 : index
    %705 = vector.load %arg12[%c2_305, %c2_306, %c1_307] : memref<4x18x18xf32, #tpu.memory_space<vmem>>, vector<1x16x16xf32>
    %706 = vector.shape_cast %705 : vector<1x16x16xf32> to vector<16x16xf32>
    %c25_308 = arith.constant 25 : index
    %707 = memref.load %arg6[%c25_308] : memref<72xf32, #tpu.memory_space<smem>>
    %708 = vector.broadcast %707 : f32 to vector<16x16xf32>
    %709 = arith.mulf %708, %706 : vector<16x16xf32>
    %710 = arith.addf %700, %709 : vector<16x16xf32>
    %c61_309 = arith.constant 61 : index
    %711 = memref.load %arg6[%c61_309] : memref<72xf32, #tpu.memory_space<smem>>
    %712 = vector.broadcast %711 : f32 to vector<16x16xf32>
    %713 = arith.mulf %712, %706 : vector<16x16xf32>
    %714 = arith.addf %704, %713 : vector<16x16xf32>
    %c2_310 = arith.constant 2 : index
    %c2_311 = arith.constant 2 : index
    %c2_312 = arith.constant 2 : index
    %715 = vector.load %arg12[%c2_310, %c2_311, %c2_312] : memref<4x18x18xf32, #tpu.memory_space<vmem>>, vector<1x16x16xf32>
    %716 = vector.shape_cast %715 : vector<1x16x16xf32> to vector<16x16xf32>
    %c26_313 = arith.constant 26 : index
    %717 = memref.load %arg6[%c26_313] : memref<72xf32, #tpu.memory_space<smem>>
    %718 = vector.broadcast %717 : f32 to vector<16x16xf32>
    %719 = arith.mulf %718, %716 : vector<16x16xf32>
    %720 = arith.addf %710, %719 : vector<16x16xf32>
    %c62_314 = arith.constant 62 : index
    %721 = memref.load %arg6[%c62_314] : memref<72xf32, #tpu.memory_space<smem>>
    %722 = vector.broadcast %721 : f32 to vector<16x16xf32>
    %723 = arith.mulf %722, %716 : vector<16x16xf32>
    %724 = arith.addf %714, %723 : vector<16x16xf32>
    %c3_315 = arith.constant 3 : index
    %c0_316 = arith.constant 0 : index
    %c0_317 = arith.constant 0 : index
    %725 = vector.load %arg12[%c3_315, %c0_316, %c0_317] : memref<4x18x18xf32, #tpu.memory_space<vmem>>, vector<1x16x16xf32>
    %726 = vector.shape_cast %725 : vector<1x16x16xf32> to vector<16x16xf32>
    %c27_318 = arith.constant 27 : index
    %727 = memref.load %arg6[%c27_318] : memref<72xf32, #tpu.memory_space<smem>>
    %728 = vector.broadcast %727 : f32 to vector<16x16xf32>
    %729 = arith.mulf %728, %726 : vector<16x16xf32>
    %730 = arith.addf %720, %729 : vector<16x16xf32>
    %c63_319 = arith.constant 63 : index
    %731 = memref.load %arg6[%c63_319] : memref<72xf32, #tpu.memory_space<smem>>
    %732 = vector.broadcast %731 : f32 to vector<16x16xf32>
    %733 = arith.mulf %732, %726 : vector<16x16xf32>
    %734 = arith.addf %724, %733 : vector<16x16xf32>
    %c3_320 = arith.constant 3 : index
    %c0_321 = arith.constant 0 : index
    %c1_322 = arith.constant 1 : index
    %735 = vector.load %arg12[%c3_320, %c0_321, %c1_322] : memref<4x18x18xf32, #tpu.memory_space<vmem>>, vector<1x16x16xf32>
    %736 = vector.shape_cast %735 : vector<1x16x16xf32> to vector<16x16xf32>
    %c28_323 = arith.constant 28 : index
    %737 = memref.load %arg6[%c28_323] : memref<72xf32, #tpu.memory_space<smem>>
    %738 = vector.broadcast %737 : f32 to vector<16x16xf32>
    %739 = arith.mulf %738, %736 : vector<16x16xf32>
    %740 = arith.addf %730, %739 : vector<16x16xf32>
    %c64_324 = arith.constant 64 : index
    %741 = memref.load %arg6[%c64_324] : memref<72xf32, #tpu.memory_space<smem>>
    %742 = vector.broadcast %741 : f32 to vector<16x16xf32>
    %743 = arith.mulf %742, %736 : vector<16x16xf32>
    %744 = arith.addf %734, %743 : vector<16x16xf32>
    %c3_325 = arith.constant 3 : index
    %c0_326 = arith.constant 0 : index
    %c2_327 = arith.constant 2 : index
    %745 = vector.load %arg12[%c3_325, %c0_326, %c2_327] : memref<4x18x18xf32, #tpu.memory_space<vmem>>, vector<1x16x16xf32>
    %746 = vector.shape_cast %745 : vector<1x16x16xf32> to vector<16x16xf32>
    %c29_328 = arith.constant 29 : index
    %747 = memref.load %arg6[%c29_328] : memref<72xf32, #tpu.memory_space<smem>>
    %748 = vector.broadcast %747 : f32 to vector<16x16xf32>
    %749 = arith.mulf %748, %746 : vector<16x16xf32>
    %750 = arith.addf %740, %749 : vector<16x16xf32>
    %c65_329 = arith.constant 65 : index
    %751 = memref.load %arg6[%c65_329] : memref<72xf32, #tpu.memory_space<smem>>
    %752 = vector.broadcast %751 : f32 to vector<16x16xf32>
    %753 = arith.mulf %752, %746 : vector<16x16xf32>
    %754 = arith.addf %744, %753 : vector<16x16xf32>
    %c3_330 = arith.constant 3 : index
    %c1_331 = arith.constant 1 : index
    %c0_332 = arith.constant 0 : index
    %755 = vector.load %arg12[%c3_330, %c1_331, %c0_332] : memref<4x18x18xf32, #tpu.memory_space<vmem>>, vector<1x16x16xf32>
    %756 = vector.shape_cast %755 : vector<1x16x16xf32> to vector<16x16xf32>
    %c30_333 = arith.constant 30 : index
    %757 = memref.load %arg6[%c30_333] : memref<72xf32, #tpu.memory_space<smem>>
    %758 = vector.broadcast %757 : f32 to vector<16x16xf32>
    %759 = arith.mulf %758, %756 : vector<16x16xf32>
    %760 = arith.addf %750, %759 : vector<16x16xf32>
    %c66_334 = arith.constant 66 : index
    %761 = memref.load %arg6[%c66_334] : memref<72xf32, #tpu.memory_space<smem>>
    %762 = vector.broadcast %761 : f32 to vector<16x16xf32>
    %763 = arith.mulf %762, %756 : vector<16x16xf32>
    %764 = arith.addf %754, %763 : vector<16x16xf32>
    %c3_335 = arith.constant 3 : index
    %c1_336 = arith.constant 1 : index
    %c1_337 = arith.constant 1 : index
    %765 = vector.load %arg12[%c3_335, %c1_336, %c1_337] : memref<4x18x18xf32, #tpu.memory_space<vmem>>, vector<1x16x16xf32>
    %766 = vector.shape_cast %765 : vector<1x16x16xf32> to vector<16x16xf32>
    %c31_338 = arith.constant 31 : index
    %767 = memref.load %arg6[%c31_338] : memref<72xf32, #tpu.memory_space<smem>>
    %768 = vector.broadcast %767 : f32 to vector<16x16xf32>
    %769 = arith.mulf %768, %766 : vector<16x16xf32>
    %770 = arith.addf %760, %769 : vector<16x16xf32>
    %c67_339 = arith.constant 67 : index
    %771 = memref.load %arg6[%c67_339] : memref<72xf32, #tpu.memory_space<smem>>
    %772 = vector.broadcast %771 : f32 to vector<16x16xf32>
    %773 = arith.mulf %772, %766 : vector<16x16xf32>
    %774 = arith.addf %764, %773 : vector<16x16xf32>
    %c3_340 = arith.constant 3 : index
    %c1_341 = arith.constant 1 : index
    %c2_342 = arith.constant 2 : index
    %775 = vector.load %arg12[%c3_340, %c1_341, %c2_342] : memref<4x18x18xf32, #tpu.memory_space<vmem>>, vector<1x16x16xf32>
    %776 = vector.shape_cast %775 : vector<1x16x16xf32> to vector<16x16xf32>
    %c32_343 = arith.constant 32 : index
    %777 = memref.load %arg6[%c32_343] : memref<72xf32, #tpu.memory_space<smem>>
    %778 = vector.broadcast %777 : f32 to vector<16x16xf32>
    %779 = arith.mulf %778, %776 : vector<16x16xf32>
    %780 = arith.addf %770, %779 : vector<16x16xf32>
    %c68_344 = arith.constant 68 : index
    %781 = memref.load %arg6[%c68_344] : memref<72xf32, #tpu.memory_space<smem>>
    %782 = vector.broadcast %781 : f32 to vector<16x16xf32>
    %783 = arith.mulf %782, %776 : vector<16x16xf32>
    %784 = arith.addf %774, %783 : vector<16x16xf32>
    %c3_345 = arith.constant 3 : index
    %c2_346 = arith.constant 2 : index
    %c0_347 = arith.constant 0 : index
    %785 = vector.load %arg12[%c3_345, %c2_346, %c0_347] : memref<4x18x18xf32, #tpu.memory_space<vmem>>, vector<1x16x16xf32>
    %786 = vector.shape_cast %785 : vector<1x16x16xf32> to vector<16x16xf32>
    %c33_348 = arith.constant 33 : index
    %787 = memref.load %arg6[%c33_348] : memref<72xf32, #tpu.memory_space<smem>>
    %788 = vector.broadcast %787 : f32 to vector<16x16xf32>
    %789 = arith.mulf %788, %786 : vector<16x16xf32>
    %790 = arith.addf %780, %789 : vector<16x16xf32>
    %c69_349 = arith.constant 69 : index
    %791 = memref.load %arg6[%c69_349] : memref<72xf32, #tpu.memory_space<smem>>
    %792 = vector.broadcast %791 : f32 to vector<16x16xf32>
    %793 = arith.mulf %792, %786 : vector<16x16xf32>
    %794 = arith.addf %784, %793 : vector<16x16xf32>
    %c3_350 = arith.constant 3 : index
    %c2_351 = arith.constant 2 : index
    %c1_352 = arith.constant 1 : index
    %795 = vector.load %arg12[%c3_350, %c2_351, %c1_352] : memref<4x18x18xf32, #tpu.memory_space<vmem>>, vector<1x16x16xf32>
    %796 = vector.shape_cast %795 : vector<1x16x16xf32> to vector<16x16xf32>
    %c34_353 = arith.constant 34 : index
    %797 = memref.load %arg6[%c34_353] : memref<72xf32, #tpu.memory_space<smem>>
    %798 = vector.broadcast %797 : f32 to vector<16x16xf32>
    %799 = arith.mulf %798, %796 : vector<16x16xf32>
    %800 = arith.addf %790, %799 : vector<16x16xf32>
    %c70_354 = arith.constant 70 : index
    %801 = memref.load %arg6[%c70_354] : memref<72xf32, #tpu.memory_space<smem>>
    %802 = vector.broadcast %801 : f32 to vector<16x16xf32>
    %803 = arith.mulf %802, %796 : vector<16x16xf32>
    %804 = arith.addf %794, %803 : vector<16x16xf32>
    %c3_355 = arith.constant 3 : index
    %c2_356 = arith.constant 2 : index
    %c2_357 = arith.constant 2 : index
    %805 = vector.load %arg12[%c3_355, %c2_356, %c2_357] : memref<4x18x18xf32, #tpu.memory_space<vmem>>, vector<1x16x16xf32>
    %806 = vector.shape_cast %805 : vector<1x16x16xf32> to vector<16x16xf32>
    %c35_358 = arith.constant 35 : index
    %807 = memref.load %arg6[%c35_358] : memref<72xf32, #tpu.memory_space<smem>>
    %808 = vector.broadcast %807 : f32 to vector<16x16xf32>
    %809 = arith.mulf %808, %806 : vector<16x16xf32>
    %810 = arith.addf %800, %809 : vector<16x16xf32>
    %c71_359 = arith.constant 71 : index
    %811 = memref.load %arg6[%c71_359] : memref<72xf32, #tpu.memory_space<smem>>
    %812 = vector.broadcast %811 : f32 to vector<16x16xf32>
    %813 = arith.mulf %812, %806 : vector<16x16xf32>
    %814 = arith.addf %804, %813 : vector<16x16xf32>
    %c0_360 = arith.constant 0 : index
    %815 = memref.load %arg8[%c0_360] : memref<2xf32, #tpu.memory_space<smem>>
    %816 = vector.broadcast %815 : f32 to vector<16x16xf32>
    %817 = arith.addf %810, %816 : vector<16x16xf32>
    %c1_361 = arith.constant 1 : index
    %818 = memref.load %arg8[%c1_361] : memref<2xf32, #tpu.memory_space<smem>>
    %819 = vector.broadcast %818 : f32 to vector<16x16xf32>
    %820 = arith.addf %814, %819 : vector<16x16xf32>
    %821 = arith.truncf %817 : vector<16x16xf32> to vector<16x16xbf16>
    %c0_362 = arith.constant 0 : index
    %c0_363 = arith.constant 0 : index
    %c0_364 = arith.constant 0 : index
    %822 = vector.load %arg5[%c0_362, %c0_363, %c0_364] : memref<3x16x16xbf16, #tpu.memory_space<vmem>>, vector<1x16x16xbf16>
    %823 = vector.shape_cast %822 : vector<1x16x16xbf16> to vector<16x16xbf16>
    %cst_365 = arith.constant dense<0.000000e+00> : vector<16x16xf32>
    %824 = tpu.matmul %821, %823, %cst_365 {dimension_numbers = #tpu.dot_dimension_numbers<[1], [0], [0], [1], [0, 0, 1, 1], [], []>} : vector<16x16xbf16>, vector<16x16xbf16>, vector<16x16xf32> -> vector<16x16xf32>
    %825 = arith.truncf %820 : vector<16x16xf32> to vector<16x16xbf16>
    %c1_366 = arith.constant 1 : index
    %c0_367 = arith.constant 0 : index
    %c0_368 = arith.constant 0 : index
    %826 = vector.load %arg5[%c1_366, %c0_367, %c0_368] : memref<3x16x16xbf16, #tpu.memory_space<vmem>>, vector<1x16x16xbf16>
    %827 = vector.shape_cast %826 : vector<1x16x16xbf16> to vector<16x16xbf16>
    %cst_369 = arith.constant dense<0.000000e+00> : vector<16x16xf32>
    %828 = tpu.matmul %825, %827, %cst_369 {dimension_numbers = #tpu.dot_dimension_numbers<[1], [0], [0], [1], [0, 0, 1, 1], [], []>} : vector<16x16xbf16>, vector<16x16xbf16>, vector<16x16xf32> -> vector<16x16xf32>
    %829 = arith.addf %817, %820 : vector<16x16xf32>
    %830 = arith.truncf %829 : vector<16x16xf32> to vector<16x16xbf16>
    %c2_370 = arith.constant 2 : index
    %c0_371 = arith.constant 0 : index
    %c0_372 = arith.constant 0 : index
    %831 = vector.load %arg5[%c2_370, %c0_371, %c0_372] : memref<3x16x16xbf16, #tpu.memory_space<vmem>>, vector<1x16x16xbf16>
    %832 = vector.shape_cast %831 : vector<1x16x16xbf16> to vector<16x16xbf16>
    %cst_373 = arith.constant dense<0.000000e+00> : vector<16x16xf32>
    %833 = tpu.matmul %830, %832, %cst_373 {dimension_numbers = #tpu.dot_dimension_numbers<[1], [0], [0], [1], [0, 0, 1, 1], [], []>} : vector<16x16xbf16>, vector<16x16xbf16>, vector<16x16xf32> -> vector<16x16xf32>
    %834 = arith.subf %824, %828 : vector<16x16xf32>
    %835 = arith.subf %833, %824 : vector<16x16xf32>
    %836 = arith.subf %835, %828 : vector<16x16xf32>
    %c0_374 = arith.constant 0 : index
    %c0_375 = arith.constant 0 : index
    %c0_376 = arith.constant 0 : index
    %837 = vector.load %arg4[%c0_374, %c0_375, %c0_376] : memref<3x16x16xbf16, #tpu.memory_space<vmem>>, vector<1x16x16xbf16>
    %838 = vector.shape_cast %837 : vector<1x16x16xbf16> to vector<16x16xbf16>
    %839 = arith.truncf %834 : vector<16x16xf32> to vector<16x16xbf16>
    %cst_377 = arith.constant dense<0.000000e+00> : vector<16x16xf32>
    %840 = tpu.matmul %838, %839, %cst_377 {dimension_numbers = #tpu.dot_dimension_numbers<[1], [0], [0], [1], [0, 0, 1, 1], [], []>} : vector<16x16xbf16>, vector<16x16xbf16>, vector<16x16xf32> -> vector<16x16xf32>
    %c1_378 = arith.constant 1 : index
    %c0_379 = arith.constant 0 : index
    %c0_380 = arith.constant 0 : index
    %841 = vector.load %arg4[%c1_378, %c0_379, %c0_380] : memref<3x16x16xbf16, #tpu.memory_space<vmem>>, vector<1x16x16xbf16>
    %842 = vector.shape_cast %841 : vector<1x16x16xbf16> to vector<16x16xbf16>
    %843 = arith.truncf %836 : vector<16x16xf32> to vector<16x16xbf16>
    %cst_381 = arith.constant dense<0.000000e+00> : vector<16x16xf32>
    %844 = tpu.matmul %842, %843, %cst_381 {dimension_numbers = #tpu.dot_dimension_numbers<[1], [0], [0], [1], [0, 0, 1, 1], [], []>} : vector<16x16xbf16>, vector<16x16xbf16>, vector<16x16xf32> -> vector<16x16xf32>
    %c2_382 = arith.constant 2 : index
    %c0_383 = arith.constant 0 : index
    %c0_384 = arith.constant 0 : index
    %845 = vector.load %arg4[%c2_382, %c0_383, %c0_384] : memref<3x16x16xbf16, #tpu.memory_space<vmem>>, vector<1x16x16xbf16>
    %846 = vector.shape_cast %845 : vector<1x16x16xbf16> to vector<16x16xbf16>
    %847 = arith.addf %834, %836 : vector<16x16xf32>
    %848 = arith.truncf %847 : vector<16x16xf32> to vector<16x16xbf16>
    %cst_385 = arith.constant dense<0.000000e+00> : vector<16x16xf32>
    %849 = tpu.matmul %846, %848, %cst_385 {dimension_numbers = #tpu.dot_dimension_numbers<[1], [0], [0], [1], [0, 0, 1, 1], [], []>} : vector<16x16xbf16>, vector<16x16xbf16>, vector<16x16xf32> -> vector<16x16xf32>
    %850 = arith.subf %840, %844 : vector<16x16xf32>
    %851 = arith.subf %849, %840 : vector<16x16xf32>
    %852 = arith.subf %851, %844 : vector<16x16xf32>
    %c0_386 = arith.constant 0 : index
    %c2_387 = arith.constant 2 : index
    %c0_388 = arith.constant 0 : index
    %c0_389 = arith.constant 0 : index
    %853 = vector.load %arg10[%c0_386, %c2_387, %c0_388, %c0_389] : memref<1x4x16x16xf32, #tpu.memory_space<vmem>>, vector<1x1x16x16xf32>
    %854 = vector.shape_cast %853 : vector<1x1x16x16xf32> to vector<16x16xf32>
    %855 = vector.shape_cast %850 : vector<16x16xf32> to vector<1x1x16x16xf32>
    tpu.vector_store %arg10[%c0_386, %c2_387, %c0_388, %c0_389], %855 {strides = array<i32>} : memref<1x4x16x16xf32, #tpu.memory_space<vmem>>, vector<1x1x16x16xf32>,
    %c0_390 = arith.constant 0 : index
    %c3_391 = arith.constant 3 : index
    %c0_392 = arith.constant 0 : index
    %c0_393 = arith.constant 0 : index
    %856 = vector.load %arg10[%c0_390, %c3_391, %c0_392, %c0_393] : memref<1x4x16x16xf32, #tpu.memory_space<vmem>>, vector<1x1x16x16xf32>
    %857 = vector.shape_cast %856 : vector<1x1x16x16xf32> to vector<16x16xf32>
    %858 = vector.shape_cast %852 : vector<16x16xf32> to vector<1x1x16x16xf32>
    tpu.vector_store %arg10[%c0_390, %c3_391, %c0_392, %c0_393], %858 {strides = array<i32>} : memref<1x4x16x16xf32, #tpu.memory_space<vmem>>, vector<1x1x16x16xf32>,
    return
  }
  func.func @transform_0(%arg0: i32) -> (i32, i32, i32, i32) {
    %c0_i32 = arith.constant 0 : i32
    %c0_i32_0 = arith.constant 0 : i32
    %c0_i32_1 = arith.constant 0 : i32
    %c0_i32_2 = arith.constant 0 : i32
    return %arg0, %c0_i32, %c0_i32_0, %c0_i32_1 : i32, i32, i32, i32
  }
  func.func @transform_1(%arg0: i32) -> (i32, i32, i32) {
    %c0_i32 = arith.constant 0 : i32
    %c0_i32_0 = arith.constant 0 : i32
    %c0_i32_1 = arith.constant 0 : i32
    %c0_i32_2 = arith.constant 0 : i32
    return %c0_i32, %c0_i32_0, %c0_i32_1 : i32, i32, i32
  }
  func.func @transform_2(%arg0: i32) -> (i32, i32, i32) {
    %c0_i32 = arith.constant 0 : i32
    %c0_i32_0 = arith.constant 0 : i32
    %c0_i32_1 = arith.constant 0 : i32
    %c0_i32_2 = arith.constant 0 : i32
    return %c0_i32, %c0_i32_0, %c0_i32_1 : i32, i32, i32
  }
  func.func @transform_3(%arg0: i32) -> (i32, i32, i32) {
    %c0_i32 = arith.constant 0 : i32
    %c0_i32_0 = arith.constant 0 : i32
    %c0_i32_1 = arith.constant 0 : i32
    %c0_i32_2 = arith.constant 0 : i32
    return %c0_i32, %c0_i32_0, %c0_i32_1 : i32, i32, i32
  }
  func.func @transform_4(%arg0: i32) -> (i32, i32, i32) {
    %c0_i32 = arith.constant 0 : i32
    %c0_i32_0 = arith.constant 0 : i32
    %c0_i32_1 = arith.constant 0 : i32
    %c0_i32_2 = arith.constant 0 : i32
    return %c0_i32, %c0_i32_0, %c0_i32_1 : i32, i32, i32
  }
  func.func @transform_5(%arg0: i32) -> i32 {
    %c0_i32 = arith.constant 0 : i32
    %c0_i32_0 = arith.constant 0 : i32
    return %c0_i32 : i32
  }
  func.func @transform_6(%arg0: i32) -> i32 {
    %c0_i32 = arith.constant 0 : i32
    %c0_i32_0 = arith.constant 0 : i32
    return %c0_i32 : i32
  }
  func.func @transform_7(%arg0: i32) -> i32 {
    %c0_i32 = arith.constant 0 : i32
    %c0_i32_0 = arith.constant 0 : i32
    return %c0_i32 : i32
  }
  func.func @transform_8(%arg0: i32) -> i32 {
    %c0_i32 = arith.constant 0 : i32
    %c0_i32_0 = arith.constant 0 : i32
    return %c0_i32 : i32
  }
  func.func @transform_9(%arg0: i32) -> (i32, i32, i32, i32) {
    %c0_i32 = arith.constant 0 : i32
    %c0_i32_0 = arith.constant 0 : i32
    %c0_i32_1 = arith.constant 0 : i32
    %c0_i32_2 = arith.constant 0 : i32
    return %arg0, %c0_i32, %c0_i32_0, %c0_i32_1 : i32, i32, i32, i32
  }
}

</mosaic_0001>

<llo_original>
// kernel: multidomain_conv2d.1
$region0: #{multidomain_conv2d.1}
  #allocation0 [shape = 'u32[]', space=smem, size = 0x4, offset = 0x4, fixed_abs, tag = 'smem constant byte address 0x4 - core index']
  #allocation1 [shape = 'u32[72,128]{1,0:T(1,128)}', space=vmem, size = 0x9000, scoped, tag = 'internal scratch']
  #allocation2 [shape = 'f32[4,18,18]{2,1,0:T(8,128)}', space=vmem, size = 0xc000, scoped, tag = 'scratch operand']
  #allocation3 [shape = 'f32[4,18,18]{2,1,0:T(8,128)}', space=vmem, size = 0xc000, scoped, tag = 'scratch operand']
  %s0 = inlined_call_operand.hbm [shape: f32[2,4,16,16], index: 0, kind: input, shape index: {}]
  %s1 = inlined_call_operand.vmem [shape: bf16[3,18,16], index: 1, kind: input, shape index: {}]
  %s2 = inlined_call_operand.vmem [shape: bf16[3,16,18], index: 2, kind: input, shape index: {}]
  %s3 = inlined_call_operand.vmem [shape: bf16[3,16,16], index: 3, kind: input, shape index: {}, may-alias: {3,4}]
  %s4 = inlined_call_operand.vmem [shape: bf16[3,16,16], index: 4, kind: input, shape index: {}, may-alias: {3,4}]
  %s5 = inlined_call_operand.vmem [shape: f32[72], index: 5, kind: input, shape index: {}]
  %s6 = inlined_call_operand.vmem [shape: f32[72], index: 6, kind: input, shape index: {}]
  %s7 = inlined_call_operand.vmem [shape: f32[2], index: 7, kind: input, shape index: {}]
  %s8 = inlined_call_operand.vmem [shape: f32[2], index: 8, kind: input, shape index: {}]
  %s9 = inlined_call_operand.hbm [shape: f32[2,4,16,16], index: 9, kind: output, shape index: {}]
  %s10 = sld [smem:[#allocation0]]
  $region89: #{multidomain_conv2d.1} parent=0
    _
  %s12 = ssub.s32 1, %s10
  %s13 = scalar_select 0, %s12, %s10
  $region1: #{multidomain_conv2d.1} parent=0
    #allocation4 [shape = 'u8[65536]{0}', space=vmem, size = 0x10000, scoped, tag = 'input window, operand 0']
    #allocation5 [shape = 's32[2]{0}', space=sflag, size = 0x8, scoped, tag = 'scoped memory for multidomain_conv2d.1']
    #allocation6 [shape = 's32[2]{0}', space=sflag, size = 0x8, scoped, tag = 'scoped memory for multidomain_conv2d.1']
    #allocation7 [shape = 's32[2]{0}', space=sflag, size = 0x8, scoped, tag = 'scoped memory for multidomain_conv2d.1']
    #allocation8 [shape = 'u8[512]{0}', space=smem, size = 0x200, scoped, tag = 'input window, operand 5, single buffered']
    #allocation9 [shape = 'u8[512]{0}', space=smem, size = 0x200, scoped, tag = 'input window, operand 6, single buffered']
    #allocation10 [shape = 's32[1]{0}', space=sflag, size = 0x4, scoped, tag = 'scoped memory for multidomain_conv2d.1']
    #allocation11 [shape = 'u8[512]{0}', space=smem, size = 0x200, scoped, tag = 'input window, operand 7, single buffered']
    #allocation12 [shape = 'u8[512]{0}', space=smem, size = 0x200, scoped, tag = 'input window, operand 8, single buffered']
    #allocation13 [shape = 's32[1]{0}', space=sflag, size = 0x4, scoped, tag = 'scoped memory for multidomain_conv2d.1']
    #allocation14 [shape = 'u8[65536]{0}', space=vmem, size = 0x10000, scoped, tag = 'output window, operand 0']
    %14 = vsyncpa [#allocation5], 0
    %s15 = scalar_lea.sflag [#allocation5], 1
    %16 = vsyncpa %s15, 0
    %17 = vsyncpa [#allocation7], 0
    %18 = vsyncpa [#allocation10], 0
    %19 = vsyncpa [#allocation13], 0
    %20 = vsyncpa [#allocation6], 0
    %s21 = scalar_lea.sflag [#allocation6], 1
    %22 = vsyncpa %s21, 0
    loop: start=0, step=1, limit=4
    $region2: #{multidomain_conv2d.1} parent=1 // loop_pre_header
      _
    $region3: #{multidomain_conv2d.1} parent=1 // loop_header
      %s24 = sphi 0, %s28
      %p25 = scmp.ge.s32.totalorder %s24, 4
      %s34 = sphi 0, %s36
      %s37 = sphi 0, %s34
      %s38 = sphi 0, %s37
      %s54 = sphi 0, %s38
      %s58 = sphi 0, %s58
      %s60 = sphi 0, %s58
      %s61 = sphi 0, %s60
      %s75 = sphi 0, %s61
      %s79 = sphi 0, %s79
      %s81 = sphi 0, %s79
      %s82 = sphi 0, %s81
      %s96 = sphi 0, %s82
      %s100 = sphi 0, %s100
      %s102 = sphi 0, %s100
      %s103 = sphi 0, %s102
      %s117 = sphi 0, %s103
      %s121 = sphi 0, %s121
      %s123 = sphi 0, %s121
      %s124 = sphi 0, %s123
      %s138 = sphi 0, %s124
      %s142 = sphi 0, %s142
      %s144 = sphi 0, %s142
      %s145 = sphi 0, %s144
      %s159 = sphi 0, %s145
      %s163 = sphi 0, %s163
      %s165 = sphi 0, %s163
      %s166 = sphi 0, %s165
      %s180 = sphi 0, %s166
      %s184 = sphi 0, %s184
      %s186 = sphi 0, %s184
      %s187 = sphi 0, %s186
      %s201 = sphi 0, %s187
      %s205 = sphi 0, %s205
      %s207 = sphi 0, %s205
      %s208 = sphi 0, %s207
      %s222 = sphi 0, %s208
      %s228 = sphi 0, %s230
      %s231 = sphi 0, %s228
      %s232 = sphi 0, %s231
      %s248 = sphi 0, %s232
    $region4: #{multidomain_conv2d.1} parent=1 // loop_header_branch
      %27 = sbr.rel (%p25) target = $region8
    $region5: #{multidomain_conv2d.1} parent=1 // loop_body
      %s29 = ssub.s32 %s24, 1
      %s30 = ssub.s32 %s24, 2
      %s31 = sadd.s32 %s24, 1
      %s32 = ssub.s32 %s24, %s31
      %p33 = scmp.eq.s32.totalorder %s32, 0
      %s35 = sadd.s32 %s34, 1
      %s36 = scalar_select %p33, %s34, %s35
      %p39 = pneg %p33
      %p40 = scmp.eq.s32.totalorder %s24, 1
      %p41 = por %p39, %p40
      %p42 = scmp.ne.s32.totalorder %s34, %s37
      %p43 = scmp.eq.s32.totalorder %s24, 0
      %p44 = por %p42, %p43
      %p45 = scmp.ne.s32.totalorder %s34, %s37
      %p46 = scmp.eq.s32.totalorder %s29, 1
      %p47 = por %p45, %p46
      %p48 = scmp.ne.s32.totalorder %s37, %s38
      %p49 = scmp.eq.s32.totalorder %s29, 0
      %p50 = por %p48, %p49
      %p51 = scmp.ne.s32.totalorder %s37, %s38
      %p52 = scmp.eq.s32.totalorder %s30, 1
      %p53 = por %p51, %p52
      %p55 = scmp.ne.s32.totalorder %s38, %s54
      %p56 = scmp.eq.s32.totalorder %s30, 0
      %p57 = por %p55, %p56
      %s59 = sadd.s32 %s58, 1
      %p62 = scmp.eq.s32.totalorder %s24, 1
      %p63 = scmp.ne.s32.totalorder %s58, %s60
      %p64 = scmp.eq.s32.totalorder %s24, 0
      %p65 = por %p63, %p64
      %p66 = scmp.ne.s32.totalorder %s58, %s60
      %p67 = scmp.eq.s32.totalorder %s29, 1
      %p68 = por %p66, %p67
      %p69 = scmp.ne.s32.totalorder %s60, %s61
      %p70 = scmp.eq.s32.totalorder %s29, 0
      %p71 = por %p69, %p70
      %p72 = scmp.ne.s32.totalorder %s60, %s61
      %p73 = scmp.eq.s32.totalorder %s30, 1
      %p74 = por %p72, %p73
      %p76 = scmp.ne.s32.totalorder %s61, %s75
      %p77 = scmp.eq.s32.totalorder %s30, 0
      %p78 = por %p76, %p77
      %s80 = sadd.s32 %s79, 1
      %p83 = scmp.eq.s32.totalorder %s24, 1
      %p84 = scmp.ne.s32.totalorder %s79, %s81
      %p85 = scmp.eq.s32.totalorder %s24, 0
      %p86 = por %p84, %p85
      %p87 = scmp.ne.s32.totalorder %s79, %s81
      %p88 = scmp.eq.s32.totalorder %s29, 1
      %p89 = por %p87, %p88
      %p90 = scmp.ne.s32.totalorder %s81, %s82
      %p91 = scmp.eq.s32.totalorder %s29, 0
      %p92 = por %p90, %p91
      %p93 = scmp.ne.s32.totalorder %s81, %s82
      %p94 = scmp.eq.s32.totalorder %s30, 1
      %p95 = por %p93, %p94
      %p97 = scmp.ne.s32.totalorder %s82, %s96
      %p98 = scmp.eq.s32.totalorder %s30, 0
      %p99 = por %p97, %p98
      %s101 = sadd.s32 %s100, 1
      %p104 = scmp.eq.s32.totalorder %s24, 1
      %p105 = scmp.ne.s32.totalorder %s100, %s102
      %p106 = scmp.eq.s32.totalorder %s24, 0
      %p107 = por %p105, %p106
      %p108 = scmp.ne.s32.totalorder %s100, %s102
      %p109 = scmp.eq.s32.totalorder %s29, 1
      %p110 = por %p108, %p109
      %p111 = scmp.ne.s32.totalorder %s102, %s103
      %p112 = scmp.eq.s32.totalorder %s29, 0
      %p113 = por %p111, %p112
      %p114 = scmp.ne.s32.totalorder %s102, %s103
      %p115 = scmp.eq.s32.totalorder %s30, 1
      %p116 = por %p114, %p115
      %p118 = scmp.ne.s32.totalorder %s103, %s117
      %p119 = scmp.eq.s32.totalorder %s30, 0
      %p120 = por %p118, %p119
      %s122 = sadd.s32 %s121, 1
      %p125 = scmp.eq.s32.totalorder %s24, 1
      %p126 = scmp.ne.s32.totalorder %s121, %s123
      %p127 = scmp.eq.s32.totalorder %s24, 0
      %p128 = por %p126, %p127
      %p129 = scmp.ne.s32.totalorder %s121, %s123
      %p130 = scmp.eq.s32.totalorder %s29, 1
      %p131 = por %p129, %p130
      %p132 = scmp.ne.s32.totalorder %s123, %s124
      %p133 = scmp.eq.s32.totalorder %s29, 0
      %p134 = por %p132, %p133
      %p135 = scmp.ne.s32.totalorder %s123, %s124
      %p136 = scmp.eq.s32.totalorder %s30, 1
      %p137 = por %p135, %p136
      %p139 = scmp.ne.s32.totalorder %s124, %s138
      %p140 = scmp.eq.s32.totalorder %s30, 0
      %p141 = por %p139, %p140
      %s143 = sadd.s32 %s142, 1
      %p146 = scmp.eq.s32.totalorder %s24, 1
      %p147 = scmp.ne.s32.totalorder %s142, %s144
      %p148 = scmp.eq.s32.totalorder %s24, 0
      %p149 = por %p147, %p148
      %p150 = scmp.ne.s32.totalorder %s142, %s144
      %p151 = scmp.eq.s32.totalorder %s29, 1
      %p152 = por %p150, %p151
      %p153 = scmp.ne.s32.totalorder %s144, %s145
      %p154 = scmp.eq.s32.totalorder %s29, 0
      %p155 = por %p153, %p154
      %p156 = scmp.ne.s32.totalorder %s144, %s145
      %p157 = scmp.eq.s32.totalorder %s30, 1
      %p158 = por %p156, %p157
      %p160 = scmp.ne.s32.totalorder %s145, %s159
      %p161 = scmp.eq.s32.totalorder %s30, 0
      %p162 = por %p160, %p161
      %s164 = sadd.s32 %s163, 1
      %p167 = scmp.eq.s32.totalorder %s24, 1
      %p168 = scmp.ne.s32.totalorder %s163, %s165
      %p169 = scmp.eq.s32.totalorder %s24, 0
      %p170 = por %p168, %p169
      %p171 = scmp.ne.s32.totalorder %s163, %s165
      %p172 = scmp.eq.s32.totalorder %s29, 1
      %p173 = por %p171, %p172
      %p174 = scmp.ne.s32.totalorder %s165, %s166
      %p175 = scmp.eq.s32.totalorder %s29, 0
      %p176 = por %p174, %p175
      %p177 = scmp.ne.s32.totalorder %s165, %s166
      %p178 = scmp.eq.s32.totalorder %s30, 1
      %p179 = por %p177, %p178
      %p181 = scmp.ne.s32.totalorder %s166, %s180
      %p182 = scmp.eq.s32.totalorder %s30, 0
      %p183 = por %p181, %p182
      %s185 = sadd.s32 %s184, 1
      %p188 = scmp.eq.s32.totalorder %s24, 1
      %p189 = scmp.ne.s32.totalorder %s184, %s186
      %p190 = scmp.eq.s32.totalorder %s24, 0
      %p191 = por %p189, %p190
      %p192 = scmp.ne.s32.totalorder %s184, %s186
      %p193 = scmp.eq.s32.totalorder %s29, 1
      %p194 = por %p192, %p193
      %p195 = scmp.ne.s32.totalorder %s186, %s187
      %p196 = scmp.eq.s32.totalorder %s29, 0
      %p197 = por %p195, %p196
      %p198 = scmp.ne.s32.totalorder %s186, %s187
      %p199 = scmp.eq.s32.totalorder %s30, 1
      %p200 = por %p198, %p199
      %p202 = scmp.ne.s32.totalorder %s187, %s201
      %p203 = scmp.eq.s32.totalorder %s30, 0
      %p204 = por %p202, %p203
      %s206 = sadd.s32 %s205, 1
      %p209 = scmp.eq.s32.totalorder %s24, 1
      %p210 = scmp.ne.s32.totalorder %s205, %s207
      %p211 = scmp.eq.s32.totalorder %s24, 0
      %p212 = por %p210, %p211
      %p213 = scmp.ne.s32.totalorder %s205, %s207
      %p214 = scmp.eq.s32.totalorder %s29, 1
      %p215 = por %p213, %p214
      %p216 = scmp.ne.s32.totalorder %s207, %s208
      %p217 = scmp.eq.s32.totalorder %s29, 0
      %p218 = por %p216, %p217
      %p219 = scmp.ne.s32.totalorder %s207, %s208
      %p220 = scmp.eq.s32.totalorder %s30, 1
      %p221 = por %p219, %p220
      %p223 = scmp.ne.s32.totalorder %s208, %s222
      %p224 = scmp.eq.s32.totalorder %s30, 0
      %p225 = por %p223, %p224
      %s226 = ssub.s32 %s24, %s31
      %p227 = scmp.eq.s32.totalorder %s226, 0
      %s229 = sadd.s32 %s228, 1
      %s230 = scalar_select %p227, %s228, %s229
      %p233 = pneg %p227
      %p234 = scmp.eq.s32.totalorder %s24, 1
      %p235 = por %p233, %p234
      %p236 = scmp.ne.s32.totalorder %s228, %s231
      %p237 = scmp.eq.s32.totalorder %s24, 0
      %p238 = por %p236, %p237
      %p239 = scmp.ne.s32.totalorder %s228, %s231
      %p240 = scmp.eq.s32.totalorder %s29, 1
      %p241 = por %p239, %p240
      %p242 = scmp.ne.s32.totalorder %s231, %s232
      %p243 = scmp.eq.s32.totalorder %s29, 0
      %p244 = por %p242, %p243
      %p245 = scmp.ne.s32.totalorder %s231, %s232
      %p246 = scmp.eq.s32.totalorder %s30, 1
      %p247 = por %p245, %p246
      %p249 = scmp.ne.s32.totalorder %s232, %s248
      %p250 = scmp.eq.s32.totalorder %s30, 0
      %p251 = por %p249, %p250
      %p252 = scmp.le.s32.totalorder 1, %s24
      %p253 = scmp.lt.s32.totalorder %s24, 3
      %p254 = pnand %p252, %p253
      %p255 = pneg %p254
      // Predicated region
      $region9: #{multidomain_conv2d.1} parent=5 // pred_check
        _
      $region10: #{multidomain_conv2d.1} parent=5 // pred_check_branch
        %257 = sbr.rel (%p254) target = $region12
      $region11: #{multidomain_conv2d.1} parent=5 // pred_region
        %s258 = ssub.s32 %s24, 1
        // Predicated region
        $region13: #{multidomain_conv2d.1} parent=11 // pred_check
          %p259 = pneg %p71
        $region14: #{multidomain_conv2d.1} parent=11 // pred_check_branch
          %261 = sbr.rel (%p259) target = $region16
        $region15: #{multidomain_conv2d.1} parent=11 // pred_region
          _
        $region16: #{multidomain_conv2d.1} parent=11 // pred_fallthru
          _
        // Predicated region
        $region17: #{multidomain_conv2d.1} parent=11 // pred_check
          %p262 = pneg %p92
        $region18: #{multidomain_conv2d.1} parent=11 // pred_check_branch
          %264 = sbr.rel (%p262) target = $region20
        $region19: #{multidomain_conv2d.1} parent=11 // pred_region
          _
        $region20: #{multidomain_conv2d.1} parent=11 // pred_fallthru
          _
        // Predicated region
        $region21: #{multidomain_conv2d.1} parent=11 // pred_check
          %p265 = pneg %p113
        $region22: #{multidomain_conv2d.1} parent=11 // pred_check_branch
          %267 = sbr.rel (%p265) target = $region24
        $region23: #{multidomain_conv2d.1} parent=11 // pred_region
          _
        $region24: #{multidomain_conv2d.1} parent=11 // pred_fallthru
          _
        // Predicated region
        $region25: #{multidomain_conv2d.1} parent=11 // pred_check
          %p268 = pneg %p134
        $region26: #{multidomain_conv2d.1} parent=11 // pred_check_branch
          %270 = sbr.rel (%p268) target = $region28
        $region27: #{multidomain_conv2d.1} parent=11 // pred_region
          _
        $region28: #{multidomain_conv2d.1} parent=11 // pred_fallthru
          _
        // Predicated region
        $region29: #{multidomain_conv2d.1} parent=11 // pred_check
          %p271 = pneg %p155
        $region30: #{multidomain_conv2d.1} parent=11 // pred_check_branch
          %273 = sbr.rel (%p271) target = $region32
        $region31: #{multidomain_conv2d.1} parent=11 // pred_region
          %275 = vsyncadd [#allocation7], 0
          %s277 = sshll.u32 %s5, 4
          %s278 = int_to_ptr.vmem [resolvable:$true] %s277
          %280 = dma.vmem_to_smem %s278, 16, [#allocation8], [#allocation7]
        $region32: #{multidomain_conv2d.1} parent=11 // pred_fallthru
          _
        // Predicated region
        $region33: #{multidomain_conv2d.1} parent=11 // pred_check
          %p281 = pneg %p176
        $region34: #{multidomain_conv2d.1} parent=11 // pred_check_branch
          %283 = sbr.rel (%p281) target = $region36
        $region35: #{multidomain_conv2d.1} parent=11 // pred_region
          %285 = vsyncadd [#allocation10], 0
          %s287 = sshll.u32 %s6, 4
          %s288 = int_to_ptr.vmem [resolvable:$true] %s287
          %290 = dma.vmem_to_smem %s288, 16, [#allocation9], [#allocation10]
        $region36: #{multidomain_conv2d.1} parent=11 // pred_fallthru
          _
        // Predicated region
        $region37: #{multidomain_conv2d.1} parent=11 // pred_check
          %p291 = pneg %p197
        $region38: #{multidomain_conv2d.1} parent=11 // pred_check_branch
          %293 = sbr.rel (%p291) target = $region40
        $region39: #{multidomain_conv2d.1} parent=11 // pred_region
          %295 = vsyncadd [#allocation10], 0
          %s297 = sshll.u32 %s7, 4
          %s298 = int_to_ptr.vmem [resolvable:$true] %s297
          %300 = dma.vmem_to_smem %s298, 16, [#allocation11], [#allocation10]
        $region40: #{multidomain_conv2d.1} parent=11 // pred_fallthru
          _
        // Predicated region
        $region41: #{multidomain_conv2d.1} parent=11 // pred_check
          %p301 = pneg %p218
        $region42: #{multidomain_conv2d.1} parent=11 // pred_check_branch
          %303 = sbr.rel (%p301) target = $region44
        $region43: #{multidomain_conv2d.1} parent=11 // pred_region
          %305 = vsyncadd [#allocation13], 0
          %s307 = sshll.u32 %s8, 4
          %s308 = int_to_ptr.vmem [resolvable:$true] %s307
          %310 = dma.vmem_to_smem %s308, 16, [#allocation12], [#allocation13]
        $region44: #{multidomain_conv2d.1} parent=11 // pred_fallthru
          _
      $region12: #{multidomain_conv2d.1} parent=5 // pred_fallthru
        _
      %p311 = scmp.lt.s32.totalorder %s24, 2
      // Predicated region
      $region45: #{multidomain_conv2d.1} parent=5 // pred_check
        %p312 = pneg %p311
      $region46: #{multidomain_conv2d.1} parent=5 // pred_check_branch
        %314 = sbr.rel (%p312) target = $region48
      $region47: #{multidomain_conv2d.1} parent=5 // pred_region
        // Predicated region
        $region49: #{multidomain_conv2d.1} parent=47 // pred_check
          %p315 = pneg %p44
        $region50: #{multidomain_conv2d.1} parent=47 // pred_check_branch
          %317 = sbr.rel (%p315) target = $region52
        $region51: #{multidomain_conv2d.1} parent=47 // pred_region
          %s318 = sand.u32 %s34, 1
          %s319 = scalar_lea.sflag [#allocation5], %s318
          %s320 = sand.u32 %s34, 1
          %s321 = smul.addr %s320, 64
          %s322 = scalar_lea.vmem [#allocation4], %s321
          %324 = vsyncadd %s319, 0
          %s325 = smul.addr %s24, 8
          %s326 = smul.addr %s325, 8
          %s327 = scalar_lea.hbm %s0, %s326
          %s328 = sshll.u32 %s327, 4
          %s329 = int_to_ptr.hbm [resolvable:$true] %s328
          %s330 = sshll.u32 %s322, 4
          %s331 = int_to_ptr.vmem [resolvable:$true] %s330
          %336 = dma.hbm_to_vmem [thread:$0]  %s329, 1024, %s331, %s319, 128, 128, 8
        $region52: #{multidomain_conv2d.1} parent=47 // pred_fallthru
          _
      $region48: #{multidomain_conv2d.1} parent=5 // pred_fallthru
        _
      %p337 = scmp.le.s32.totalorder 1, %s24
      %p338 = scmp.lt.s32.totalorder %s24, 3
      %p339 = pnand %p337, %p338
      %p340 = pneg %p339
      // Predicated region
      $region53: #{multidomain_conv2d.1} parent=5 // pred_check
        _
      $region54: #{multidomain_conv2d.1} parent=5 // pred_check_branch
        %342 = sbr.rel (%p339) target = $region56
      $region55: #{multidomain_conv2d.1} parent=5 // pred_region
        %s343 = ssub.s32 %s24, 1
        %s344 = sand.u32 %s37, 1
        %s345 = scalar_lea.sflag [#allocation5], %s344
        %s346 = sand.u32 %s37, 1
        %s347 = smul.addr %s346, 64
        %s348 = scalar_lea.vmem [#allocation4], %s347
        // Predicated region
        $region57: #{multidomain_conv2d.1} parent=55 // pred_check
          %p349 = pneg %p50
        $region58: #{multidomain_conv2d.1} parent=55 // pred_check_branch
          %351 = sbr.rel (%p349) target = $region60
        $region59: #{multidomain_conv2d.1} parent=55 // pred_region
          %353 = dma.done %s345, 1024
        $region60: #{multidomain_conv2d.1} parent=55 // pred_fallthru
          _
        // Predicated region
        $region61: #{multidomain_conv2d.1} parent=55 // pred_check
          %p354 = pneg %p155
        $region62: #{multidomain_conv2d.1} parent=55 // pred_check_branch
          %356 = sbr.rel (%p354) target = $region64
        $region63: #{multidomain_conv2d.1} parent=55 // pred_region
          %358 = dma.done [#allocation7], 16
        $region64: #{multidomain_conv2d.1} parent=55 // pred_fallthru
          _
        // Predicated region
        $region65: #{multidomain_conv2d.1} parent=55 // pred_check
          %p359 = pneg %p176
        $region66: #{multidomain_conv2d.1} parent=55 // pred_check_branch
          %361 = sbr.rel (%p359) target = $region68
        $region67: #{multidomain_conv2d.1} parent=55 // pred_region
          %363 = dma.done [#allocation10], 16
        $region68: #{multidomain_conv2d.1} parent=55 // pred_fallthru
          _
        // Predicated region
        $region69: #{multidomain_conv2d.1} parent=55 // pred_check
          %p364 = pneg %p197
        $region70: #{multidomain_conv2d.1} parent=55 // pred_check_branch
          %366 = sbr.rel (%p364) target = $region72
        $region71: #{multidomain_conv2d.1} parent=55 // pred_region
          %368 = dma.done [#allocation10], 16
        $region72: #{multidomain_conv2d.1} parent=55 // pred_fallthru
          _
        // Predicated region
        $region73: #{multidomain_conv2d.1} parent=55 // pred_check
          %p369 = pneg %p218
        $region74: #{multidomain_conv2d.1} parent=55 // pred_check_branch
          %371 = sbr.rel (%p369) target = $region76
        $region75: #{multidomain_conv2d.1} parent=55 // pred_region
          %373 = dma.done [#allocation13], 16
        $region76: #{multidomain_conv2d.1} parent=55 // pred_fallthru
          _
        %374 = sfence
        %s375 = sand.u32 %s37, 1
        %s376 = scalar_lea.sflag [#allocation5], %s375
        %s377 = sand.u32 %s37, 1
        %s378 = smul.addr %s377, 64
        %s379 = scalar_lea.vmem [#allocation4], %s378
        %p380 = pneg %p50
        %p381 = pneg %p47
        %p382 = pneg %p71
        %p383 = pneg %p68
        %p384 = pneg %p92
        %p385 = pneg %p89
        %p386 = pneg %p113
        %p387 = pneg %p110
        %p388 = pneg %p134
        %p389 = pneg %p131
        %p390 = pneg %p155
        %p391 = pneg %p152
        %p392 = pneg %p176
        %p393 = pneg %p173
        %p394 = pneg %p197
        %p395 = pneg %p194
        %p396 = pneg %p218
        %p397 = pneg %p215
        %p398 = pneg %p244
        %p399 = pneg %p241
        %s400 = sand.u32 %s231, 1
        %s401 = scalar_lea.sflag [#allocation6], %s400
        %s402 = sand.u32 %s231, 1
        %s403 = smul.addr %s402, 64
        %s404 = scalar_lea.vmem [#allocation14], %s403
        %v406 = vld [vmem:[%s348] sm:$0xff]
        %v407 = vld [vmem:[%s348 + $0x8] sm:$0xff]
        %v408 = vld [vmem:[%s348 + $0x10] sm:$0xff]
        %v409 = vld [vmem:[%s348 + $0x18] sm:$0xff]
        %v410 = vld [vmem:[%s348 + $0x20] sm:$0xff]
        %v411 = vld [vmem:[%s348 + $0x28] sm:$0xff]
        %v412 = vld [vmem:[%s348 + $0x30] sm:$0xff]
        %v413 = vld [vmem:[%s348 + $0x38] sm:$0xff]
        %vm414 = vcmask 146432
        %415 = vst.msk [vmem:[#allocation2] sm:$0xff] %vm414, 0.0
        %416 = vst.msk [vmem:[#allocation2 + $0x8] sm:$0xff] %vm414, 0.0
        %vm417 = vcmask 140288
        %418 = vst.msk [vmem:[#allocation2 + $0x10] sm:$0x3] %vm417, 0.0
        %419 = vst.msk [vmem:[#allocation2 + $0x18] sm:$0xff] %vm414, 0.0
        %420 = vst.msk [vmem:[#allocation2 + $0x20] sm:$0xff] %vm414, 0.0
        %421 = vst.msk [vmem:[#allocation2 + $0x28] sm:$0x3] %vm417, 0.0
        %422 = vst.msk [vmem:[#allocation2 + $0x30] sm:$0xff] %vm414, 0.0
        %423 = vst.msk [vmem:[#allocation2 + $0x38] sm:$0xff] %vm414, 0.0
        %424 = vst.msk [vmem:[#allocation2 + $0x40] sm:$0x3] %vm417, 0.0
        %425 = vst.msk [vmem:[#allocation2 + $0x48] sm:$0xff] %vm414, 0.0
        %426 = vst.msk [vmem:[#allocation2 + $0x50] sm:$0xff] %vm414, 0.0
        %427 = vst.msk [vmem:[#allocation2 + $0x58] sm:$0x3] %vm417, 0.0
        %436 = vrot.lane.b32.xlu0 %v406, 1
        %v437 = vpop.permute.xlu0 %436
        %438 = vrot.lane.b32.xlu0 %v407, 1
        %v439 = vpop.permute.xlu0 %438
        %440 = vrot.lane.b32.xlu0 %v408, 1
        %v441 = vpop.permute.xlu0 %440
        %442 = vrot.lane.b32.xlu0 %v409, 1
        %v443 = vpop.permute.xlu0 %442
        %444 = vrot.lane.b32.xlu0 %v410, 1
        %v445 = vpop.permute.xlu0 %444
        %446 = vrot.lane.b32.xlu0 %v411, 1
        %v447 = vpop.permute.xlu0 %446
        %448 = vrot.lane.b32.xlu0 %v412, 1
        %v449 = vpop.permute.xlu0 %448
        %450 = vrot.lane.b32.xlu0 %v413, 1
        %v451 = vpop.permute.xlu0 %450
        %vm460 = vcmask 138248
        %461 = vst.msk [vmem:[#allocation2 + $0x1] sm:$0xff] %vm460, %v437
        %462 = vst.msk [vmem:[#allocation2 + $0x9] sm:$0xff] %vm460, %v439
        %463 = vst.msk [vmem:[#allocation2 + $0x19] sm:$0xff] %vm460, %v441
        %464 = vst.msk [vmem:[#allocation2 + $0x21] sm:$0xff] %vm460, %v443
        %465 = vst.msk [vmem:[#allocation2 + $0x31] sm:$0xff] %vm460, %v445
        %466 = vst.msk [vmem:[#allocation2 + $0x39] sm:$0xff] %vm460, %v447
        %467 = vst.msk [vmem:[#allocation2 + $0x49] sm:$0xff] %vm460, %v449
        %468 = vst.msk [vmem:[#allocation2 + $0x51] sm:$0xff] %vm460, %v451
        %v469 = vld [vmem:[#allocation2] sm:$0xff]
        %v470 = vld [vmem:[#allocation2 + $0x8] sm:$0xff]
        %s471 = sld [smem:[#allocation9]]
        %v472 = vstv %s471
        %v473 = vmul.f32 %v472, %v469
        %v474 = vmul.f32 %v472, %v470
        %v475 = vadd.f32 %v473, 0.0
        %v476 = vadd.f32 %v474, 0.0
        %s477 = sld [smem:[#allocation9 + $0x24]]
        %v478 = vstv %s477
        %v479 = vmul.f32 %v478, %v469
        %v480 = vmul.f32 %v478, %v470
        %v481 = vadd.f32 %v479, 0.0
        %v482 = vadd.f32 %v480, 0.0
        %s483 = sld [smem:[#allocation9 + $0x1]]
        %v484 = vstv %s483
        %v485 = vmul.f32 %v484, %v469
        %v486 = vmul.f32 %v484, %v470
        %489 = vrot.lane.b32.xlu0 %v485, 127
        %v490 = vpop.permute.xlu0 %489
        %491 = vrot.lane.b32.xlu0 %v486, 127
        %v492 = vpop.permute.xlu0 %491
        %v495 = vadd.f32 %v475, %v490
        %v496 = vadd.f32 %v476, %v492
        %s497 = sld [smem:[#allocation9 + $0x25]]
        %v498 = vstv %s497
        %v499 = vmul.f32 %v498, %v469
        %v500 = vmul.f32 %v498, %v470
        %503 = vrot.lane.b32.xlu0 %v499, 127
        %v504 = vpop.permute.xlu0 %503
        %505 = vrot.lane.b32.xlu0 %v500, 127
        %v506 = vpop.permute.xlu0 %505
        %v509 = vadd.f32 %v481, %v504
        %v510 = vadd.f32 %v482, %v506
        %s511 = sld [smem:[#allocation9 + $0x2]]
        %v512 = vstv %s511
        %v513 = vmul.f32 %v512, %v469
        %v514 = vmul.f32 %v512, %v470
        %517 = vrot.lane.b32.xlu0 %v513, 126
        %v518 = vpop.permute.xlu0 %517
        %519 = vrot.lane.b32.xlu0 %v514, 126
        %v520 = vpop.permute.xlu0 %519
        %v523 = vadd.f32 %v495, %v518
        %v524 = vadd.f32 %v496, %v520
        %s525 = sld [smem:[#allocation9 + $0x26]]
        %v526 = vstv %s525
        %v527 = vmul.f32 %v526, %v469
        %v528 = vmul.f32 %v526, %v470
        %531 = vrot.lane.b32.xlu0 %v527, 126
        %v532 = vpop.permute.xlu0 %531
        %533 = vrot.lane.b32.xlu0 %v528, 126
        %v534 = vpop.permute.xlu0 %533
        %v537 = vadd.f32 %v509, %v532
        %v538 = vadd.f32 %v510, %v534
        %v539 = vld [vmem:[#allocation2 + $0x1] sm:$0xff]
        %v540 = vld [vmem:[#allocation2 + $0x9] sm:$0xff]
        %s541 = sld [smem:[#allocation9 + $0x3]]
        %v542 = vstv %s541
        %v543 = vmul.f32 %v542, %v539
        %v544 = vmul.f32 %v542, %v540
        %v545 = vadd.f32 %v523, %v543
        %v546 = vadd.f32 %v524, %v544
        %s547 = sld [smem:[#allocation9 + $0x27]]
        %v548 = vstv %s547
        %v549 = vmul.f32 %v548, %v539
        %v550 = vmul.f32 %v548, %v540
        %v551 = vadd.f32 %v537, %v549
        %v552 = vadd.f32 %v538, %v550
        %s553 = sld [smem:[#allocation9 + $0x4]]
        %v554 = vstv %s553
        %v555 = vmul.f32 %v554, %v539
        %v556 = vmul.f32 %v554, %v540
        %559 = vrot.lane.b32.xlu0 %v555, 127
        %v560 = vpop.permute.xlu0 %559
        %561 = vrot.lane.b32.xlu0 %v556, 127
        %v562 = vpop.permute.xlu0 %561
        %v565 = vadd.f32 %v545, %v560
        %v566 = vadd.f32 %v546, %v562
        %s567 = sld [smem:[#allocation9 + $0x28]]
        %v568 = vstv %s567
        %v569 = vmul.f32 %v568, %v539
        %v570 = vmul.f32 %v568, %v540
        %573 = vrot.lane.b32.xlu0 %v569, 127
        %v574 = vpop.permute.xlu0 %573
        %575 = vrot.lane.b32.xlu0 %v570, 127
        %v576 = vpop.permute.xlu0 %575
        %v579 = vadd.f32 %v551, %v574
        %v580 = vadd.f32 %v552, %v576
        %s581 = sld [smem:[#allocation9 + $0x5]]
        %v582 = vstv %s581
        %v583 = vmul.f32 %v582, %v539
        %v584 = vmul.f32 %v582, %v540
        %587 = vrot.lane.b32.xlu0 %v583, 126
        %v588 = vpop.permute.xlu0 %587
        %589 = vrot.lane.b32.xlu0 %v584, 126
        %v590 = vpop.permute.xlu0 %589
        %v593 = vadd.f32 %v565, %v588
        %v594 = vadd.f32 %v566, %v590
        %s595 = sld [smem:[#allocation9 + $0x29]]
        %v596 = vstv %s595
        %v597 = vmul.f32 %v596, %v539
        %v598 = vmul.f32 %v596, %v540
        %601 = vrot.lane.b32.xlu0 %v597, 126
        %v602 = vpop.permute.xlu0 %601
        %603 = vrot.lane.b32.xlu0 %v598, 126
        %v604 = vpop.permute.xlu0 %603
        %v607 = vadd.f32 %v579, %v602
        %v608 = vadd.f32 %v580, %v604
        %v609 = vld [vmem:[#allocation2 + $0x2] sm:$0xff]
        %v610 = vld [vmem:[#allocation2 + $0xa] sm:$0xff]
        %s611 = sld [smem:[#allocation9 + $0x6]]
        %v612 = vstv %s611
        %v613 = vmul.f32 %v612, %v609
        %v614 = vmul.f32 %v612, %v610
        %v615 = vadd.f32 %v593, %v613
        %v616 = vadd.f32 %v594, %v614
        %s617 = sld [smem:[#allocation9 + $0x2a]]
        %v618 = vstv %s617
        %v619 = vmul.f32 %v618, %v609
        %v620 = vmul.f32 %v618, %v610
        %v621 = vadd.f32 %v607, %v619
        %v622 = vadd.f32 %v608, %v620
        %s623 = sld [smem:[#allocation9 + $0x7]]
        %v624 = vstv %s623
        %v625 = vmul.f32 %v624, %v609
        %v626 = vmul.f32 %v624, %v610
        %629 = vrot.lane.b32.xlu0 %v625, 127
        %v630 = vpop.permute.xlu0 %629
        %631 = vrot.lane.b32.xlu0 %v626, 127
        %v632 = vpop.permute.xlu0 %631
        %v635 = vadd.f32 %v615, %v630
        %v636 = vadd.f32 %v616, %v632
        %s637 = sld [smem:[#allocation9 + $0x2b]]
        %v638 = vstv %s637
        %v639 = vmul.f32 %v638, %v609
        %v640 = vmul.f32 %v638, %v610
        %643 = vrot.lane.b32.xlu0 %v639, 127
        %v644 = vpop.permute.xlu0 %643
        %645 = vrot.lane.b32.xlu0 %v640, 127
        %v646 = vpop.permute.xlu0 %645
        %v649 = vadd.f32 %v621, %v644
        %v650 = vadd.f32 %v622, %v646
        %s651 = sld [smem:[#allocation9 + $0x8]]
        %v652 = vstv %s651
        %v653 = vmul.f32 %v652, %v609
        %v654 = vmul.f32 %v652, %v610
        %657 = vrot.lane.b32.xlu0 %v653, 126
        %v658 = vpop.permute.xlu0 %657
        %659 = vrot.lane.b32.xlu0 %v654, 126
        %v660 = vpop.permute.xlu0 %659
        %v663 = vadd.f32 %v635, %v658
        %v664 = vadd.f32 %v636, %v660
        %s665 = sld [smem:[#allocation9 + $0x2c]]
        %v666 = vstv %s665
        %v667 = vmul.f32 %v666, %v609
        %v668 = vmul.f32 %v666, %v610
        %671 = vrot.lane.b32.xlu0 %v667, 126
        %v672 = vpop.permute.xlu0 %671
        %673 = vrot.lane.b32.xlu0 %v668, 126
        %v674 = vpop.permute.xlu0 %673
        %v677 = vadd.f32 %v649, %v672
        %v678 = vadd.f32 %v650, %v674
        %s679 = scalar_lea.vmem [#allocation2], 24
        %v680 = vld [vmem:[%s679] sm:$0xff]
        %v681 = vld [vmem:[%s679 + $0x8] sm:$0xff]
        %s682 = sld [smem:[#allocation9 + $0x9]]
        %v683 = vstv %s682
        %v684 = vmul.f32 %v683, %v680
        %v685 = vmul.f32 %v683, %v681
        %v686 = vadd.f32 %v663, %v684
        %v687 = vadd.f32 %v664, %v685
        %s688 = sld [smem:[#allocation9 + $0x2d]]
        %v689 = vstv %s688
        %v690 = vmul.f32 %v689, %v680
        %v691 = vmul.f32 %v689, %v681
        %v692 = vadd.f32 %v677, %v690
        %v693 = vadd.f32 %v678, %v691
        %s694 = sld [smem:[#allocation9 + $0xa]]
        %v695 = vstv %s694
        %v696 = vmul.f32 %v695, %v680
        %v697 = vmul.f32 %v695, %v681
        %700 = vrot.lane.b32.xlu0 %v696, 127
        %v701 = vpop.permute.xlu0 %700
        %702 = vrot.lane.b32.xlu0 %v697, 127
        %v703 = vpop.permute.xlu0 %702
        %v706 = vadd.f32 %v686, %v701
        %v707 = vadd.f32 %v687, %v703
        %s708 = sld [smem:[#allocation9 + $0x2e]]
        %v709 = vstv %s708
        %v710 = vmul.f32 %v709, %v680
        %v711 = vmul.f32 %v709, %v681
        %714 = vrot.lane.b32.xlu0 %v710, 127
        %v715 = vpop.permute.xlu0 %714
        %716 = vrot.lane.b32.xlu0 %v711, 127
        %v717 = vpop.permute.xlu0 %716
        %v720 = vadd.f32 %v692, %v715
        %v721 = vadd.f32 %v693, %v717
        %s722 = sld [smem:[#allocation9 + $0xb]]
        %v723 = vstv %s722
        %v724 = vmul.f32 %v723, %v680
        %v725 = vmul.f32 %v723, %v681
        %728 = vrot.lane.b32.xlu0 %v724, 126
        %v729 = vpop.permute.xlu0 %728
        %730 = vrot.lane.b32.xlu0 %v725, 126
        %v731 = vpop.permute.xlu0 %730
        %v734 = vadd.f32 %v706, %v729
        %v735 = vadd.f32 %v707, %v731
        %s736 = sld [smem:[#allocation9 + $0x2f]]
        %v737 = vstv %s736
        %v738 = vmul.f32 %v737, %v680
        %v739 = vmul.f32 %v737, %v681
        %742 = vrot.lane.b32.xlu0 %v738, 126
        %v743 = vpop.permute.xlu0 %742
        %744 = vrot.lane.b32.xlu0 %v739, 126
        %v745 = vpop.permute.xlu0 %744
        %v748 = vadd.f32 %v720, %v743
        %v749 = vadd.f32 %v721, %v745
        %v750 = vld [vmem:[%s679 + $0x1] sm:$0xff]
        %v751 = vld [vmem:[%s679 + $0x9] sm:$0xff]
        %s752 = sld [smem:[#allocation9 + $0xc]]
        %v753 = vstv %s752
        %v754 = vmul.f32 %v753, %v750
        %v755 = vmul.f32 %v753, %v751
        %v756 = vadd.f32 %v734, %v754
        %v757 = vadd.f32 %v735, %v755
        %s758 = sld [smem:[#allocation9 + $0x30]]
        %v759 = vstv %s758
        %v760 = vmul.f32 %v759, %v750
        %v761 = vmul.f32 %v759, %v751
        %v762 = vadd.f32 %v748, %v760
        %v763 = vadd.f32 %v749, %v761
        %s764 = sld [smem:[#allocation9 + $0xd]]
        %v765 = vstv %s764
        %v766 = vmul.f32 %v765, %v750
        %v767 = vmul.f32 %v765, %v751
        %770 = vrot.lane.b32.xlu0 %v766, 127
        %v771 = vpop.permute.xlu0 %770
        %772 = vrot.lane.b32.xlu0 %v767, 127
        %v773 = vpop.permute.xlu0 %772
        %v776 = vadd.f32 %v756, %v771
        %v777 = vadd.f32 %v757, %v773
        %s778 = sld [smem:[#allocation9 + $0x31]]
        %v779 = vstv %s778
        %v780 = vmul.f32 %v779, %v750
        %v781 = vmul.f32 %v779, %v751
        %784 = vrot.lane.b32.xlu0 %v780, 127
        %v785 = vpop.permute.xlu0 %784
        %786 = vrot.lane.b32.xlu0 %v781, 127
        %v787 = vpop.permute.xlu0 %786
        %v790 = vadd.f32 %v762, %v785
        %v791 = vadd.f32 %v763, %v787
        %s792 = sld [smem:[#allocation9 + $0xe]]
        %v793 = vstv %s792
        %v794 = vmul.f32 %v793, %v750
        %v795 = vmul.f32 %v793, %v751
        %798 = vrot.lane.b32.xlu0 %v794, 126
        %v799 = vpop.permute.xlu0 %798
        %800 = vrot.lane.b32.xlu0 %v795, 126
        %v801 = vpop.permute.xlu0 %800
        %v804 = vadd.f32 %v776, %v799
        %v805 = vadd.f32 %v777, %v801
        %s806 = sld [smem:[#allocation9 + $0x32]]
        %v807 = vstv %s806
        %v808 = vmul.f32 %v807, %v750
        %v809 = vmul.f32 %v807, %v751
        %812 = vrot.lane.b32.xlu0 %v808, 126
        %v813 = vpop.permute.xlu0 %812
        %814 = vrot.lane.b32.xlu0 %v809, 126
        %v815 = vpop.permute.xlu0 %814
        %v818 = vadd.f32 %v790, %v813
        %v819 = vadd.f32 %v791, %v815
        %v820 = vld [vmem:[%s679 + $0x2] sm:$0xff]
        %v821 = vld [vmem:[%s679 + $0xa] sm:$0xff]
        %s822 = sld [smem:[#allocation9 + $0xf]]
        %v823 = vstv %s822
        %v824 = vmul.f32 %v823, %v820
        %v825 = vmul.f32 %v823, %v821
        %v826 = vadd.f32 %v804, %v824
        %v827 = vadd.f32 %v805, %v825
        %s828 = sld [smem:[#allocation9 + $0x33]]
        %v829 = vstv %s828
        %v830 = vmul.f32 %v829, %v820
        %v831 = vmul.f32 %v829, %v821
        %v832 = vadd.f32 %v818, %v830
        %v833 = vadd.f32 %v819, %v831
        %s834 = sld [smem:[#allocation9 + $0x10]]
        %v835 = vstv %s834
        %v836 = vmul.f32 %v835, %v820
        %v837 = vmul.f32 %v835, %v821
        %840 = vrot.lane.b32.xlu0 %v836, 127
        %v841 = vpop.permute.xlu0 %840
        %842 = vrot.lane.b32.xlu0 %v837, 127
        %v843 = vpop.permute.xlu0 %842
        %v846 = vadd.f32 %v826, %v841
        %v847 = vadd.f32 %v827, %v843
        %s848 = sld [smem:[#allocation9 + $0x34]]
        %v849 = vstv %s848
        %v850 = vmul.f32 %v849, %v820
        %v851 = vmul.f32 %v849, %v821
        %854 = vrot.lane.b32.xlu0 %v850, 127
        %v855 = vpop.permute.xlu0 %854
        %856 = vrot.lane.b32.xlu0 %v851, 127
        %v857 = vpop.permute.xlu0 %856
        %v860 = vadd.f32 %v832, %v855
        %v861 = vadd.f32 %v833, %v857
        %s862 = sld [smem:[#allocation9 + $0x11]]
        %v863 = vstv %s862
        %v864 = vmul.f32 %v863, %v820
        %v865 = vmul.f32 %v863, %v821
        %868 = vrot.lane.b32.xlu0 %v864, 126
        %v869 = vpop.permute.xlu0 %868
        %870 = vrot.lane.b32.xlu0 %v865, 126
        %v871 = vpop.permute.xlu0 %870
        %v874 = vadd.f32 %v846, %v869
        %v875 = vadd.f32 %v847, %v871
        %s876 = sld [smem:[#allocation9 + $0x35]]
        %v877 = vstv %s876
        %v878 = vmul.f32 %v877, %v820
        %v879 = vmul.f32 %v877, %v821
        %882 = vrot.lane.b32.xlu0 %v878, 126
        %v883 = vpop.permute.xlu0 %882
        %884 = vrot.lane.b32.xlu0 %v879, 126
        %v885 = vpop.permute.xlu0 %884
        %v888 = vadd.f32 %v860, %v883
        %v889 = vadd.f32 %v861, %v885
        %s890 = scalar_lea.vmem [#allocation2], 48
        %v891 = vld [vmem:[%s890] sm:$0xff]
        %v892 = vld [vmem:[%s890 + $0x8] sm:$0xff]
        %s893 = sld [smem:[#allocation9 + $0x12]]
        %v894 = vstv %s893
        %v895 = vmul.f32 %v894, %v891
        %v896 = vmul.f32 %v894, %v892
        %v897 = vadd.f32 %v874, %v895
        %v898 = vadd.f32 %v875, %v896
        %s899 = sld [smem:[#allocation9 + $0x36]]
        %v900 = vstv %s899
        %v901 = vmul.f32 %v900, %v891
        %v902 = vmul.f32 %v900, %v892
        %v903 = vadd.f32 %v888, %v901
        %v904 = vadd.f32 %v889, %v902
        %s905 = sld [smem:[#allocation9 + $0x13]]
        %v906 = vstv %s905
        %v907 = vmul.f32 %v906, %v891
        %v908 = vmul.f32 %v906, %v892
        %911 = vrot.lane.b32.xlu0 %v907, 127
        %v912 = vpop.permute.xlu0 %911
        %913 = vrot.lane.b32.xlu0 %v908, 127
        %v914 = vpop.permute.xlu0 %913
        %v917 = vadd.f32 %v897, %v912
        %v918 = vadd.f32 %v898, %v914
        %s919 = sld [smem:[#allocation9 + $0x37]]
        %v920 = vstv %s919
        %v921 = vmul.f32 %v920, %v891
        %v922 = vmul.f32 %v920, %v892
        %925 = vrot.lane.b32.xlu0 %v921, 127
        %v926 = vpop.permute.xlu0 %925
        %927 = vrot.lane.b32.xlu0 %v922, 127
        %v928 = vpop.permute.xlu0 %927
        %v931 = vadd.f32 %v903, %v926
        %v932 = vadd.f32 %v904, %v928
        %s933 = sld [smem:[#allocation9 + $0x14]]
        %v934 = vstv %s933
        %v935 = vmul.f32 %v934, %v891
        %v936 = vmul.f32 %v934, %v892
        %939 = vrot.lane.b32.xlu0 %v935, 126
        %v940 = vpop.permute.xlu0 %939
        %941 = vrot.lane.b32.xlu0 %v936, 126
        %v942 = vpop.permute.xlu0 %941
        %v945 = vadd.f32 %v917, %v940
        %v946 = vadd.f32 %v918, %v942
        %s947 = sld [smem:[#allocation9 + $0x38]]
        %v948 = vstv %s947
        %v949 = vmul.f32 %v948, %v891
        %v950 = vmul.f32 %v948, %v892
        %953 = vrot.lane.b32.xlu0 %v949, 126
        %v954 = vpop.permute.xlu0 %953
        %955 = vrot.lane.b32.xlu0 %v950, 126
        %v956 = vpop.permute.xlu0 %955
        %v959 = vadd.f32 %v931, %v954
        %v960 = vadd.f32 %v932, %v956
        %v961 = vld [vmem:[%s890 + $0x1] sm:$0xff]
        %v962 = vld [vmem:[%s890 + $0x9] sm:$0xff]
        %s963 = sld [smem:[#allocation9 + $0x15]]
        %v964 = vstv %s963
        %v965 = vmul.f32 %v964, %v961
        %v966 = vmul.f32 %v964, %v962
        %v967 = vadd.f32 %v945, %v965
        %v968 = vadd.f32 %v946, %v966
        %s969 = sld [smem:[#allocation9 + $0x39]]
        %v970 = vstv %s969
        %v971 = vmul.f32 %v970, %v961
        %v972 = vmul.f32 %v970, %v962
        %v973 = vadd.f32 %v959, %v971
        %v974 = vadd.f32 %v960, %v972
        %s975 = sld [smem:[#allocation9 + $0x16]]
        %v976 = vstv %s975
        %v977 = vmul.f32 %v976, %v961
        %v978 = vmul.f32 %v976, %v962
        %981 = vrot.lane.b32.xlu0 %v977, 127
        %v982 = vpop.permute.xlu0 %981
        %983 = vrot.lane.b32.xlu0 %v978, 127
        %v984 = vpop.permute.xlu0 %983
        %v987 = vadd.f32 %v967, %v982
        %v988 = vadd.f32 %v968, %v984
        %s989 = sld [smem:[#allocation9 + $0x3a]]
        %v990 = vstv %s989
        %v991 = vmul.f32 %v990, %v961
        %v992 = vmul.f32 %v990, %v962
        %995 = vrot.lane.b32.xlu0 %v991, 127
        %v996 = vpop.permute.xlu0 %995
        %997 = vrot.lane.b32.xlu0 %v992, 127
        %v998 = vpop.permute.xlu0 %997
        %v1001 = vadd.f32 %v973, %v996
        %v1002 = vadd.f32 %v974, %v998
        %s1003 = sld [smem:[#allocation9 + $0x17]]
        %v1004 = vstv %s1003
        %v1005 = vmul.f32 %v1004, %v961
        %v1006 = vmul.f32 %v1004, %v962
        %1009 = vrot.lane.b32.xlu0 %v1005, 126
        %v1010 = vpop.permute.xlu0 %1009
        %1011 = vrot.lane.b32.xlu0 %v1006, 126
        %v1012 = vpop.permute.xlu0 %1011
        %v1015 = vadd.f32 %v987, %v1010
        %v1016 = vadd.f32 %v988, %v1012
        %s1017 = sld [smem:[#allocation9 + $0x3b]]
        %v1018 = vstv %s1017
        %v1019 = vmul.f32 %v1018, %v961
        %v1020 = vmul.f32 %v1018, %v962
        %1023 = vrot.lane.b32.xlu0 %v1019, 126
        %v1024 = vpop.permute.xlu0 %1023
        %1025 = vrot.lane.b32.xlu0 %v1020, 126
        %v1026 = vpop.permute.xlu0 %1025
        %v1029 = vadd.f32 %v1001, %v1024
        %v1030 = vadd.f32 %v1002, %v1026
        %v1031 = vld [vmem:[%s890 + $0x2] sm:$0xff]
        %v1032 = vld [vmem:[%s890 + $0xa] sm:$0xff]
        %s1033 = sld [smem:[#allocation9 + $0x18]]
        %v1034 = vstv %s1033
        %v1035 = vmul.f32 %v1034, %v1031
        %v1036 = vmul.f32 %v1034, %v1032
        %v1037 = vadd.f32 %v1015, %v1035
        %v1038 = vadd.f32 %v1016, %v1036
        %s1039 = sld [smem:[#allocation9 + $0x3c]]
        %v1040 = vstv %s1039
        %v1041 = vmul.f32 %v1040, %v1031
        %v1042 = vmul.f32 %v1040, %v1032
        %v1043 = vadd.f32 %v1029, %v1041
        %v1044 = vadd.f32 %v1030, %v1042
        %s1045 = sld [smem:[#allocation9 + $0x19]]
        %v1046 = vstv %s1045
        %v1047 = vmul.f32 %v1046, %v1031
        %v1048 = vmul.f32 %v1046, %v1032
        %1051 = vrot.lane.b32.xlu0 %v1047, 127
        %v1052 = vpop.permute.xlu0 %1051
        %1053 = vrot.lane.b32.xlu0 %v1048, 127
        %v1054 = vpop.permute.xlu0 %1053
        %v1057 = vadd.f32 %v1037, %v1052
        %v1058 = vadd.f32 %v1038, %v1054
        %s1059 = sld [smem:[#allocation9 + $0x3d]]
        %v1060 = vstv %s1059
        %v1061 = vmul.f32 %v1060, %v1031
        %v1062 = vmul.f32 %v1060, %v1032
        %1065 = vrot.lane.b32.xlu0 %v1061, 127
        %v1066 = vpop.permute.xlu0 %1065
        %1067 = vrot.lane.b32.xlu0 %v1062, 127
        %v1068 = vpop.permute.xlu0 %1067
        %v1071 = vadd.f32 %v1043, %v1066
        %v1072 = vadd.f32 %v1044, %v1068
        %s1073 = sld [smem:[#allocation9 + $0x1a]]
        %v1074 = vstv %s1073
        %v1075 = vmul.f32 %v1074, %v1031
        %v1076 = vmul.f32 %v1074, %v1032
        %1079 = vrot.lane.b32.xlu0 %v1075, 126
        %v1080 = vpop.permute.xlu0 %1079
        %1081 = vrot.lane.b32.xlu0 %v1076, 126
        %v1082 = vpop.permute.xlu0 %1081
        %v1085 = vadd.f32 %v1057, %v1080
        %v1086 = vadd.f32 %v1058, %v1082
        %s1087 = sld [smem:[#allocation9 + $0x3e]]
        %v1088 = vstv %s1087
        %v1089 = vmul.f32 %v1088, %v1031
        %v1090 = vmul.f32 %v1088, %v1032
        %1093 = vrot.lane.b32.xlu0 %v1089, 126
        %v1094 = vpop.permute.xlu0 %1093
        %1095 = vrot.lane.b32.xlu0 %v1090, 126
        %v1096 = vpop.permute.xlu0 %1095
        %v1099 = vadd.f32 %v1071, %v1094
        %v1100 = vadd.f32 %v1072, %v1096
        %s1101 = scalar_lea.vmem [#allocation2], 72
        %v1102 = vld [vmem:[%s1101] sm:$0xff]
        %v1103 = vld [vmem:[%s1101 + $0x8] sm:$0xff]
        %s1104 = sld [smem:[#allocation9 + $0x1b]]
        %v1105 = vstv %s1104
        %v1106 = vmul.f32 %v1105, %v1102
        %v1107 = vmul.f32 %v1105, %v1103
        %v1108 = vadd.f32 %v1085, %v1106
        %v1109 = vadd.f32 %v1086, %v1107
        %s1110 = sld [smem:[#allocation9 + $0x3f]]
        %v1111 = vstv %s1110
        %v1112 = vmul.f32 %v1111, %v1102
        %v1113 = vmul.f32 %v1111, %v1103
        %v1114 = vadd.f32 %v1099, %v1112
        %v1115 = vadd.f32 %v1100, %v1113
        %s1116 = sld [smem:[#allocation9 + $0x1c]]
        %v1117 = vstv %s1116
        %v1118 = vmul.f32 %v1117, %v1102
        %v1119 = vmul.f32 %v1117, %v1103
        %1122 = vrot.lane.b32.xlu0 %v1118, 127
        %v1123 = vpop.permute.xlu0 %1122
        %1124 = vrot.lane.b32.xlu0 %v1119, 127
        %v1125 = vpop.permute.xlu0 %1124
        %v1128 = vadd.f32 %v1108, %v1123
        %v1129 = vadd.f32 %v1109, %v1125
        %s1130 = sld [smem:[#allocation9 + $0x40]]
        %v1131 = vstv %s1130
        %v1132 = vmul.f32 %v1131, %v1102
        %v1133 = vmul.f32 %v1131, %v1103
        %1136 = vrot.lane.b32.xlu0 %v1132, 127
        %v1137 = vpop.permute.xlu0 %1136
        %1138 = vrot.lane.b32.xlu0 %v1133, 127
        %v1139 = vpop.permute.xlu0 %1138
        %v1142 = vadd.f32 %v1114, %v1137
        %v1143 = vadd.f32 %v1115, %v1139
        %s1144 = sld [smem:[#allocation9 + $0x1d]]
        %v1145 = vstv %s1144
        %v1146 = vmul.f32 %v1145, %v1102
        %v1147 = vmul.f32 %v1145, %v1103
        %1150 = vrot.lane.b32.xlu0 %v1146, 126
        %v1151 = vpop.permute.xlu0 %1150
        %1152 = vrot.lane.b32.xlu0 %v1147, 126
        %v1153 = vpop.permute.xlu0 %1152
        %v1156 = vadd.f32 %v1128, %v1151
        %v1157 = vadd.f32 %v1129, %v1153
        %s1158 = sld [smem:[#allocation9 + $0x41]]
        %v1159 = vstv %s1158
        %v1160 = vmul.f32 %v1159, %v1102
        %v1161 = vmul.f32 %v1159, %v1103
        %1164 = vrot.lane.b32.xlu0 %v1160, 126
        %v1165 = vpop.permute.xlu0 %1164
        %1166 = vrot.lane.b32.xlu0 %v1161, 126
        %v1167 = vpop.permute.xlu0 %1166
        %v1170 = vadd.f32 %v1142, %v1165
        %v1171 = vadd.f32 %v1143, %v1167
        %v1172 = vld [vmem:[%s1101 + $0x1] sm:$0xff]
        %v1173 = vld [vmem:[%s1101 + $0x9] sm:$0xff]
        %s1174 = sld [smem:[#allocation9 + $0x1e]]
        %v1175 = vstv %s1174
        %v1176 = vmul.f32 %v1175, %v1172
        %v1177 = vmul.f32 %v1175, %v1173
        %v1178 = vadd.f32 %v1156, %v1176
        %v1179 = vadd.f32 %v1157, %v1177
        %s1180 = sld [smem:[#allocation9 + $0x42]]
        %v1181 = vstv %s1180
        %v1182 = vmul.f32 %v1181, %v1172
        %v1183 = vmul.f32 %v1181, %v1173
        %v1184 = vadd.f32 %v1170, %v1182
        %v1185 = vadd.f32 %v1171, %v1183
        %s1186 = sld [smem:[#allocation9 + $0x1f]]
        %v1187 = vstv %s1186
        %v1188 = vmul.f32 %v1187, %v1172
        %v1189 = vmul.f32 %v1187, %v1173
        %1192 = vrot.lane.b32.xlu0 %v1188, 127
        %v1193 = vpop.permute.xlu0 %1192
        %1194 = vrot.lane.b32.xlu0 %v1189, 127
        %v1195 = vpop.permute.xlu0 %1194
        %v1198 = vadd.f32 %v1178, %v1193
        %v1199 = vadd.f32 %v1179, %v1195
        %s1200 = sld [smem:[#allocation9 + $0x43]]
        %v1201 = vstv %s1200
        %v1202 = vmul.f32 %v1201, %v1172
        %v1203 = vmul.f32 %v1201, %v1173
        %1206 = vrot.lane.b32.xlu0 %v1202, 127
        %v1207 = vpop.permute.xlu0 %1206
        %1208 = vrot.lane.b32.xlu0 %v1203, 127
        %v1209 = vpop.permute.xlu0 %1208
        %v1212 = vadd.f32 %v1184, %v1207
        %v1213 = vadd.f32 %v1185, %v1209
        %s1214 = sld [smem:[#allocation9 + $0x20]]
        %v1215 = vstv %s1214
        %v1216 = vmul.f32 %v1215, %v1172
        %v1217 = vmul.f32 %v1215, %v1173
        %1220 = vrot.lane.b32.xlu0 %v1216, 126
        %v1221 = vpop.permute.xlu0 %1220
        %1222 = vrot.lane.b32.xlu0 %v1217, 126
        %v1223 = vpop.permute.xlu0 %1222
        %v1226 = vadd.f32 %v1198, %v1221
        %v1227 = vadd.f32 %v1199, %v1223
        %s1228 = sld [smem:[#allocation9 + $0x44]]
        %v1229 = vstv %s1228
        %v1230 = vmul.f32 %v1229, %v1172
        %v1231 = vmul.f32 %v1229, %v1173
        %1234 = vrot.lane.b32.xlu0 %v1230, 126
        %v1235 = vpop.permute.xlu0 %1234
        %1236 = vrot.lane.b32.xlu0 %v1231, 126
        %v1237 = vpop.permute.xlu0 %1236
        %v1240 = vadd.f32 %v1212, %v1235
        %v1241 = vadd.f32 %v1213, %v1237
        %v1242 = vld [vmem:[%s1101 + $0x2] sm:$0xff]
        %v1243 = vld [vmem:[%s1101 + $0xa] sm:$0xff]
        %s1244 = sld [smem:[#allocation9 + $0x21]]
        %v1245 = vstv %s1244
        %v1246 = vmul.f32 %v1245, %v1242
        %v1247 = vmul.f32 %v1245, %v1243
        %v1248 = vadd.f32 %v1226, %v1246
        %v1249 = vadd.f32 %v1227, %v1247
        %s1250 = sld [smem:[#allocation9 + $0x45]]
        %v1251 = vstv %s1250
        %v1252 = vmul.f32 %v1251, %v1242
        %v1253 = vmul.f32 %v1251, %v1243
        %v1254 = vadd.f32 %v1240, %v1252
        %v1255 = vadd.f32 %v1241, %v1253
        %s1256 = sld [smem:[#allocation9 + $0x22]]
        %v1257 = vstv %s1256
        %v1258 = vmul.f32 %v1257, %v1242
        %v1259 = vmul.f32 %v1257, %v1243
        %1262 = vrot.lane.b32.xlu0 %v1258, 127
        %v1263 = vpop.permute.xlu0 %1262
        %1264 = vrot.lane.b32.xlu0 %v1259, 127
        %v1265 = vpop.permute.xlu0 %1264
        %v1268 = vadd.f32 %v1248, %v1263
        %v1269 = vadd.f32 %v1249, %v1265
        %s1270 = sld [smem:[#allocation9 + $0x46]]
        %v1271 = vstv %s1270
        %v1272 = vmul.f32 %v1271, %v1242
        %v1273 = vmul.f32 %v1271, %v1243
        %1276 = vrot.lane.b32.xlu0 %v1272, 127
        %v1277 = vpop.permute.xlu0 %1276
        %1278 = vrot.lane.b32.xlu0 %v1273, 127
        %v1279 = vpop.permute.xlu0 %1278
        %v1282 = vadd.f32 %v1254, %v1277
        %v1283 = vadd.f32 %v1255, %v1279
        %s1284 = sld [smem:[#allocation9 + $0x23]]
        %v1285 = vstv %s1284
        %v1286 = vmul.f32 %v1285, %v1242
        %v1287 = vmul.f32 %v1285, %v1243
        %1290 = vrot.lane.b32.xlu0 %v1286, 126
        %v1291 = vpop.permute.xlu0 %1290
        %1292 = vrot.lane.b32.xlu0 %v1287, 126
        %v1293 = vpop.permute.xlu0 %1292
        %v1296 = vadd.f32 %v1268, %v1291
        %v1297 = vadd.f32 %v1269, %v1293
        %s1298 = sld [smem:[#allocation9 + $0x47]]
        %v1299 = vstv %s1298
        %v1300 = vmul.f32 %v1299, %v1242
        %v1301 = vmul.f32 %v1299, %v1243
        %1304 = vrot.lane.b32.xlu0 %v1300, 126
        %v1305 = vpop.permute.xlu0 %1304
        %1306 = vrot.lane.b32.xlu0 %v1301, 126
        %v1307 = vpop.permute.xlu0 %1306
        %v1310 = vadd.f32 %v1282, %v1305
        %v1311 = vadd.f32 %v1283, %v1307
        %s1312 = sld [smem:[#allocation12]]
        %v1313 = vstv %s1312
        %v1314 = vadd.f32 %v1296, %v1313
        %v1315 = vadd.f32 %v1297, %v1313
        %s1316 = sld [smem:[#allocation12 + $0x1]]
        %v1317 = vstv %s1316
        %v1318 = vadd.f32 %v1310, %v1317
        %v1319 = vadd.f32 %v1311, %v1317
        %vm1320 = vcmask 130048
        %1321 = vst.msk [vmem:[%s404] sm:$0xff] %vm1320, %v1314
        %1322 = vst.msk [vmem:[%s404 + $0x8] sm:$0xff] %vm1320, %v1315
        %s1323 = scalar_lea.vmem %s404, 16 [#allocation14]
        %1324 = vst.msk [vmem:[%s1323] sm:$0xff] %vm1320, %v1318
        %1325 = vst.msk [vmem:[%s1323 + $0x8] sm:$0xff] %vm1320, %v1319
        %v1326 = vpack.c.bf16 %v407, %v406
        %v1327 = vpack.c.bf16 %v411, %v410
        %v1328 = vld [vmem:[%s2] sm:$0xf]
        %v1329 = vld [vmem:[%s2 + $0x4] sm:$0xf]
        %v1332 = vunpack.c.l.b16 %v1328
        %v1333 = vunpack.c.l.b16 %v1329
        %v1334 = vpack.c.b16 %v1333, %v1332
        %v1337 = vsel %vm1320, %v1326, 0
        %v1340 = vsel %vm1320, %v1327, 0
        %1342 = vmatpush.bf16.msra.mxu0 0
        %1343 = vmatpush.bf16.msra.mxu0 0
        %1344 = vmatpush.bf16.msra.mxu0 0
        %1345 = vmatpush.bf16.msra.mxu0 0
        %1346 = vmatpush.bf16.msra.mxu0 0
        %1347 = vmatpush.bf16.msra.mxu0 0
        %1348 = vmatpush.bf16.msra.mxu0 0
        %1349 = vmatpush.bf16.msra.mxu0 %v1334
        %1350 = vmatmul.bf16.gmra.mxu0 %v1337
        %v1351 = vpop.f32.mrf.mxu0
        %v1352 = vadd.f32 0.0, %v1351
        %v1353 = vpop.f32.mrf.mxu0
        %v1354 = vadd.f32 0.0, %v1353
        %1355 = vmatmul.bf16.gmra.mxu0 %v1340
        %v1356 = vpop.f32.mrf.mxu0
        %v1357 = vadd.f32 0.0, %v1356
        %v1358 = vpop.f32.mrf.mxu0
        %v1359 = vadd.f32 0.0, %v1358
        %1360 = vdwg.mxu0
        %v1361 = vpack.c.bf16 %v409, %v408
        %v1362 = vpack.c.bf16 %v413, %v412
        %s1363 = scalar_lea.vmem %s2, 8
        %v1364 = vld [vmem:[%s1363] sm:$0xf]
        %v1365 = vld [vmem:[%s1363 + $0x4] sm:$0xf]
        %v1368 = vunpack.c.l.b16 %v1364
        %v1369 = vunpack.c.l.b16 %v1365
        %v1370 = vpack.c.b16 %v1369, %v1368
        %v1373 = vsel %vm1320, %v1361, 0
        %v1376 = vsel %vm1320, %v1362, 0
        %1378 = vmatpush.bf16.msra.mxu0 0
        %1379 = vmatpush.bf16.msra.mxu0 0
        %1380 = vmatpush.bf16.msra.mxu0 0
        %1381 = vmatpush.bf16.msra.mxu0 0
        %1382 = vmatpush.bf16.msra.mxu0 0
        %1383 = vmatpush.bf16.msra.mxu0 0
        %1384 = vmatpush.bf16.msra.mxu0 0
        %1385 = vmatpush.bf16.msra.mxu0 %v1370
        %1386 = vmatmul.bf16.gmra.mxu0 %v1373
        %v1387 = vpop.f32.mrf.mxu0
        %v1388 = vadd.f32 0.0, %v1387
        %v1389 = vpop.f32.mrf.mxu0
        %v1390 = vadd.f32 0.0, %v1389
        %1391 = vmatmul.bf16.gmra.mxu0 %v1376
        %v1392 = vpop.f32.mrf.mxu0
        %v1393 = vadd.f32 0.0, %v1392
        %v1394 = vpop.f32.mrf.mxu0
        %v1395 = vadd.f32 0.0, %v1394
        %1396 = vdwg.mxu0
        %v1397 = vadd.f32 %v406, %v408
        %v1398 = vadd.f32 %v407, %v409
        %v1399 = vadd.f32 %v410, %v412
        %v1400 = vadd.f32 %v411, %v413
        %v1401 = vpack.c.bf16 %v1398, %v1397
        %v1402 = vpack.c.bf16 %v1400, %v1399
        %s1403 = scalar_lea.vmem %s2, 16
        %v1404 = vld [vmem:[%s1403] sm:$0xf]
        %v1405 = vld [vmem:[%s1403 + $0x4] sm:$0xf]
        %v1408 = vunpack.c.l.b16 %v1404
        %v1409 = vunpack.c.l.b16 %v1405
        %v1410 = vpack.c.b16 %v1409, %v1408
        %v1413 = vsel %vm1320, %v1401, 0
        %v1416 = vsel %vm1320, %v1402, 0
        %1418 = vmatpush.bf16.msra.mxu0 0
        %1419 = vmatpush.bf16.msra.mxu0 0
        %1420 = vmatpush.bf16.msra.mxu0 0
        %1421 = vmatpush.bf16.msra.mxu0 0
        %1422 = vmatpush.bf16.msra.mxu0 0
        %1423 = vmatpush.bf16.msra.mxu0 0
        %1424 = vmatpush.bf16.msra.mxu0 0
        %1425 = vmatpush.bf16.msra.mxu0 %v1410
        %1426 = vmatmul.bf16.gmra.mxu0 %v1413
        %v1427 = vpop.f32.mrf.mxu0
        %v1428 = vadd.f32 0.0, %v1427
        %v1429 = vpop.f32.mrf.mxu0
        %v1430 = vadd.f32 0.0, %v1429
        %1431 = vmatmul.bf16.gmra.mxu0 %v1416
        %v1432 = vpop.f32.mrf.mxu0
        %v1433 = vadd.f32 0.0, %v1432
        %v1434 = vpop.f32.mrf.mxu0
        %v1435 = vadd.f32 0.0, %v1434
        %1436 = vdwg.mxu0
        %v1437 = vsub.f32 %v1352, %v1388
        %v1438 = vsub.f32 %v1354, %v1390
        %v1439 = vsub.f32 %v1357, %v1393
        %v1440 = vsub.f32 %v1359, %v1395
        %v1441 = vsub.f32 %v1428, %v1352
        %v1442 = vsub.f32 %v1430, %v1354
        %v1443 = vsub.f32 %v1433, %v1357
        %v1444 = vsub.f32 %v1435, %v1359
        %v1445 = vsub.f32 %v1441, %v1388
        %v1446 = vsub.f32 %v1442, %v1390
        %v1447 = vsub.f32 %v1443, %v1393
        %v1448 = vsub.f32 %v1444, %v1395
        %v1449 = vld [vmem:[%s1] sm:$0xf]
        %v1450 = vld [vmem:[%s1 + $0x4] sm:$0xf]
        %v1451 = vld [vmem:[%s1 + $0x8] sm:$0x1]
        %v1452 = vpack.c.bf16 %v1438, %v1437
        %v1456 = vunpack.c.l.b16 %v1449
        %v1457 = vunpack.c.l.b16 %v1450
        %v1458 = vunpack.c.l.b16 %v1451
        %v1459 = vpack.c.b16 %v1457, %v1456
        %v1460 = vpack.c.b16 %v1458, %v1458
        %v1462 = vsel %vm1320, %v1459, 0
        %v1465 = vsel %vm1320, %v1460, 0
        %1467 = vmatpush.bf16.msra.mxu0 0
        %1468 = vmatpush.bf16.msra.mxu0 0
        %1469 = vmatpush.bf16.msra.mxu0 0
        %1470 = vmatpush.bf16.msra.mxu0 0
        %1471 = vmatpush.bf16.msra.mxu0 0
        %1472 = vmatpush.bf16.msra.mxu0 0
        %1473 = vmatpush.bf16.msra.mxu0 0
        %1474 = vmatpush.bf16.msra.mxu0 %v1452
        %1475 = vmatmul.bf16.gmra.mxu0 %v1462
        %v1476 = vpop.f32.mrf.mxu0
        %v1477 = vadd.f32 0.0, %v1476
        %v1478 = vpop.f32.mrf.mxu0
        %v1479 = vadd.f32 0.0, %v1478
        %1480 = vmatmul.bf16.gmra.mxu0 %v1465
        %v1481 = vpop.f32.mrf.mxu0
        %v1482 = vadd.f32 0.0, %v1481
        %v1483 = vpop.f32.mrf.mxu0
        %1484 = vdwg.mxu0
        %s1485 = scalar_lea.vmem %s1, 12
        %v1486 = vld [vmem:[%s1485] sm:$0xf]
        %v1487 = vld [vmem:[%s1485 + $0x4] sm:$0xf]
        %v1488 = vld [vmem:[%s1485 + $0x8] sm:$0x1]
        %v1489 = vpack.c.bf16 %v1446, %v1445
        %v1493 = vunpack.c.l.b16 %v1486
        %v1494 = vunpack.c.l.b16 %v1487
        %v1495 = vunpack.c.l.b16 %v1488
        %v1496 = vpack.c.b16 %v1494, %v1493
        %v1497 = vpack.c.b16 %v1495, %v1495
        %v1499 = vsel %vm1320, %v1496, 0
        %v1502 = vsel %vm1320, %v1497, 0
        %1504 = vmatpush.bf16.msra.mxu0 0
        %1505 = vmatpush.bf16.msra.mxu0 0
        %1506 = vmatpush.bf16.msra.mxu0 0
        %1507 = vmatpush.bf16.msra.mxu0 0
        %1508 = vmatpush.bf16.msra.mxu0 0
        %1509 = vmatpush.bf16.msra.mxu0 0
        %1510 = vmatpush.bf16.msra.mxu0 0
        %1511 = vmatpush.bf16.msra.mxu0 %v1489
        %1512 = vmatmul.bf16.gmra.mxu0 %v1499
        %v1513 = vpop.f32.mrf.mxu0
        %v1514 = vadd.f32 0.0, %v1513
        %v1515 = vpop.f32.mrf.mxu0
        %v1516 = vadd.f32 0.0, %v1515
        %1517 = vmatmul.bf16.gmra.mxu0 %v1502
        %v1518 = vpop.f32.mrf.mxu0
        %v1519 = vadd.f32 0.0, %v1518
        %v1520 = vpop.f32.mrf.mxu0
        %1521 = vdwg.mxu0
        %s1522 = scalar_lea.vmem %s1, 24
        %v1523 = vld [vmem:[%s1522] sm:$0xf]
        %v1524 = vld [vmem:[%s1522 + $0x4] sm:$0xf]
        %v1525 = vld [vmem:[%s1522 + $0x8] sm:$0x1]
        %v1526 = vadd.f32 %v1437, %v1445
        %v1527 = vadd.f32 %v1438, %v1446
        %v1528 = vpack.c.bf16 %v1527, %v1526
        %v1532 = vunpack.c.l.b16 %v1523
        %v1533 = vunpack.c.l.b16 %v1524
        %v1534 = vunpack.c.l.b16 %v1525
        %v1535 = vpack.c.b16 %v1533, %v1532
        %v1536 = vpack.c.b16 %v1534, %v1534
        %v1538 = vsel %vm1320, %v1535, 0
        %v1541 = vsel %vm1320, %v1536, 0
        %1543 = vmatpush.bf16.msra.mxu0 0
        %1544 = vmatpush.bf16.msra.mxu0 0
        %1545 = vmatpush.bf16.msra.mxu0 0
        %1546 = vmatpush.bf16.msra.mxu0 0
        %1547 = vmatpush.bf16.msra.mxu0 0
        %1548 = vmatpush.bf16.msra.mxu0 0
        %1549 = vmatpush.bf16.msra.mxu0 0
        %1550 = vmatpush.bf16.msra.mxu0 %v1528
        %1551 = vmatmul.bf16.gmra.mxu0 %v1538
        %v1552 = vpop.f32.mrf.mxu0
        %v1553 = vadd.f32 0.0, %v1552
        %v1554 = vpop.f32.mrf.mxu0
        %v1555 = vadd.f32 0.0, %v1554
        %1556 = vmatmul.bf16.gmra.mxu0 %v1541
        %v1557 = vpop.f32.mrf.mxu0
        %v1558 = vadd.f32 0.0, %v1557
        %v1559 = vpop.f32.mrf.mxu0
        %1560 = vdwg.mxu0
        %v1561 = vsub.f32 %v1477, %v1514
        %v1562 = vsub.f32 %v1479, %v1516
        %v1563 = vsub.f32 %v1482, %v1519
        %v1564 = vsub.f32 %v1553, %v1477
        %v1565 = vsub.f32 %v1555, %v1479
        %v1566 = vsub.f32 %v1558, %v1482
        %v1567 = vsub.f32 %v1564, %v1514
        %v1568 = vsub.f32 %v1565, %v1516
        %v1569 = vsub.f32 %v1566, %v1519
        %1570 = vst.msk [vmem:[#allocation3] sm:$0xff] %vm414, %v1561
        %1571 = vst.msk [vmem:[#allocation3 + $0x8] sm:$0xff] %vm414, %v1562
        %1572 = vst.msk [vmem:[#allocation3 + $0x10] sm:$0x3] %vm417, %v1563
        %s1573 = scalar_lea.vmem [#allocation3], 24
        %1574 = vst.msk [vmem:[%s1573] sm:$0xff] %vm414, %v1567
        %1575 = vst.msk [vmem:[%s1573 + $0x8] sm:$0xff] %vm414, %v1568
        %1576 = vst.msk [vmem:[%s1573 + $0x10] sm:$0x3] %vm417, %v1569
        %v1577 = vld [vmem:[%s1] sm:$0xf]
        %v1578 = vld [vmem:[%s1 + $0x4] sm:$0xf]
        %v1579 = vld [vmem:[%s1 + $0x8] sm:$0x1]
        %v1580 = vpack.c.bf16 %v1440, %v1439
        %v1584 = vunpack.c.l.b16 %v1577
        %v1585 = vunpack.c.l.b16 %v1578
        %v1586 = vunpack.c.l.b16 %v1579
        %v1587 = vpack.c.b16 %v1585, %v1584
        %v1588 = vpack.c.b16 %v1586, %v1586
        %v1590 = vsel %vm1320, %v1587, 0
        %v1593 = vsel %vm1320, %v1588, 0
        %1595 = vmatpush.bf16.msra.mxu0 0
        %1596 = vmatpush.bf16.msra.mxu0 0
        %1597 = vmatpush.bf16.msra.mxu0 0
        %1598 = vmatpush.bf16.msra.mxu0 0
        %1599 = vmatpush.bf16.msra.mxu0 0
        %1600 = vmatpush.bf16.msra.mxu0 0
        %1601 = vmatpush.bf16.msra.mxu0 0
        %1602 = vmatpush.bf16.msra.mxu0 %v1580
        %1603 = vmatmul.bf16.gmra.mxu0 %v1590
        %v1604 = vpop.f32.mrf.mxu0
        %v1605 = vadd.f32 0.0, %v1604
        %v1606 = vpop.f32.mrf.mxu0
        %v1607 = vadd.f32 0.0, %v1606
        %1608 = vmatmul.bf16.gmra.mxu0 %v1593
        %v1609 = vpop.f32.mrf.mxu0
        %v1610 = vadd.f32 0.0, %v1609
        %v1611 = vpop.f32.mrf.mxu0
        %1612 = vdwg.mxu0
        %v1613 = vld [vmem:[%s1485] sm:$0xf]
        %v1614 = vld [vmem:[%s1485 + $0x4] sm:$0xf]
        %v1615 = vld [vmem:[%s1485 + $0x8] sm:$0x1]
        %v1616 = vpack.c.bf16 %v1448, %v1447
        %v1620 = vunpack.c.l.b16 %v1613
        %v1621 = vunpack.c.l.b16 %v1614
        %v1622 = vunpack.c.l.b16 %v1615
        %v1623 = vpack.c.b16 %v1621, %v1620
        %v1624 = vpack.c.b16 %v1622, %v1622
        %v1626 = vsel %vm1320, %v1623, 0
        %v1629 = vsel %vm1320, %v1624, 0
        %1631 = vmatpush.bf16.msra.mxu0 0
        %1632 = vmatpush.bf16.msra.mxu0 0
        %1633 = vmatpush.bf16.msra.mxu0 0
        %1634 = vmatpush.bf16.msra.mxu0 0
        %1635 = vmatpush.bf16.msra.mxu0 0
        %1636 = vmatpush.bf16.msra.mxu0 0
        %1637 = vmatpush.bf16.msra.mxu0 0
        %1638 = vmatpush.bf16.msra.mxu0 %v1616
        %1639 = vmatmul.bf16.gmra.mxu0 %v1626
        %v1640 = vpop.f32.mrf.mxu0
        %v1641 = vadd.f32 0.0, %v1640
        %v1642 = vpop.f32.mrf.mxu0
        %v1643 = vadd.f32 0.0, %v1642
        %1644 = vmatmul.bf16.gmra.mxu0 %v1629
        %v1645 = vpop.f32.mrf.mxu0
        %v1646 = vadd.f32 0.0, %v1645
        %v1647 = vpop.f32.mrf.mxu0
        %1648 = vdwg.mxu0
        %v1649 = vld [vmem:[%s1522] sm:$0xf]
        %v1650 = vld [vmem:[%s1522 + $0x4] sm:$0xf]
        %v1651 = vld [vmem:[%s1522 + $0x8] sm:$0x1]
        %v1652 = vadd.f32 %v1439, %v1447
        %v1653 = vadd.f32 %v1440, %v1448
        %v1654 = vpack.c.bf16 %v1653, %v1652
        %v1658 = vunpack.c.l.b16 %v1649
        %v1659 = vunpack.c.l.b16 %v1650
        %v1660 = vunpack.c.l.b16 %v1651
        %v1661 = vpack.c.b16 %v1659, %v1658
        %v1662 = vpack.c.b16 %v1660, %v1660
        %v1664 = vsel %vm1320, %v1661, 0
        %v1667 = vsel %vm1320, %v1662, 0
        %1669 = vmatpush.bf16.msra.mxu0 0
        %1670 = vmatpush.bf16.msra.mxu0 0
        %1671 = vmatpush.bf16.msra.mxu0 0
        %1672 = vmatpush.bf16.msra.mxu0 0
        %1673 = vmatpush.bf16.msra.mxu0 0
        %1674 = vmatpush.bf16.msra.mxu0 0
        %1675 = vmatpush.bf16.msra.mxu0 0
        %1676 = vmatpush.bf16.msra.mxu0 %v1654
        %1677 = vmatmul.bf16.gmra.mxu0 %v1664
        %v1678 = vpop.f32.mrf.mxu0
        %v1679 = vadd.f32 0.0, %v1678
        %v1680 = vpop.f32.mrf.mxu0
        %v1681 = vadd.f32 0.0, %v1680
        %1682 = vmatmul.bf16.gmra.mxu0 %v1667
        %v1683 = vpop.f32.mrf.mxu0
        %v1684 = vadd.f32 0.0, %v1683
        %v1685 = vpop.f32.mrf.mxu0
        %1686 = vdwg.mxu0
        %v1687 = vsub.f32 %v1605, %v1641
        %v1688 = vsub.f32 %v1607, %v1643
        %v1689 = vsub.f32 %v1610, %v1646
        %v1690 = vsub.f32 %v1679, %v1605
        %v1691 = vsub.f32 %v1681, %v1607
        %v1692 = vsub.f32 %v1684, %v1610
        %v1693 = vsub.f32 %v1690, %v1641
        %v1694 = vsub.f32 %v1691, %v1643
        %v1695 = vsub.f32 %v1692, %v1646
        %s1696 = scalar_lea.vmem [#allocation3], 48
        %1697 = vst.msk [vmem:[%s1696] sm:$0xff] %vm414, %v1687
        %1698 = vst.msk [vmem:[%s1696 + $0x8] sm:$0xff] %vm414, %v1688
        %1699 = vst.msk [vmem:[%s1696 + $0x10] sm:$0x3] %vm417, %v1689
        %s1700 = scalar_lea.vmem [#allocation3], 72
        %1701 = vst.msk [vmem:[%s1700] sm:$0xff] %vm414, %v1693
        %1702 = vst.msk [vmem:[%s1700 + $0x8] sm:$0xff] %vm414, %v1694
        %1703 = vst.msk [vmem:[%s1700 + $0x10] sm:$0x3] %vm417, %v1695
        %v1704 = vld [vmem:[#allocation3] sm:$0xff]
        %v1705 = vld [vmem:[#allocation3 + $0x8] sm:$0xff]
        %s1706 = sld [smem:[#allocation8]]
        %v1707 = vstv %s1706
        %v1708 = vmul.f32 %v1707, %v1704
        %v1709 = vmul.f32 %v1707, %v1705
        %v1710 = vadd.f32 %v1708, 0.0
        %v1711 = vadd.f32 %v1709, 0.0
        %s1712 = sld [smem:[#allocation8 + $0x24]]
        %v1713 = vstv %s1712
        %v1714 = vmul.f32 %v1713, %v1704
        %v1715 = vmul.f32 %v1713, %v1705
        %v1716 = vadd.f32 %v1714, 0.0
        %v1717 = vadd.f32 %v1715, 0.0
        %s1718 = sld [smem:[#allocation8 + $0x1]]
        %v1719 = vstv %s1718
        %v1720 = vmul.f32 %v1719, %v1704
        %v1721 = vmul.f32 %v1719, %v1705
        %1724 = vrot.lane.b32.xlu0 %v1720, 127
        %v1725 = vpop.permute.xlu0 %1724
        %1726 = vrot.lane.b32.xlu0 %v1721, 127
        %v1727 = vpop.permute.xlu0 %1726
        %v1730 = vadd.f32 %v1710, %v1725
        %v1731 = vadd.f32 %v1711, %v1727
        %s1732 = sld [smem:[#allocation8 + $0x25]]
        %v1733 = vstv %s1732
        %v1734 = vmul.f32 %v1733, %v1704
        %v1735 = vmul.f32 %v1733, %v1705
        %1738 = vrot.lane.b32.xlu0 %v1734, 127
        %v1739 = vpop.permute.xlu0 %1738
        %1740 = vrot.lane.b32.xlu0 %v1735, 127
        %v1741 = vpop.permute.xlu0 %1740
        %v1744 = vadd.f32 %v1716, %v1739
        %v1745 = vadd.f32 %v1717, %v1741
        %s1746 = sld [smem:[#allocation8 + $0x2]]
        %v1747 = vstv %s1746
        %v1748 = vmul.f32 %v1747, %v1704
        %v1749 = vmul.f32 %v1747, %v1705
        %1752 = vrot.lane.b32.xlu0 %v1748, 126
        %v1753 = vpop.permute.xlu0 %1752
        %1754 = vrot.lane.b32.xlu0 %v1749, 126
        %v1755 = vpop.permute.xlu0 %1754
        %v1758 = vadd.f32 %v1730, %v1753
        %v1759 = vadd.f32 %v1731, %v1755
        %s1760 = sld [smem:[#allocation8 + $0x26]]
        %v1761 = vstv %s1760
        %v1762 = vmul.f32 %v1761, %v1704
        %v1763 = vmul.f32 %v1761, %v1705
        %1766 = vrot.lane.b32.xlu0 %v1762, 126
        %v1767 = vpop.permute.xlu0 %1766
        %1768 = vrot.lane.b32.xlu0 %v1763, 126
        %v1769 = vpop.permute.xlu0 %1768
        %v1772 = vadd.f32 %v1744, %v1767
        %v1773 = vadd.f32 %v1745, %v1769
        %v1774 = vld [vmem:[#allocation3 + $0x1] sm:$0xff]
        %v1775 = vld [vmem:[#allocation3 + $0x9] sm:$0xff]
        %s1776 = sld [smem:[#allocation8 + $0x3]]
        %v1777 = vstv %s1776
        %v1778 = vmul.f32 %v1777, %v1774
        %v1779 = vmul.f32 %v1777, %v1775
        %v1780 = vadd.f32 %v1758, %v1778
        %v1781 = vadd.f32 %v1759, %v1779
        %s1782 = sld [smem:[#allocation8 + $0x27]]
        %v1783 = vstv %s1782
        %v1784 = vmul.f32 %v1783, %v1774
        %v1785 = vmul.f32 %v1783, %v1775
        %v1786 = vadd.f32 %v1772, %v1784
        %v1787 = vadd.f32 %v1773, %v1785
        %s1788 = sld [smem:[#allocation8 + $0x4]]
        %v1789 = vstv %s1788
        %v1790 = vmul.f32 %v1789, %v1774
        %v1791 = vmul.f32 %v1789, %v1775
        %1794 = vrot.lane.b32.xlu0 %v1790, 127
        %v1795 = vpop.permute.xlu0 %1794
        %1796 = vrot.lane.b32.xlu0 %v1791, 127
        %v1797 = vpop.permute.xlu0 %1796
        %v1800 = vadd.f32 %v1780, %v1795
        %v1801 = vadd.f32 %v1781, %v1797
        %s1802 = sld [smem:[#allocation8 + $0x28]]
        %v1803 = vstv %s1802
        %v1804 = vmul.f32 %v1803, %v1774
        %v1805 = vmul.f32 %v1803, %v1775
        %1808 = vrot.lane.b32.xlu0 %v1804, 127
        %v1809 = vpop.permute.xlu0 %1808
        %1810 = vrot.lane.b32.xlu0 %v1805, 127
        %v1811 = vpop.permute.xlu0 %1810
        %v1814 = vadd.f32 %v1786, %v1809
        %v1815 = vadd.f32 %v1787, %v1811
        %s1816 = sld [smem:[#allocation8 + $0x5]]
        %v1817 = vstv %s1816
        %v1818 = vmul.f32 %v1817, %v1774
        %v1819 = vmul.f32 %v1817, %v1775
        %1822 = vrot.lane.b32.xlu0 %v1818, 126
        %v1823 = vpop.permute.xlu0 %1822
        %1824 = vrot.lane.b32.xlu0 %v1819, 126
        %v1825 = vpop.permute.xlu0 %1824
        %v1828 = vadd.f32 %v1800, %v1823
        %v1829 = vadd.f32 %v1801, %v1825
        %s1830 = sld [smem:[#allocation8 + $0x29]]
        %v1831 = vstv %s1830
        %v1832 = vmul.f32 %v1831, %v1774
        %v1833 = vmul.f32 %v1831, %v1775
        %1836 = vrot.lane.b32.xlu0 %v1832, 126
        %v1837 = vpop.permute.xlu0 %1836
        %1838 = vrot.lane.b32.xlu0 %v1833, 126
        %v1839 = vpop.permute.xlu0 %1838
        %v1842 = vadd.f32 %v1814, %v1837
        %v1843 = vadd.f32 %v1815, %v1839
        %v1844 = vld [vmem:[#allocation3 + $0x2] sm:$0xff]
        %v1845 = vld [vmem:[#allocation3 + $0xa] sm:$0xff]
        %s1846 = sld [smem:[#allocation8 + $0x6]]
        %v1847 = vstv %s1846
        %v1848 = vmul.f32 %v1847, %v1844
        %v1849 = vmul.f32 %v1847, %v1845
        %v1850 = vadd.f32 %v1828, %v1848
        %v1851 = vadd.f32 %v1829, %v1849
        %s1852 = sld [smem:[#allocation8 + $0x2a]]
        %v1853 = vstv %s1852
        %v1854 = vmul.f32 %v1853, %v1844
        %v1855 = vmul.f32 %v1853, %v1845
        %v1856 = vadd.f32 %v1842, %v1854
        %v1857 = vadd.f32 %v1843, %v1855
        %s1858 = sld [smem:[#allocation8 + $0x7]]
        %v1859 = vstv %s1858
        %v1860 = vmul.f32 %v1859, %v1844
        %v1861 = vmul.f32 %v1859, %v1845
        %1864 = vrot.lane.b32.xlu0 %v1860, 127
        %v1865 = vpop.permute.xlu0 %1864
        %1866 = vrot.lane.b32.xlu0 %v1861, 127
        %v1867 = vpop.permute.xlu0 %1866
        %v1870 = vadd.f32 %v1850, %v1865
        %v1871 = vadd.f32 %v1851, %v1867
        %s1872 = sld [smem:[#allocation8 + $0x2b]]
        %v1873 = vstv %s1872
        %v1874 = vmul.f32 %v1873, %v1844
        %v1875 = vmul.f32 %v1873, %v1845
        %1878 = vrot.lane.b32.xlu0 %v1874, 127
        %v1879 = vpop.permute.xlu0 %1878
        %1880 = vrot.lane.b32.xlu0 %v1875, 127
        %v1881 = vpop.permute.xlu0 %1880
        %v1884 = vadd.f32 %v1856, %v1879
        %v1885 = vadd.f32 %v1857, %v1881
        %s1886 = sld [smem:[#allocation8 + $0x8]]
        %v1887 = vstv %s1886
        %v1888 = vmul.f32 %v1887, %v1844
        %v1889 = vmul.f32 %v1887, %v1845
        %1892 = vrot.lane.b32.xlu0 %v1888, 126
        %v1893 = vpop.permute.xlu0 %1892
        %1894 = vrot.lane.b32.xlu0 %v1889, 126
        %v1895 = vpop.permute.xlu0 %1894
        %v1898 = vadd.f32 %v1870, %v1893
        %v1899 = vadd.f32 %v1871, %v1895
        %s1900 = sld [smem:[#allocation8 + $0x2c]]
        %v1901 = vstv %s1900
        %v1902 = vmul.f32 %v1901, %v1844
        %v1903 = vmul.f32 %v1901, %v1845
        %1906 = vrot.lane.b32.xlu0 %v1902, 126
        %v1907 = vpop.permute.xlu0 %1906
        %1908 = vrot.lane.b32.xlu0 %v1903, 126
        %v1909 = vpop.permute.xlu0 %1908
        %v1912 = vadd.f32 %v1884, %v1907
        %v1913 = vadd.f32 %v1885, %v1909
        %v1914 = vld [vmem:[%s1573] sm:$0xff]
        %v1915 = vld [vmem:[%s1573 + $0x8] sm:$0xff]
        %s1916 = sld [smem:[#allocation8 + $0x9]]
        %v1917 = vstv %s1916
        %v1918 = vmul.f32 %v1917, %v1914
        %v1919 = vmul.f32 %v1917, %v1915
        %v1920 = vadd.f32 %v1898, %v1918
        %v1921 = vadd.f32 %v1899, %v1919
        %s1922 = sld [smem:[#allocation8 + $0x2d]]
        %v1923 = vstv %s1922
        %v1924 = vmul.f32 %v1923, %v1914
        %v1925 = vmul.f32 %v1923, %v1915
        %v1926 = vadd.f32 %v1912, %v1924
        %v1927 = vadd.f32 %v1913, %v1925
        %s1928 = sld [smem:[#allocation8 + $0xa]]
        %v1929 = vstv %s1928
        %v1930 = vmul.f32 %v1929, %v1914
        %v1931 = vmul.f32 %v1929, %v1915
        %1934 = vrot.lane.b32.xlu0 %v1930, 127
        %v1935 = vpop.permute.xlu0 %1934
        %1936 = vrot.lane.b32.xlu0 %v1931, 127
        %v1937 = vpop.permute.xlu0 %1936
        %v1940 = vadd.f32 %v1920, %v1935
        %v1941 = vadd.f32 %v1921, %v1937
        %s1942 = sld [smem:[#allocation8 + $0x2e]]
        %v1943 = vstv %s1942
        %v1944 = vmul.f32 %v1943, %v1914
        %v1945 = vmul.f32 %v1943, %v1915
        %1948 = vrot.lane.b32.xlu0 %v1944, 127
        %v1949 = vpop.permute.xlu0 %1948
        %1950 = vrot.lane.b32.xlu0 %v1945, 127
        %v1951 = vpop.permute.xlu0 %1950
        %v1954 = vadd.f32 %v1926, %v1949
        %v1955 = vadd.f32 %v1927, %v1951
        %s1956 = sld [smem:[#allocation8 + $0xb]]
        %v1957 = vstv %s1956
        %v1958 = vmul.f32 %v1957, %v1914
        %v1959 = vmul.f32 %v1957, %v1915
        %1962 = vrot.lane.b32.xlu0 %v1958, 126
        %v1963 = vpop.permute.xlu0 %1962
        %1964 = vrot.lane.b32.xlu0 %v1959, 126
        %v1965 = vpop.permute.xlu0 %1964
        %v1968 = vadd.f32 %v1940, %v1963
        %v1969 = vadd.f32 %v1941, %v1965
        %s1970 = sld [smem:[#allocation8 + $0x2f]]
        %v1971 = vstv %s1970
        %v1972 = vmul.f32 %v1971, %v1914
        %v1973 = vmul.f32 %v1971, %v1915
        %1976 = vrot.lane.b32.xlu0 %v1972, 126
        %v1977 = vpop.permute.xlu0 %1976
        %1978 = vrot.lane.b32.xlu0 %v1973, 126
        %v1979 = vpop.permute.xlu0 %1978
        %v1982 = vadd.f32 %v1954, %v1977
        %v1983 = vadd.f32 %v1955, %v1979
        %v1984 = vld [vmem:[%s1573 + $0x1] sm:$0xff]
        %v1985 = vld [vmem:[%s1573 + $0x9] sm:$0xff]
        %s1986 = sld [smem:[#allocation8 + $0xc]]
        %v1987 = vstv %s1986
        %v1988 = vmul.f32 %v1987, %v1984
        %v1989 = vmul.f32 %v1987, %v1985
        %v1990 = vadd.f32 %v1968, %v1988
        %v1991 = vadd.f32 %v1969, %v1989
        %s1992 = sld [smem:[#allocation8 + $0x30]]
        %v1993 = vstv %s1992
        %v1994 = vmul.f32 %v1993, %v1984
        %v1995 = vmul.f32 %v1993, %v1985
        %v1996 = vadd.f32 %v1982, %v1994
        %v1997 = vadd.f32 %v1983, %v1995
        %s1998 = sld [smem:[#allocation8 + $0xd]]
        %v1999 = vstv %s1998
        %v2000 = vmul.f32 %v1999, %v1984
        %v2001 = vmul.f32 %v1999, %v1985
        %2004 = vrot.lane.b32.xlu0 %v2000, 127
        %v2005 = vpop.permute.xlu0 %2004
        %2006 = vrot.lane.b32.xlu0 %v2001, 127
        %v2007 = vpop.permute.xlu0 %2006
        %v2010 = vadd.f32 %v1990, %v2005
        %v2011 = vadd.f32 %v1991, %v2007
        %s2012 = sld [smem:[#allocation8 + $0x31]]
        %v2013 = vstv %s2012
        %v2014 = vmul.f32 %v2013, %v1984
        %v2015 = vmul.f32 %v2013, %v1985
        %2018 = vrot.lane.b32.xlu0 %v2014, 127
        %v2019 = vpop.permute.xlu0 %2018
        %2020 = vrot.lane.b32.xlu0 %v2015, 127
        %v2021 = vpop.permute.xlu0 %2020
        %v2024 = vadd.f32 %v1996, %v2019
        %v2025 = vadd.f32 %v1997, %v2021
        %s2026 = sld [smem:[#allocation8 + $0xe]]
        %v2027 = vstv %s2026
        %v2028 = vmul.f32 %v2027, %v1984
        %v2029 = vmul.f32 %v2027, %v1985
        %2032 = vrot.lane.b32.xlu0 %v2028, 126
        %v2033 = vpop.permute.xlu0 %2032
        %2034 = vrot.lane.b32.xlu0 %v2029, 126
        %v2035 = vpop.permute.xlu0 %2034
        %v2038 = vadd.f32 %v2010, %v2033
        %v2039 = vadd.f32 %v2011, %v2035
        %s2040 = sld [smem:[#allocation8 + $0x32]]
        %v2041 = vstv %s2040
        %v2042 = vmul.f32 %v2041, %v1984
        %v2043 = vmul.f32 %v2041, %v1985
        %2046 = vrot.lane.b32.xlu0 %v2042, 126
        %v2047 = vpop.permute.xlu0 %2046
        %2048 = vrot.lane.b32.xlu0 %v2043, 126
        %v2049 = vpop.permute.xlu0 %2048
        %v2052 = vadd.f32 %v2024, %v2047
        %v2053 = vadd.f32 %v2025, %v2049
        %v2054 = vld [vmem:[%s1573 + $0x2] sm:$0xff]
        %v2055 = vld [vmem:[%s1573 + $0xa] sm:$0xff]
        %s2056 = sld [smem:[#allocation8 + $0xf]]
        %v2057 = vstv %s2056
        %v2058 = vmul.f32 %v2057, %v2054
        %v2059 = vmul.f32 %v2057, %v2055
        %v2060 = vadd.f32 %v2038, %v2058
        %v2061 = vadd.f32 %v2039, %v2059
        %s2062 = sld [smem:[#allocation8 + $0x33]]
        %v2063 = vstv %s2062
        %v2064 = vmul.f32 %v2063, %v2054
        %v2065 = vmul.f32 %v2063, %v2055
        %v2066 = vadd.f32 %v2052, %v2064
        %v2067 = vadd.f32 %v2053, %v2065
        %s2068 = sld [smem:[#allocation8 + $0x10]]
        %v2069 = vstv %s2068
        %v2070 = vmul.f32 %v2069, %v2054
        %v2071 = vmul.f32 %v2069, %v2055
        %2074 = vrot.lane.b32.xlu0 %v2070, 127
        %v2075 = vpop.permute.xlu0 %2074
        %2076 = vrot.lane.b32.xlu0 %v2071, 127
        %v2077 = vpop.permute.xlu0 %2076
        %v2080 = vadd.f32 %v2060, %v2075
        %v2081 = vadd.f32 %v2061, %v2077
        %s2082 = sld [smem:[#allocation8 + $0x34]]
        %v2083 = vstv %s2082
        %v2084 = vmul.f32 %v2083, %v2054
        %v2085 = vmul.f32 %v2083, %v2055
        %2088 = vrot.lane.b32.xlu0 %v2084, 127
        %v2089 = vpop.permute.xlu0 %2088
        %2090 = vrot.lane.b32.xlu0 %v2085, 127
        %v2091 = vpop.permute.xlu0 %2090
        %v2094 = vadd.f32 %v2066, %v2089
        %v2095 = vadd.f32 %v2067, %v2091
        %s2096 = sld [smem:[#allocation8 + $0x11]]
        %v2097 = vstv %s2096
        %v2098 = vmul.f32 %v2097, %v2054
        %v2099 = vmul.f32 %v2097, %v2055
        %2102 = vrot.lane.b32.xlu0 %v2098, 126
        %v2103 = vpop.permute.xlu0 %2102
        %2104 = vrot.lane.b32.xlu0 %v2099, 126
        %v2105 = vpop.permute.xlu0 %2104
        %v2108 = vadd.f32 %v2080, %v2103
        %v2109 = vadd.f32 %v2081, %v2105
        %s2110 = sld [smem:[#allocation8 + $0x35]]
        %v2111 = vstv %s2110
        %v2112 = vmul.f32 %v2111, %v2054
        %v2113 = vmul.f32 %v2111, %v2055
        %2116 = vrot.lane.b32.xlu0 %v2112, 126
        %v2117 = vpop.permute.xlu0 %2116
        %2118 = vrot.lane.b32.xlu0 %v2113, 126
        %v2119 = vpop.permute.xlu0 %2118
        %v2122 = vadd.f32 %v2094, %v2117
        %v2123 = vadd.f32 %v2095, %v2119
        %v2124 = vld [vmem:[%s1696] sm:$0xff]
        %v2125 = vld [vmem:[%s1696 + $0x8] sm:$0xff]
        %s2126 = sld [smem:[#allocation8 + $0x12]]
        %v2127 = vstv %s2126
        %v2128 = vmul.f32 %v2127, %v2124
        %v2129 = vmul.f32 %v2127, %v2125
        %v2130 = vadd.f32 %v2108, %v2128
        %v2131 = vadd.f32 %v2109, %v2129
        %s2132 = sld [smem:[#allocation8 + $0x36]]
        %v2133 = vstv %s2132
        %v2134 = vmul.f32 %v2133, %v2124
        %v2135 = vmul.f32 %v2133, %v2125
        %v2136 = vadd.f32 %v2122, %v2134
        %v2137 = vadd.f32 %v2123, %v2135
        %s2138 = sld [smem:[#allocation8 + $0x13]]
        %v2139 = vstv %s2138
        %v2140 = vmul.f32 %v2139, %v2124
        %v2141 = vmul.f32 %v2139, %v2125
        %2144 = vrot.lane.b32.xlu0 %v2140, 127
        %v2145 = vpop.permute.xlu0 %2144
        %2146 = vrot.lane.b32.xlu0 %v2141, 127
        %v2147 = vpop.permute.xlu0 %2146
        %v2150 = vadd.f32 %v2130, %v2145
        %v2151 = vadd.f32 %v2131, %v2147
        %s2152 = sld [smem:[#allocation8 + $0x37]]
        %v2153 = vstv %s2152
        %v2154 = vmul.f32 %v2153, %v2124
        %v2155 = vmul.f32 %v2153, %v2125
        %2158 = vrot.lane.b32.xlu0 %v2154, 127
        %v2159 = vpop.permute.xlu0 %2158
        %2160 = vrot.lane.b32.xlu0 %v2155, 127
        %v2161 = vpop.permute.xlu0 %2160
        %v2164 = vadd.f32 %v2136, %v2159
        %v2165 = vadd.f32 %v2137, %v2161
        %s2166 = sld [smem:[#allocation8 + $0x14]]
        %v2167 = vstv %s2166
        %v2168 = vmul.f32 %v2167, %v2124
        %v2169 = vmul.f32 %v2167, %v2125
        %2172 = vrot.lane.b32.xlu0 %v2168, 126
        %v2173 = vpop.permute.xlu0 %2172
        %2174 = vrot.lane.b32.xlu0 %v2169, 126
        %v2175 = vpop.permute.xlu0 %2174
        %v2178 = vadd.f32 %v2150, %v2173
        %v2179 = vadd.f32 %v2151, %v2175
        %s2180 = sld [smem:[#allocation8 + $0x38]]
        %v2181 = vstv %s2180
        %v2182 = vmul.f32 %v2181, %v2124
        %v2183 = vmul.f32 %v2181, %v2125
        %2186 = vrot.lane.b32.xlu0 %v2182, 126
        %v2187 = vpop.permute.xlu0 %2186
        %2188 = vrot.lane.b32.xlu0 %v2183, 126
        %v2189 = vpop.permute.xlu0 %2188
        %v2192 = vadd.f32 %v2164, %v2187
        %v2193 = vadd.f32 %v2165, %v2189
        %v2194 = vld [vmem:[%s1696 + $0x1] sm:$0xff]
        %v2195 = vld [vmem:[%s1696 + $0x9] sm:$0xff]
        %s2196 = sld [smem:[#allocation8 + $0x15]]
        %v2197 = vstv %s2196
        %v2198 = vmul.f32 %v2197, %v2194
        %v2199 = vmul.f32 %v2197, %v2195
        %v2200 = vadd.f32 %v2178, %v2198
        %v2201 = vadd.f32 %v2179, %v2199
        %s2202 = sld [smem:[#allocation8 + $0x39]]
        %v2203 = vstv %s2202
        %v2204 = vmul.f32 %v2203, %v2194
        %v2205 = vmul.f32 %v2203, %v2195
        %v2206 = vadd.f32 %v2192, %v2204
        %v2207 = vadd.f32 %v2193, %v2205
        %s2208 = sld [smem:[#allocation8 + $0x16]]
        %v2209 = vstv %s2208
        %v2210 = vmul.f32 %v2209, %v2194
        %v2211 = vmul.f32 %v2209, %v2195
        %2214 = vrot.lane.b32.xlu0 %v2210, 127
        %v2215 = vpop.permute.xlu0 %2214
        %2216 = vrot.lane.b32.xlu0 %v2211, 127
        %v2217 = vpop.permute.xlu0 %2216
        %v2220 = vadd.f32 %v2200, %v2215
        %v2221 = vadd.f32 %v2201, %v2217
        %s2222 = sld [smem:[#allocation8 + $0x3a]]
        %v2223 = vstv %s2222
        %v2224 = vmul.f32 %v2223, %v2194
        %v2225 = vmul.f32 %v2223, %v2195
        %2228 = vrot.lane.b32.xlu0 %v2224, 127
        %v2229 = vpop.permute.xlu0 %2228
        %2230 = vrot.lane.b32.xlu0 %v2225, 127
        %v2231 = vpop.permute.xlu0 %2230
        %v2234 = vadd.f32 %v2206, %v2229
        %v2235 = vadd.f32 %v2207, %v2231
        %s2236 = sld [smem:[#allocation8 + $0x17]]
        %v2237 = vstv %s2236
        %v2238 = vmul.f32 %v2237, %v2194
        %v2239 = vmul.f32 %v2237, %v2195
        %2242 = vrot.lane.b32.xlu0 %v2238, 126
        %v2243 = vpop.permute.xlu0 %2242
        %2244 = vrot.lane.b32.xlu0 %v2239, 126
        %v2245 = vpop.permute.xlu0 %2244
        %v2248 = vadd.f32 %v2220, %v2243
        %v2249 = vadd.f32 %v2221, %v2245
        %s2250 = sld [smem:[#allocation8 + $0x3b]]
        %v2251 = vstv %s2250
        %v2252 = vmul.f32 %v2251, %v2194
        %v2253 = vmul.f32 %v2251, %v2195
        %2256 = vrot.lane.b32.xlu0 %v2252, 126
        %v2257 = vpop.permute.xlu0 %2256
        %2258 = vrot.lane.b32.xlu0 %v2253, 126
        %v2259 = vpop.permute.xlu0 %2258
        %v2262 = vadd.f32 %v2234, %v2257
        %v2263 = vadd.f32 %v2235, %v2259
        %v2264 = vld [vmem:[%s1696 + $0x2] sm:$0xff]
        %v2265 = vld [vmem:[%s1696 + $0xa] sm:$0xff]
        %s2266 = sld [smem:[#allocation8 + $0x18]]
        %v2267 = vstv %s2266
        %v2268 = vmul.f32 %v2267, %v2264
        %v2269 = vmul.f32 %v2267, %v2265
        %v2270 = vadd.f32 %v2248, %v2268
        %v2271 = vadd.f32 %v2249, %v2269
        %s2272 = sld [smem:[#allocation8 + $0x3c]]
        %v2273 = vstv %s2272
        %v2274 = vmul.f32 %v2273, %v2264
        %v2275 = vmul.f32 %v2273, %v2265
        %v2276 = vadd.f32 %v2262, %v2274
        %v2277 = vadd.f32 %v2263, %v2275
        %s2278 = sld [smem:[#allocation8 + $0x19]]
        %v2279 = vstv %s2278
        %v2280 = vmul.f32 %v2279, %v2264
        %v2281 = vmul.f32 %v2279, %v2265
        %2284 = vrot.lane.b32.xlu0 %v2280, 127
        %v2285 = vpop.permute.xlu0 %2284
        %2286 = vrot.lane.b32.xlu0 %v2281, 127
        %v2287 = vpop.permute.xlu0 %2286
        %v2290 = vadd.f32 %v2270, %v2285
        %v2291 = vadd.f32 %v2271, %v2287
        %s2292 = sld [smem:[#allocation8 + $0x3d]]
        %v2293 = vstv %s2292
        %v2294 = vmul.f32 %v2293, %v2264
        %v2295 = vmul.f32 %v2293, %v2265
        %2298 = vrot.lane.b32.xlu0 %v2294, 127
        %v2299 = vpop.permute.xlu0 %2298
        %2300 = vrot.lane.b32.xlu0 %v2295, 127
        %v2301 = vpop.permute.xlu0 %2300
        %v2304 = vadd.f32 %v2276, %v2299
        %v2305 = vadd.f32 %v2277, %v2301
        %s2306 = sld [smem:[#allocation8 + $0x1a]]
        %v2307 = vstv %s2306
        %v2308 = vmul.f32 %v2307, %v2264
        %v2309 = vmul.f32 %v2307, %v2265
        %2312 = vrot.lane.b32.xlu0 %v2308, 126
        %v2313 = vpop.permute.xlu0 %2312
        %2314 = vrot.lane.b32.xlu0 %v2309, 126
        %v2315 = vpop.permute.xlu0 %2314
        %v2318 = vadd.f32 %v2290, %v2313
        %v2319 = vadd.f32 %v2291, %v2315
        %s2320 = sld [smem:[#allocation8 + $0x3e]]
        %v2321 = vstv %s2320
        %v2322 = vmul.f32 %v2321, %v2264
        %v2323 = vmul.f32 %v2321, %v2265
        %2326 = vrot.lane.b32.xlu0 %v2322, 126
        %v2327 = vpop.permute.xlu0 %2326
        %2328 = vrot.lane.b32.xlu0 %v2323, 126
        %v2329 = vpop.permute.xlu0 %2328
        %v2332 = vadd.f32 %v2304, %v2327
        %v2333 = vadd.f32 %v2305, %v2329
        %v2334 = vld [vmem:[%s1700] sm:$0xff]
        %v2335 = vld [vmem:[%s1700 + $0x8] sm:$0xff]
        %s2336 = sld [smem:[#allocation8 + $0x1b]]
        %v2337 = vstv %s2336
        %v2338 = vmul.f32 %v2337, %v2334
        %v2339 = vmul.f32 %v2337, %v2335
        %v2340 = vadd.f32 %v2318, %v2338
        %v2341 = vadd.f32 %v2319, %v2339
        %s2342 = sld [smem:[#allocation8 + $0x3f]]
        %v2343 = vstv %s2342
        %v2344 = vmul.f32 %v2343, %v2334
        %v2345 = vmul.f32 %v2343, %v2335
        %v2346 = vadd.f32 %v2332, %v2344
        %v2347 = vadd.f32 %v2333, %v2345
        %s2348 = sld [smem:[#allocation8 + $0x1c]]
        %v2349 = vstv %s2348
        %v2350 = vmul.f32 %v2349, %v2334
        %v2351 = vmul.f32 %v2349, %v2335
        %2354 = vrot.lane.b32.xlu0 %v2350, 127
        %v2355 = vpop.permute.xlu0 %2354
        %2356 = vrot.lane.b32.xlu0 %v2351, 127
        %v2357 = vpop.permute.xlu0 %2356
        %v2360 = vadd.f32 %v2340, %v2355
        %v2361 = vadd.f32 %v2341, %v2357
        %s2362 = sld [smem:[#allocation8 + $0x40]]
        %v2363 = vstv %s2362
        %v2364 = vmul.f32 %v2363, %v2334
        %v2365 = vmul.f32 %v2363, %v2335
        %2368 = vrot.lane.b32.xlu0 %v2364, 127
        %v2369 = vpop.permute.xlu0 %2368
        %2370 = vrot.lane.b32.xlu0 %v2365, 127
        %v2371 = vpop.permute.xlu0 %2370
        %v2374 = vadd.f32 %v2346, %v2369
        %v2375 = vadd.f32 %v2347, %v2371
        %s2376 = sld [smem:[#allocation8 + $0x1d]]
        %v2377 = vstv %s2376
        %v2378 = vmul.f32 %v2377, %v2334
        %v2379 = vmul.f32 %v2377, %v2335
        %2382 = vrot.lane.b32.xlu0 %v2378, 126
        %v2383 = vpop.permute.xlu0 %2382
        %2384 = vrot.lane.b32.xlu0 %v2379, 126
        %v2385 = vpop.permute.xlu0 %2384
        %v2388 = vadd.f32 %v2360, %v2383
        %v2389 = vadd.f32 %v2361, %v2385
        %s2390 = sld [smem:[#allocation8 + $0x41]]
        %v2391 = vstv %s2390
        %v2392 = vmul.f32 %v2391, %v2334
        %v2393 = vmul.f32 %v2391, %v2335
        %2396 = vrot.lane.b32.xlu0 %v2392, 126
        %v2397 = vpop.permute.xlu0 %2396
        %2398 = vrot.lane.b32.xlu0 %v2393, 126
        %v2399 = vpop.permute.xlu0 %2398
        %v2402 = vadd.f32 %v2374, %v2397
        %v2403 = vadd.f32 %v2375, %v2399
        %v2404 = vld [vmem:[%s1700 + $0x1] sm:$0xff]
        %v2405 = vld [vmem:[%s1700 + $0x9] sm:$0xff]
        %s2406 = sld [smem:[#allocation8 + $0x1e]]
        %v2407 = vstv %s2406
        %v2408 = vmul.f32 %v2407, %v2404
        %v2409 = vmul.f32 %v2407, %v2405
        %v2410 = vadd.f32 %v2388, %v2408
        %v2411 = vadd.f32 %v2389, %v2409
        %s2412 = sld [smem:[#allocation8 + $0x42]]
        %v2413 = vstv %s2412
        %v2414 = vmul.f32 %v2413, %v2404
        %v2415 = vmul.f32 %v2413, %v2405
        %v2416 = vadd.f32 %v2402, %v2414
        %v2417 = vadd.f32 %v2403, %v2415
        %s2418 = sld [smem:[#allocation8 + $0x1f]]
        %v2419 = vstv %s2418
        %v2420 = vmul.f32 %v2419, %v2404
        %v2421 = vmul.f32 %v2419, %v2405
        %2424 = vrot.lane.b32.xlu0 %v2420, 127
        %v2425 = vpop.permute.xlu0 %2424
        %2426 = vrot.lane.b32.xlu0 %v2421, 127
        %v2427 = vpop.permute.xlu0 %2426
        %v2430 = vadd.f32 %v2410, %v2425
        %v2431 = vadd.f32 %v2411, %v2427
        %s2432 = sld [smem:[#allocation8 + $0x43]]
        %v2433 = vstv %s2432
        %v2434 = vmul.f32 %v2433, %v2404
        %v2435 = vmul.f32 %v2433, %v2405
        %2438 = vrot.lane.b32.xlu0 %v2434, 127
        %v2439 = vpop.permute.xlu0 %2438
        %2440 = vrot.lane.b32.xlu0 %v2435, 127
        %v2441 = vpop.permute.xlu0 %2440
        %v2444 = vadd.f32 %v2416, %v2439
        %v2445 = vadd.f32 %v2417, %v2441
        %s2446 = sld [smem:[#allocation8 + $0x20]]
        %v2447 = vstv %s2446
        %v2448 = vmul.f32 %v2447, %v2404
        %v2449 = vmul.f32 %v2447, %v2405
        %2452 = vrot.lane.b32.xlu0 %v2448, 126
        %v2453 = vpop.permute.xlu0 %2452
        %2454 = vrot.lane.b32.xlu0 %v2449, 126
        %v2455 = vpop.permute.xlu0 %2454
        %v2458 = vadd.f32 %v2430, %v2453
        %v2459 = vadd.f32 %v2431, %v2455
        %s2460 = sld [smem:[#allocation8 + $0x44]]
        %v2461 = vstv %s2460
        %v2462 = vmul.f32 %v2461, %v2404
        %v2463 = vmul.f32 %v2461, %v2405
        %2466 = vrot.lane.b32.xlu0 %v2462, 126
        %v2467 = vpop.permute.xlu0 %2466
        %2468 = vrot.lane.b32.xlu0 %v2463, 126
        %v2469 = vpop.permute.xlu0 %2468
        %v2472 = vadd.f32 %v2444, %v2467
        %v2473 = vadd.f32 %v2445, %v2469
        %v2474 = vld [vmem:[%s1700 + $0x2] sm:$0xff]
        %v2475 = vld [vmem:[%s1700 + $0xa] sm:$0xff]
        %s2476 = sld [smem:[#allocation8 + $0x21]]
        %v2477 = vstv %s2476
        %v2478 = vmul.f32 %v2477, %v2474
        %v2479 = vmul.f32 %v2477, %v2475
        %v2480 = vadd.f32 %v2458, %v2478
        %v2481 = vadd.f32 %v2459, %v2479
        %s2482 = sld [smem:[#allocation8 + $0x45]]
        %v2483 = vstv %s2482
        %v2484 = vmul.f32 %v2483, %v2474
        %v2485 = vmul.f32 %v2483, %v2475
        %v2486 = vadd.f32 %v2472, %v2484
        %v2487 = vadd.f32 %v2473, %v2485
        %s2488 = sld [smem:[#allocation8 + $0x22]]
        %v2489 = vstv %s2488
        %v2490 = vmul.f32 %v2489, %v2474
        %v2491 = vmul.f32 %v2489, %v2475
        %2494 = vrot.lane.b32.xlu0 %v2490, 127
        %v2495 = vpop.permute.xlu0 %2494
        %2496 = vrot.lane.b32.xlu0 %v2491, 127
        %v2497 = vpop.permute.xlu0 %2496
        %v2500 = vadd.f32 %v2480, %v2495
        %v2501 = vadd.f32 %v2481, %v2497
        %s2502 = sld [smem:[#allocation8 + $0x46]]
        %v2503 = vstv %s2502
        %v2504 = vmul.f32 %v2503, %v2474
        %v2505 = vmul.f32 %v2503, %v2475
        %2508 = vrot.lane.b32.xlu0 %v2504, 127
        %v2509 = vpop.permute.xlu0 %2508
        %2510 = vrot.lane.b32.xlu0 %v2505, 127
        %v2511 = vpop.permute.xlu0 %2510
        %v2514 = vadd.f32 %v2486, %v2509
        %v2515 = vadd.f32 %v2487, %v2511
        %s2516 = sld [smem:[#allocation8 + $0x23]]
        %v2517 = vstv %s2516
        %v2518 = vmul.f32 %v2517, %v2474
        %v2519 = vmul.f32 %v2517, %v2475
        %2522 = vrot.lane.b32.xlu0 %v2518, 126
        %v2523 = vpop.permute.xlu0 %2522
        %2524 = vrot.lane.b32.xlu0 %v2519, 126
        %v2525 = vpop.permute.xlu0 %2524
        %v2528 = vadd.f32 %v2500, %v2523
        %v2529 = vadd.f32 %v2501, %v2525
        %s2530 = sld [smem:[#allocation8 + $0x47]]
        %v2531 = vstv %s2530
        %v2532 = vmul.f32 %v2531, %v2474
        %v2533 = vmul.f32 %v2531, %v2475
        %2536 = vrot.lane.b32.xlu0 %v2532, 126
        %v2537 = vpop.permute.xlu0 %2536
        %2538 = vrot.lane.b32.xlu0 %v2533, 126
        %v2539 = vpop.permute.xlu0 %2538
        %v2542 = vadd.f32 %v2514, %v2537
        %v2543 = vadd.f32 %v2515, %v2539
        %s2544 = sld [smem:[#allocation11]]
        %v2545 = vstv %s2544
        %v2546 = vadd.f32 %v2528, %v2545
        %v2547 = vadd.f32 %v2529, %v2545
        %s2548 = sld [smem:[#allocation11 + $0x1]]
        %v2549 = vstv %s2548
        %v2550 = vadd.f32 %v2542, %v2549
        %v2551 = vadd.f32 %v2543, %v2549
        %v2552 = vpack.c.bf16 %v2547, %v2546
        %v2553 = vld [vmem:[%s4] sm:$0xf]
        %v2554 = vld [vmem:[%s4 + $0x4] sm:$0xf]
        %v2557 = vunpack.c.l.b16 %v2553
        %v2558 = vunpack.c.l.b16 %v2554
        %v2559 = vpack.c.b16 %v2558, %v2557
        %v2562 = vsel %vm1320, %v2552, 0
        %2564 = vmatpush.bf16.msra.mxu0 0
        %2565 = vmatpush.bf16.msra.mxu0 0
        %2566 = vmatpush.bf16.msra.mxu0 0
        %2567 = vmatpush.bf16.msra.mxu0 0
        %2568 = vmatpush.bf16.msra.mxu0 0
        %2569 = vmatpush.bf16.msra.mxu0 0
        %2570 = vmatpush.bf16.msra.mxu0 0
        %2571 = vmatpush.bf16.msra.mxu0 %v2559
        %2572 = vmatmul.bf16.gmra.mxu0 %v2562
        %v2573 = vpop.f32.mrf.mxu0
        %v2574 = vadd.f32 0.0, %v2573
        %v2575 = vpop.f32.mrf.mxu0
        %v2576 = vadd.f32 0.0, %v2575
        %2577 = vdwg.mxu0
        %v2578 = vpack.c.bf16 %v2551, %v2550
        %s2579 = scalar_lea.vmem %s4, 8
        %v2580 = vld [vmem:[%s2579] sm:$0xf]
        %v2581 = vld [vmem:[%s2579 + $0x4] sm:$0xf]
        %v2584 = vunpack.c.l.b16 %v2580
        %v2585 = vunpack.c.l.b16 %v2581
        %v2586 = vpack.c.b16 %v2585, %v2584
        %v2589 = vsel %vm1320, %v2578, 0
        %2591 = vmatpush.bf16.msra.mxu0 0
        %2592 = vmatpush.bf16.msra.mxu0 0
        %2593 = vmatpush.bf16.msra.mxu0 0
        %2594 = vmatpush.bf16.msra.mxu0 0
        %2595 = vmatpush.bf16.msra.mxu0 0
        %2596 = vmatpush.bf16.msra.mxu0 0
        %2597 = vmatpush.bf16.msra.mxu0 0
        %2598 = vmatpush.bf16.msra.mxu0 %v2586
        %2599 = vmatmul.bf16.gmra.mxu0 %v2589
        %v2600 = vpop.f32.mrf.mxu0
        %v2601 = vadd.f32 0.0, %v2600
        %v2602 = vpop.f32.mrf.mxu0
        %v2603 = vadd.f32 0.0, %v2602
        %2604 = vdwg.mxu0
        %v2605 = vadd.f32 %v2546, %v2550
        %v2606 = vadd.f32 %v2547, %v2551
        %v2607 = vpack.c.bf16 %v2606, %v2605
        %s2608 = scalar_lea.vmem %s4, 16
        %v2609 = vld [vmem:[%s2608] sm:$0xf]
        %v2610 = vld [vmem:[%s2608 + $0x4] sm:$0xf]
        %v2613 = vunpack.c.l.b16 %v2609
        %v2614 = vunpack.c.l.b16 %v2610
        %v2615 = vpack.c.b16 %v2614, %v2613
        %v2618 = vsel %vm1320, %v2607, 0
        %2620 = vmatpush.bf16.msra.mxu0 0
        %2621 = vmatpush.bf16.msra.mxu0 0
        %2622 = vmatpush.bf16.msra.mxu0 0
        %2623 = vmatpush.bf16.msra.mxu0 0
        %2624 = vmatpush.bf16.msra.mxu0 0
        %2625 = vmatpush.bf16.msra.mxu0 0
        %2626 = vmatpush.bf16.msra.mxu0 0
        %2627 = vmatpush.bf16.msra.mxu0 %v2615
        %2628 = vmatmul.bf16.gmra.mxu0 %v2618
        %v2629 = vpop.f32.mrf.mxu0
        %v2630 = vadd.f32 0.0, %v2629
        %v2631 = vpop.f32.mrf.mxu0
        %v2632 = vadd.f32 0.0, %v2631
        %2633 = vdwg.mxu0
        %v2634 = vsub.f32 %v2574, %v2601
        %v2635 = vsub.f32 %v2576, %v2603
        %v2636 = vsub.f32 %v2630, %v2574
        %v2637 = vsub.f32 %v2632, %v2576
        %v2638 = vsub.f32 %v2636, %v2601
        %v2639 = vsub.f32 %v2637, %v2603
        %v2640 = vld [vmem:[%s3] sm:$0xf]
        %v2641 = vld [vmem:[%s3 + $0x4] sm:$0xf]
        %v2642 = vpack.c.bf16 %v2635, %v2634
        %v2645 = vunpack.c.l.b16 %v2640
        %v2646 = vunpack.c.l.b16 %v2641
        %v2647 = vpack.c.b16 %v2646, %v2645
        %v2649 = vsel %vm1320, %v2647, 0
        %2651 = vmatpush.bf16.msra.mxu0 0
        %2652 = vmatpush.bf16.msra.mxu0 0
        %2653 = vmatpush.bf16.msra.mxu0 0
        %2654 = vmatpush.bf16.msra.mxu0 0
        %2655 = vmatpush.bf16.msra.mxu0 0
        %2656 = vmatpush.bf16.msra.mxu0 0
        %2657 = vmatpush.bf16.msra.mxu0 0
        %2658 = vmatpush.bf16.msra.mxu0 %v2642
        %2659 = vmatmul.bf16.gmra.mxu0 %v2649
        %v2660 = vpop.f32.mrf.mxu0
        %v2661 = vadd.f32 0.0, %v2660
        %v2662 = vpop.f32.mrf.mxu0
        %v2663 = vadd.f32 0.0, %v2662
        %2664 = vdwg.mxu0
        %s2665 = scalar_lea.vmem %s3, 8
        %v2666 = vld [vmem:[%s2665] sm:$0xf]
        %v2667 = vld [vmem:[%s2665 + $0x4] sm:$0xf]
        %v2668 = vpack.c.bf16 %v2639, %v2638
        %v2671 = vunpack.c.l.b16 %v2666
        %v2672 = vunpack.c.l.b16 %v2667
        %v2673 = vpack.c.b16 %v2672, %v2671
        %v2675 = vsel %vm1320, %v2673, 0
        %2677 = vmatpush.bf16.msra.mxu0 0
        %2678 = vmatpush.bf16.msra.mxu0 0
        %2679 = vmatpush.bf16.msra.mxu0 0
        %2680 = vmatpush.bf16.msra.mxu0 0
        %2681 = vmatpush.bf16.msra.mxu0 0
        %2682 = vmatpush.bf16.msra.mxu0 0
        %2683 = vmatpush.bf16.msra.mxu0 0
        %2684 = vmatpush.bf16.msra.mxu0 %v2668
        %2685 = vmatmul.bf16.gmra.mxu0 %v2675
        %v2686 = vpop.f32.mrf.mxu0
        %v2687 = vadd.f32 0.0, %v2686
        %v2688 = vpop.f32.mrf.mxu0
        %v2689 = vadd.f32 0.0, %v2688
        %2690 = vdwg.mxu0
        %s2691 = scalar_lea.vmem %s3, 16
        %v2692 = vld [vmem:[%s2691] sm:$0xf]
        %v2693 = vld [vmem:[%s2691 + $0x4] sm:$0xf]
        %v2694 = vadd.f32 %v2634, %v2638
        %v2695 = vadd.f32 %v2635, %v2639
        %v2696 = vpack.c.bf16 %v2695, %v2694
        %v2699 = vunpack.c.l.b16 %v2692
        %v2700 = vunpack.c.l.b16 %v2693
        %v2701 = vpack.c.b16 %v2700, %v2699
        %v2703 = vsel %vm1320, %v2701, 0
        %2705 = vmatpush.bf16.msra.mxu0 0
        %2706 = vmatpush.bf16.msra.mxu0 0
        %2707 = vmatpush.bf16.msra.mxu0 0
        %2708 = vmatpush.bf16.msra.mxu0 0
        %2709 = vmatpush.bf16.msra.mxu0 0
        %2710 = vmatpush.bf16.msra.mxu0 0
        %2711 = vmatpush.bf16.msra.mxu0 0
        %2712 = vmatpush.bf16.msra.mxu0 %v2696
        %2713 = vmatmul.bf16.gmra.mxu0 %v2703
        %v2714 = vpop.f32.mrf.mxu0
        %v2715 = vadd.f32 0.0, %v2714
        %v2716 = vpop.f32.mrf.mxu0
        %v2717 = vadd.f32 0.0, %v2716
        %2718 = vdwg.mxu0
        %v2719 = vsub.f32 %v2661, %v2687
        %v2720 = vsub.f32 %v2663, %v2689
        %v2721 = vsub.f32 %v2715, %v2661
        %v2722 = vsub.f32 %v2717, %v2663
        %v2723 = vsub.f32 %v2721, %v2687
        %v2724 = vsub.f32 %v2722, %v2689
        %s2725 = scalar_lea.vmem %s404, 32 [#allocation14]
        %2726 = vst.msk [vmem:[%s2725] sm:$0xff] %vm1320, %v2719
        %2727 = vst.msk [vmem:[%s2725 + $0x8] sm:$0xff] %vm1320, %v2720
        %s2728 = scalar_lea.vmem %s404, 48 [#allocation14]
        %2729 = vst.msk [vmem:[%s2728] sm:$0xff] %vm1320, %v2723
        %2730 = vst.msk [vmem:[%s2728 + $0x8] sm:$0xff] %vm1320, %v2724
        %s2731 = sand.u32 %s231, 1
        %s2732 = scalar_lea.sflag [#allocation6], %s2731
        %s2733 = sand.u32 %s231, 1
        %s2734 = smul.addr %s2733, 64
        %s2735 = scalar_lea.vmem [#allocation14], %s2734
        // Predicated region
        $region77: #{multidomain_conv2d.1} parent=55 // pred_check
          %p2736 = pneg %p241
        $region78: #{multidomain_conv2d.1} parent=55 // pred_check_branch
          %2738 = sbr.rel (%p2736) target = $region80
        $region79: #{multidomain_conv2d.1} parent=55 // pred_region
          %2740 = vsyncadd %s2732, 0
          %s2741 = smul.addr %s29, 8
          %s2742 = smul.addr %s2741, 8
          %s2743 = scalar_lea.hbm %s9, %s2742
          %s2744 = sshll.u32 %s2735, 4
          %s2745 = int_to_ptr.vmem [resolvable:$true] %s2744
          %s2746 = sshll.u32 %s2743, 4
          %s2747 = int_to_ptr.hbm [resolvable:$true] %s2746
          %2752 = dma.vmem_to_hbm [thread:$0]  %s2745, 1024, %s2747, %s2732, 128, 128, 8
        $region80: #{multidomain_conv2d.1} parent=55 // pred_fallthru
          _
      $region56: #{multidomain_conv2d.1} parent=5 // pred_fallthru
        _
      %p2753 = scmp.le.s32.totalorder 2, %s24
      // Predicated region
      $region81: #{multidomain_conv2d.1} parent=5 // pred_check
        %p2754 = pneg %p2753
      $region82: #{multidomain_conv2d.1} parent=5 // pred_check_branch
        %2756 = sbr.rel (%p2754) target = $region84
      $region83: #{multidomain_conv2d.1} parent=5 // pred_region
        %s2757 = ssub.s32 %s24, 2
        // Predicated region
        $region85: #{multidomain_conv2d.1} parent=83 // pred_check
          %p2758 = pneg %p247
        $region86: #{multidomain_conv2d.1} parent=83 // pred_check_branch
          %2760 = sbr.rel (%p2758) target = $region88
        $region87: #{multidomain_conv2d.1} parent=83 // pred_region
          %s2761 = sand.u32 %s232, 1
          %s2762 = scalar_lea.sflag [#allocation6], %s2761
          %s2763 = sand.u32 %s232, 1
          %s2764 = smul.addr %s2763, 64
          %s2765 = scalar_lea.vmem [#allocation14], %s2764
          %2767 = dma.done %s2762, 1024
        $region88: #{multidomain_conv2d.1} parent=83 // pred_fallthru
          _
      $region84: #{multidomain_conv2d.1} parent=5 // pred_fallthru
        _
    $region6: #{multidomain_conv2d.1} parent=1 // loop_footer
      %s28 = sadd.s32 1, %s24
    $region7: #{multidomain_conv2d.1} parent=1 // loop_footer_branch
      %23 = sbr.rel target = $region3
    $region8: #{multidomain_conv2d.1} parent=1 // loop_exit
      _
    %2768 = vsyncpa [#allocation5], 1
    %s2769 = scalar_lea.sflag [#allocation5], 1
    %2770 = vsyncpa %s2769, 1
    %2771 = vsyncpa [#allocation6], 1
    %s2772 = scalar_lea.sflag [#allocation6], 1
    %2773 = vsyncpa %s2772, 1
    %2774 = vsyncpa [#allocation7], 1
    %s2775 = scalar_lea.sflag [#allocation7], 1
    %2776 = vsyncpa %s2775, 1
    %2777 = vsyncpa [#allocation10], 1
    %2778 = vsyncpa [#allocation13], 1

</llo_original>
